<compile_context>
chip_gen: v5e
topology: v5e:2x2
jax: 0.10.0
libtpu: 0.0.40
codegen_flags: <defaults>
</compile_context>

<pallas_src>
import functools
import math

import jax
import jax.numpy as jnp
from jax import lax
from jax.experimental import pallas as pl
from jax.experimental.pallas import tpu as pltpu


def _tcn_kernel(x_ref, w_ref, b_ref, gamma_ref, beta_ref, o_ref, *,
                v, kernel_size, eps):
    """Fused temporal-conv + BatchNorm2d (training-mode batch statistics).

    x_ref:     (N, C_in, L)       L = T * V, lanes = flattened (T, V)
    w_ref:     (C_out, K * C_in)  flattened conv weight, row index k*C_in + ci
    b_ref:     (C_out, 1)         conv bias
    gamma_ref: (C_out, 1)         BN weight
    beta_ref:  (C_out, 1)         BN bias
    o_ref:     (N, C_out, L)
    """
    n, c_in, ll = x_ref.shape
    pad = (kernel_size - 1) // 2

    x = x_ref[...]                                        # (N, C_in, L)

    # im2col taps on the 3-D slab: temporal shift of (k - pad) frames is a
    # lane shift of (k - pad) * V on the flattened (T*V) axis; the zero
    # padding in T becomes zero fill at the slab boundary.  Because L is the
    # last axis, the shift is per-batch and never leaks across n.
    taps = []
    for k in range(kernel_size):                          # static, K = 9
        s = (k - pad) * v
        if s == 0:
            xs = x
        elif s > 0:
            if s >= ll:
                xs = jnp.zeros_like(x)
            else:
                xs = jnp.concatenate(
                    [x[:, :, s:], jnp.zeros((n, c_in, s), x.dtype)], axis=2)
        else:
            sm = -s
            if sm >= ll:
                xs = jnp.zeros_like(x)
            else:
                xs = jnp.concatenate(
                    [jnp.zeros((n, c_in, sm), x.dtype), x[:, :, :ll - sm]],
                    axis=2)
        taps.append(xs)
    xcol = jnp.concatenate(taps, axis=1)                  # (N, K*C_in, L)

    w = w_ref[...]                                        # (C_out, K*C_in)
    bias = b_ref[...]                                     # (C_out, 1)

    # Temporal conv: N matmuls with a deep contraction dim (K*C_in).  Keep the
    # per-batch results live (tiny) so BN needs no re-read of the output.
    ys = []
    for b in range(n):                                    # static, small N
        yb = jnp.dot(w, xcol[b],
                     preferred_element_type=jnp.float32,
                     precision=lax.Precision.HIGHEST) + bias    # (C_out, L)
        ys.append(yb)

    # BatchNorm2d, training-mode batch statistics: per-output-channel mean and
    # biased variance over (N, T, V) == the lane axis across all batches.
    inv_m = 1.0 / (n * ll)
    mean = sum(jnp.sum(yb, axis=1, keepdims=True) for yb in ys) * inv_m
    var = sum(jnp.sum((yb - mean) * (yb - mean), axis=1, keepdims=True)
              for yb in ys) * inv_m                       # (C_out, 1)

    # Fold BN normalization + affine into one per-channel scale/shift FMA.
    scale = gamma_ref[...] * lax.rsqrt(var + eps)         # (C_out, 1)
    shift = beta_ref[...] - mean * scale                  # (C_out, 1)

    # Lane-dense stores (L is a multiple of 128 in the demo).
    for b in range(n):
        o_ref[b] = (ys[b] * scale + shift).astype(o_ref.dtype)


@functools.partial(jax.jit, static_argnames=("stride", "eps"))
def tcn_forward(x, weight, bias, gamma, beta, *, stride=1, eps=1e-5):
    """tcn.forward.  x: (N, C_in, T, V); weight: (C_out, C_in, K, 1)."""
    # TODO(synk): stride > 1 (temporal downsampling) not implemented; the
    # module default (stride=1) is what this kernel covers.
    assert stride == 1
    n, c_in, t, v = x.shape
    c_out, c_in2, k_sz, kw = weight.shape
    assert c_in2 == c_in and kw == 1
    ll = t * v

    # Free, contiguous reshape of x (no HBM transpose).
    x3 = x.reshape(n, c_in, ll).astype(jnp.float32)

    # (C_out, C_in, K, 1) -> (C_out, K*C_in), row order k*C_in + ci to match
    # the im2col row order in the kernel.  (Tiny tensor: negligible.)
    w_flat = jnp.transpose(weight[:, :, :, 0], (0, 2, 1)).reshape(
        c_out, k_sz * c_in).astype(jnp.float32)

    b2 = bias.reshape(c_out, 1).astype(jnp.float32)
    g2 = gamma.reshape(c_out, 1).astype(jnp.float32)
    be2 = beta.reshape(c_out, 1).astype(jnp.float32)

    kernel = functools.partial(_tcn_kernel, v=v, kernel_size=k_sz, eps=eps)

    # Single invocation, no grid: the whole problem fits comfortably in VMEM
    # at these shapes; a grid would only add per-step pipeline overhead.
    # TODO(synk): for production Shift-GCN shapes (N~64, T~300, C~256), tile
    # over N/T with a halo of `pad` frames and a two-pass BN reduction.
    y = pl.pallas_call(
        kernel,
        out_shape=jax.ShapeDtypeStruct((n, c_out, ll), jnp.float32),
        in_specs=[pl.BlockSpec(memory_space=pltpu.MemorySpace.VMEM)] * 5,
        out_specs=pl.BlockSpec(memory_space=pltpu.MemorySpace.VMEM),
    )(x3, w_flat, b2, g2, be2)

    # Free reshape back to (N, C_out, T, V).
    return y.reshape(n, c_out, t, v)


# ---------------- pure-JAX reference (for correctness check) ----------------
def tcn_reference(x, weight, bias, gamma, beta, eps=1e-5):
    k_sz = weight.shape[2]
    pad = (k_sz - 1) // 2
    y = lax.conv_general_dilated(
        x.astype(jnp.float32), weight.astype(jnp.float32),
        window_strides=(1, 1), padding=((pad, pad), (0, 0)),
        dimension_numbers=("NCHW", "OIHW", "NCHW"),
        precision=lax.Precision.HIGHEST)
    y = y + bias[None, :, None, None]
    mean = jnp.mean(y, axis=(0, 2, 3), keepdims=True)
    var = jnp.mean((y - mean) ** 2, axis=(0, 2, 3), keepdims=True)   # biased
    y = (y - mean) * lax.rsqrt(var + eps)
    return gamma[None, :, None, None] * y + beta[None, :, None, None]


if __name__ == "__main__":
    # Small shapes consistent with the module: x is (N, C_in, T, V); T*V is a
    # multiple of 128 so the flattened lane axis is dense and unmasked.
    N, C_IN, C_OUT, T, V = 2, 16, 32, 16, 16
    K = 9

    key = jax.random.PRNGKey(0)
    kx, kw, kb, kg, kbeta = jax.random.split(key, 5)

    x = jax.random.normal(kx, (N, C_IN, T, V), dtype=jnp.float32)
    # conv_init: kaiming_normal, fan_out = C_out * K * 1.  BN/conv bias params
    # are perturbed slightly from their init constants (gamma=1, beta=0, b=0)
    # so every affine path is actually exercised by the check.
    w = jax.random.normal(kw, (C_OUT, C_IN, K, 1), dtype=jnp.float32) * math.sqrt(
        2.0 / (C_OUT * K))
    bias = 0.05 * jax.random.normal(kb, (C_OUT,), dtype=jnp.float32)
    gamma = 1.0 + 0.1 * jax.random.normal(kg, (C_OUT,), dtype=jnp.float32)
    beta = 0.1 * jax.random.normal(kbeta, (C_OUT,), dtype=jnp.float32)

    out = tcn_forward(x, w, bias, gamma, beta)
    out = jax.block_until_ready(out)

    ref = tcn_reference(x, w, bias, gamma, beta)
    assert out.shape == ref.shape
    err = float(jnp.max(jnp.abs(out - ref)))
    assert jnp.allclose(out, ref, atol=5e-3, rtol=5e-3), f"max abs err = {err}"
    print("KERNEL_OK")
</pallas_src>

<mosaic_0001>
module attributes {stable_mosaic.version = 11 : i64} {
  func.func @_tcn_kernel(%arg0: memref<2x16x256xf32, #tpu.memory_space<vmem>>, %arg1: memref<32x144xf32, #tpu.memory_space<vmem>>, %arg2: memref<32x1xf32, #tpu.memory_space<vmem>>, %arg3: memref<32x1xf32, #tpu.memory_space<vmem>>, %arg4: memref<32x1xf32, #tpu.memory_space<vmem>>, %arg5: memref<2x32x256xf32, #tpu.memory_space<vmem>>) attributes {dimension_semantics = [], scalar_prefetch = 0 : i64, scratch_operands = 0 : i64, tpu.core_type = #tpu.core_type<tc>} {
    %c0 = arith.constant 0 : index
    %c0_0 = arith.constant 0 : index
    %c0_1 = arith.constant 0 : index
    %0 = vector.load %arg0[%c0, %c0_0, %c0_1] : memref<2x16x256xf32, #tpu.memory_space<vmem>>, vector<2x16x256xf32>
    %cst = arith.constant 0.000000e+00 : f32
    %1 = vector.broadcast %cst : f32 to vector<2x16x64xf32>
    %2 = vector.extract_strided_slice %0 {offsets = [0, 0, 0], sizes = [2, 16, 192], strides = [1, 1, 1]} : vector<2x16x256xf32> to vector<2x16x192xf32>
    %3 = tpu.concatenate %1, %2 in 2 : vector<2x16x64xf32>, vector<2x16x192xf32> -> vector<2x16x256xf32>
    %cst_2 = arith.constant 0.000000e+00 : f32
    %4 = vector.broadcast %cst_2 : f32 to vector<2x16x48xf32>
    %5 = vector.extract_strided_slice %0 {offsets = [0, 0, 0], sizes = [2, 16, 208], strides = [1, 1, 1]} : vector<2x16x256xf32> to vector<2x16x208xf32>
    %6 = tpu.concatenate %4, %5 in 2 : vector<2x16x48xf32>, vector<2x16x208xf32> -> vector<2x16x256xf32>
    %cst_3 = arith.constant 0.000000e+00 : f32
    %7 = vector.broadcast %cst_3 : f32 to vector<2x16x32xf32>
    %8 = vector.extract_strided_slice %0 {offsets = [0, 0, 0], sizes = [2, 16, 224], strides = [1, 1, 1]} : vector<2x16x256xf32> to vector<2x16x224xf32>
    %9 = tpu.concatenate %7, %8 in 2 : vector<2x16x32xf32>, vector<2x16x224xf32> -> vector<2x16x256xf32>
    %cst_4 = arith.constant 0.000000e+00 : f32
    %10 = vector.broadcast %cst_4 : f32 to vector<2x16x16xf32>
    %11 = vector.extract_strided_slice %0 {offsets = [0, 0, 0], sizes = [2, 16, 240], strides = [1, 1, 1]} : vector<2x16x256xf32> to vector<2x16x240xf32>
    %12 = tpu.concatenate %10, %11 in 2 : vector<2x16x16xf32>, vector<2x16x240xf32> -> vector<2x16x256xf32>
    %13 = vector.extract_strided_slice %0 {offsets = [0, 0, 16], sizes = [2, 16, 240], strides = [1, 1, 1]} : vector<2x16x256xf32> to vector<2x16x240xf32>
    %cst_5 = arith.constant 0.000000e+00 : f32
    %14 = vector.broadcast %cst_5 : f32 to vector<2x16x16xf32>
    %15 = tpu.concatenate %13, %14 in 2 : vector<2x16x240xf32>, vector<2x16x16xf32> -> vector<2x16x256xf32>
    %16 = vector.extract_strided_slice %0 {offsets = [0, 0, 32], sizes = [2, 16, 224], strides = [1, 1, 1]} : vector<2x16x256xf32> to vector<2x16x224xf32>
    %cst_6 = arith.constant 0.000000e+00 : f32
    %17 = vector.broadcast %cst_6 : f32 to vector<2x16x32xf32>
    %18 = tpu.concatenate %16, %17 in 2 : vector<2x16x224xf32>, vector<2x16x32xf32> -> vector<2x16x256xf32>
    %19 = vector.extract_strided_slice %0 {offsets = [0, 0, 48], sizes = [2, 16, 208], strides = [1, 1, 1]} : vector<2x16x256xf32> to vector<2x16x208xf32>
    %cst_7 = arith.constant 0.000000e+00 : f32
    %20 = vector.broadcast %cst_7 : f32 to vector<2x16x48xf32>
    %21 = tpu.concatenate %19, %20 in 2 : vector<2x16x208xf32>, vector<2x16x48xf32> -> vector<2x16x256xf32>
    %22 = vector.extract_strided_slice %0 {offsets = [0, 0, 64], sizes = [2, 16, 192], strides = [1, 1, 1]} : vector<2x16x256xf32> to vector<2x16x192xf32>
    %cst_8 = arith.constant 0.000000e+00 : f32
    %23 = vector.broadcast %cst_8 : f32 to vector<2x16x64xf32>
    %24 = tpu.concatenate %22, %23 in 2 : vector<2x16x192xf32>, vector<2x16x64xf32> -> vector<2x16x256xf32>
    %25 = tpu.concatenate %3, %6, %9, %12, %0, %15, %18, %21, %24 in 1 : vector<2x16x256xf32>, vector<2x16x256xf32>, vector<2x16x256xf32>, vector<2x16x256xf32>, vector<2x16x256xf32>, vector<2x16x256xf32>, vector<2x16x256xf32>, vector<2x16x256xf32>, vector<2x16x256xf32> -> vector<2x144x256xf32>
    %c0_9 = arith.constant 0 : index
    %c0_10 = arith.constant 0 : index
    %26 = vector.load %arg1[%c0_9, %c0_10] : memref<32x144xf32, #tpu.memory_space<vmem>>, vector<32x144xf32>
    %c0_11 = arith.constant 0 : index
    %c0_12 = arith.constant 0 : index
    %27 = vector.load %arg2[%c0_11, %c0_12] : memref<32x1xf32, #tpu.memory_space<vmem>>, vector<32x1xf32>
    %28 = vector.extract_strided_slice %25 {offsets = [0, 0, 0], sizes = [1, 144, 256], strides = [1, 1, 1]} : vector<2x144x256xf32> to vector<1x144x256xf32>
    %29 = vector.shape_cast %28 : vector<1x144x256xf32> to vector<144x256xf32>
    %cst_13 = arith.constant dense<0.000000e+00> : vector<32x256xf32>
    %30 = tpu.matmul %26, %29, %cst_13 {dimension_numbers = #tpu.dot_dimension_numbers<[1], [0], [0], [1], [0, 0, 1, 1], [], []>, precision = #tpu.contract_precision<fp32>} : vector<32x144xf32>, vector<144x256xf32>, vector<32x256xf32> -> vector<32x256xf32>
    %31 = vector.broadcast %27 : vector<32x1xf32> to vector<32x256xf32>
    %32 = arith.addf %30, %31 : vector<32x256xf32>
    %33 = vector.extract_strided_slice %25 {offsets = [1, 0, 0], sizes = [1, 144, 256], strides = [1, 1, 1]} : vector<2x144x256xf32> to vector<1x144x256xf32>
    %34 = vector.shape_cast %33 : vector<1x144x256xf32> to vector<144x256xf32>
    %cst_14 = arith.constant dense<0.000000e+00> : vector<32x256xf32>
    %35 = tpu.matmul %26, %34, %cst_14 {dimension_numbers = #tpu.dot_dimension_numbers<[1], [0], [0], [1], [0, 0, 1, 1], [], []>, precision = #tpu.contract_precision<fp32>} : vector<32x144xf32>, vector<144x256xf32>, vector<32x256xf32> -> vector<32x256xf32>
    %36 = vector.broadcast %27 : vector<32x1xf32> to vector<32x256xf32>
    %37 = arith.addf %35, %36 : vector<32x256xf32>
    %cst_15 = arith.constant dense<0.000000e+00> : vector<32xf32>
    %38 = vector.multi_reduction <add>, %32, %cst_15 [1] : vector<32x256xf32> to vector<32xf32>
    %39 = vector.shape_cast %38 : vector<32xf32> to vector<32x1xf32>
    %cst_16 = arith.constant 0.000000e+00 : f32
    %40 = vector.broadcast %cst_16 : f32 to vector<32x1xf32>
    %41 = arith.addf %40, %39 : vector<32x1xf32>
    %cst_17 = arith.constant dense<0.000000e+00> : vector<32xf32>
    %42 = vector.multi_reduction <add>, %37, %cst_17 [1] : vector<32x256xf32> to vector<32xf32>
    %43 = vector.shape_cast %42 : vector<32xf32> to vector<32x1xf32>
    %44 = arith.addf %41, %43 : vector<32x1xf32>
    %cst_18 = arith.constant 0.001953125 : f32
    %45 = vector.broadcast %cst_18 : f32 to vector<32x1xf32>
    %46 = arith.mulf %44, %45 : vector<32x1xf32>
    %47 = vector.broadcast %46 : vector<32x1xf32> to vector<32x256xf32>
    %48 = arith.subf %32, %47 : vector<32x256xf32>
    %49 = vector.broadcast %46 : vector<32x1xf32> to vector<32x256xf32>
    %50 = arith.subf %32, %49 : vector<32x256xf32>
    %51 = arith.mulf %48, %50 : vector<32x256xf32>
    %cst_19 = arith.constant dense<0.000000e+00> : vector<32xf32>
    %52 = vector.multi_reduction <add>, %51, %cst_19 [1] : vector<32x256xf32> to vector<32xf32>
    %53 = vector.shape_cast %52 : vector<32xf32> to vector<32x1xf32>
    %cst_20 = arith.constant 0.000000e+00 : f32
    %54 = vector.broadcast %cst_20 : f32 to vector<32x1xf32>
    %55 = arith.addf %54, %53 : vector<32x1xf32>
    %56 = vector.broadcast %46 : vector<32x1xf32> to vector<32x256xf32>
    %57 = arith.subf %37, %56 : vector<32x256xf32>
    %58 = vector.broadcast %46 : vector<32x1xf32> to vector<32x256xf32>
    %59 = arith.subf %37, %58 : vector<32x256xf32>
    %60 = arith.mulf %57, %59 : vector<32x256xf32>
    %cst_21 = arith.constant dense<0.000000e+00> : vector<32xf32>
    %61 = vector.multi_reduction <add>, %60, %cst_21 [1] : vector<32x256xf32> to vector<32xf32>
    %62 = vector.shape_cast %61 : vector<32xf32> to vector<32x1xf32>
    %63 = arith.addf %55, %62 : vector<32x1xf32>
    %cst_22 = arith.constant 0.001953125 : f32
    %64 = vector.broadcast %cst_22 : f32 to vector<32x1xf32>
    %65 = arith.mulf %63, %64 : vector<32x1xf32>
    %c0_23 = arith.constant 0 : index
    %c0_24 = arith.constant 0 : index
    %66 = vector.load %arg3[%c0_23, %c0_24] : memref<32x1xf32, #tpu.memory_space<vmem>>, vector<32x1xf32>
    %cst_25 = arith.constant 9.99999974E-6 : f32
    %67 = vector.broadcast %cst_25 : f32 to vector<32x1xf32>
    %68 = arith.addf %65, %67 : vector<32x1xf32>
    %69 = math.rsqrt %68 : vector<32x1xf32>
    %70 = arith.mulf %66, %69 : vector<32x1xf32>
    %c0_26 = arith.constant 0 : index
    %c0_27 = arith.constant 0 : index
    %71 = vector.load %arg4[%c0_26, %c0_27] : memref<32x1xf32, #tpu.memory_space<vmem>>, vector<32x1xf32>
    %72 = arith.mulf %46, %70 : vector<32x1xf32>
    %73 = arith.subf %71, %72 : vector<32x1xf32>
    %74 = vector.broadcast %70 : vector<32x1xf32> to vector<32x256xf32>
    %75 = arith.mulf %32, %74 : vector<32x256xf32>
    %76 = vector.broadcast %73 : vector<32x1xf32> to vector<32x256xf32>
    %77 = arith.addf %75, %76 : vector<32x256xf32>
    %c0_28 = arith.constant 0 : index
    %c0_29 = arith.constant 0 : index
    %c0_30 = arith.constant 0 : index
    %78 = vector.load %arg5[%c0_28, %c0_29, %c0_30] : memref<2x32x256xf32, #tpu.memory_space<vmem>>, vector<1x32x256xf32>
    %79 = vector.shape_cast %78 : vector<1x32x256xf32> to vector<32x256xf32>
    %80 = vector.shape_cast %77 : vector<32x256xf32> to vector<1x32x256xf32>
    tpu.vector_store %arg5[%c0_28, %c0_29, %c0_30], %80 {strides = array<i32>} : memref<2x32x256xf32, #tpu.memory_space<vmem>>, vector<1x32x256xf32>,
    %81 = vector.broadcast %70 : vector<32x1xf32> to vector<32x256xf32>
    %82 = arith.mulf %37, %81 : vector<32x256xf32>
    %83 = vector.broadcast %73 : vector<32x1xf32> to vector<32x256xf32>
    %84 = arith.addf %82, %83 : vector<32x256xf32>
    %c1 = arith.constant 1 : index
    %c0_31 = arith.constant 0 : index
    %c0_32 = arith.constant 0 : index
    %85 = vector.load %arg5[%c1, %c0_31, %c0_32] : memref<2x32x256xf32, #tpu.memory_space<vmem>>, vector<1x32x256xf32>
    %86 = vector.shape_cast %85 : vector<1x32x256xf32> to vector<32x256xf32>
    %87 = vector.shape_cast %84 : vector<32x256xf32> to vector<1x32x256xf32>
    tpu.vector_store %arg5[%c1, %c0_31, %c0_32], %87 {strides = array<i32>} : memref<2x32x256xf32, #tpu.memory_space<vmem>>, vector<1x32x256xf32>,
    return
  }
}

</mosaic_0001>

<llo_original>
// kernel: tcn_forward.1
$region0: #{tcn_forward.1}
  #allocation0 [shape = 'u32[]', space=smem, size = 0x4, offset = 0x4, fixed_abs, tag = 'smem constant byte address 0x4 - core index']
  #allocation1 [shape = 'u32[72,128]{1,0:T(1,128)}', space=vmem, size = 0x9000, scoped, tag = 'internal scratch']
  %s0 = inlined_call_operand.vmem [shape: f32[2,16,256], index: 0, kind: input, shape index: {}]
  %s1 = inlined_call_operand.vmem [shape: f32[32,144], index: 1, kind: input, shape index: {}]
  %s2 = inlined_call_operand.vmem [shape: f32[32,1], index: 2, kind: input, shape index: {}]
  %s3 = inlined_call_operand.vmem [shape: f32[32,1], index: 3, kind: input, shape index: {}]
  %s4 = inlined_call_operand.vmem [shape: f32[32,1], index: 4, kind: input, shape index: {}]
  %s5 = inlined_call_operand.vmem [shape: f32[2,32,256], index: 5, kind: output, shape index: {}]
  %s6 = sld [smem:[#allocation0]]
  $region30: #{tcn_forward.1} parent=0
    _
  %s8 = ssub.s32 1, %s6
  %s9 = scalar_select 0, %s8, %s6
  // Predicated region
  $region2: #{tcn_forward.1} parent=0 // pred_check
    _
  $region3: #{tcn_forward.1} parent=0 // pred_check_branch
    %11 = sbr.rel (0) target = $region5
  $region4: #{tcn_forward.1} parent=0 // pred_region
    _
  $region5: #{tcn_forward.1} parent=0 // pred_fallthru
    _
  // Predicated region
  $region6: #{tcn_forward.1} parent=0 // pred_check
    _
  $region7: #{tcn_forward.1} parent=0 // pred_check_branch
    %13 = sbr.rel (0) target = $region9
  $region8: #{tcn_forward.1} parent=0 // pred_region
    _
  $region9: #{tcn_forward.1} parent=0 // pred_fallthru
    _
  // Predicated region
  $region10: #{tcn_forward.1} parent=0 // pred_check
    _
  $region11: #{tcn_forward.1} parent=0 // pred_check_branch
    %15 = sbr.rel (0) target = $region13
  $region12: #{tcn_forward.1} parent=0 // pred_region
    _
  $region13: #{tcn_forward.1} parent=0 // pred_fallthru
    _
  // Predicated region
  $region14: #{tcn_forward.1} parent=0 // pred_check
    _
  $region15: #{tcn_forward.1} parent=0 // pred_check_branch
    %17 = sbr.rel (0) target = $region17
  $region16: #{tcn_forward.1} parent=0 // pred_region
    _
  $region17: #{tcn_forward.1} parent=0 // pred_fallthru
    _
  // Predicated region
  $region18: #{tcn_forward.1} parent=0 // pred_check
    _
  $region19: #{tcn_forward.1} parent=0 // pred_check_branch
    %19 = sbr.rel (0) target = $region21
  $region20: #{tcn_forward.1} parent=0 // pred_region
    _
  $region21: #{tcn_forward.1} parent=0 // pred_fallthru
    _
  %v20 = vld [vmem:[%s0] sm:$0xff]
  %v21 = vld [vmem:[%s0 + $0x8] sm:$0xff]
  %v22 = vld [vmem:[%s0 + $0x10] sm:$0xff]
  %v23 = vld [vmem:[%s0 + $0x18] sm:$0xff]
  %v24 = vld [vmem:[%s0 + $0x20] sm:$0xff]
  %v25 = vld [vmem:[%s0 + $0x28] sm:$0xff]
  %v26 = vld [vmem:[%s0 + $0x30] sm:$0xff]
  %v27 = vld [vmem:[%s0 + $0x38] sm:$0xff]
  %36 = vrot.lane.b32.xlu0 %v20, 64
  %v37 = vpop.permute.xlu0 %36
  %38 = vrot.lane.b32.xlu0 %v21, 64
  %v39 = vpop.permute.xlu0 %38
  %40 = vrot.lane.b32.xlu0 %v22, 64
  %v41 = vpop.permute.xlu0 %40
  %42 = vrot.lane.b32.xlu0 %v23, 64
  %v43 = vpop.permute.xlu0 %42
  %44 = vrot.lane.b32.xlu0 %v24, 64
  %v45 = vpop.permute.xlu0 %44
  %46 = vrot.lane.b32.xlu0 %v25, 64
  %v47 = vpop.permute.xlu0 %46
  %48 = vrot.lane.b32.xlu0 %v26, 64
  %v49 = vpop.permute.xlu0 %48
  %50 = vrot.lane.b32.xlu0 %v27, 64
  %v51 = vpop.permute.xlu0 %50
  %vm52 = vcmask 523264
  %v53 = vsel %vm52, %v37, %v39
  %v54 = vsel %vm52, %v41, %v43
  %v55 = vsel %vm52, %v45, %v47
  %v56 = vsel %vm52, %v49, %v51
  %v65 = vsel %vm52, 0.0, %v37
  %v66 = vsel %vm52, 0.0, %v41
  %v67 = vsel %vm52, 0.0, %v45
  %v68 = vsel %vm52, 0.0, %v49
  %69 = vrot.lane.b32.xlu0 %v20, 48
  %v70 = vpop.permute.xlu0 %69
  %71 = vrot.lane.b32.xlu0 %v21, 48
  %v72 = vpop.permute.xlu0 %71
  %73 = vrot.lane.b32.xlu0 %v22, 48
  %v74 = vpop.permute.xlu0 %73
  %75 = vrot.lane.b32.xlu0 %v23, 48
  %v76 = vpop.permute.xlu0 %75
  %77 = vrot.lane.b32.xlu0 %v24, 48
  %v78 = vpop.permute.xlu0 %77
  %79 = vrot.lane.b32.xlu0 %v25, 48
  %v80 = vpop.permute.xlu0 %79
  %81 = vrot.lane.b32.xlu0 %v26, 48
  %v82 = vpop.permute.xlu0 %81
  %83 = vrot.lane.b32.xlu0 %v27, 48
  %v84 = vpop.permute.xlu0 %83
  %vm85 = vcmask 392192
  %v86 = vsel %vm85, %v70, %v72
  %v87 = vsel %vm85, %v74, %v76
  %v88 = vsel %vm85, %v78, %v80
  %v89 = vsel %vm85, %v82, %v84
  %v98 = vsel %vm85, 0.0, %v70
  %v99 = vsel %vm85, 0.0, %v74
  %v100 = vsel %vm85, 0.0, %v78
  %v101 = vsel %vm85, 0.0, %v82
  %102 = vrot.lane.b32.xlu0 %v20, 32
  %v103 = vpop.permute.xlu0 %102
  %104 = vrot.lane.b32.xlu0 %v21, 32
  %v105 = vpop.permute.xlu0 %104
  %106 = vrot.lane.b32.xlu0 %v22, 32
  %v107 = vpop.permute.xlu0 %106
  %108 = vrot.lane.b32.xlu0 %v23, 32
  %v109 = vpop.permute.xlu0 %108
  %110 = vrot.lane.b32.xlu0 %v24, 32
  %v111 = vpop.permute.xlu0 %110
  %112 = vrot.lane.b32.xlu0 %v25, 32
  %v113 = vpop.permute.xlu0 %112
  %114 = vrot.lane.b32.xlu0 %v26, 32
  %v115 = vpop.permute.xlu0 %114
  %116 = vrot.lane.b32.xlu0 %v27, 32
  %v117 = vpop.permute.xlu0 %116
  %vm118 = vcmask 261120
  %v119 = vsel %vm118, %v103, %v105
  %v120 = vsel %vm118, %v107, %v109
  %v121 = vsel %vm118, %v111, %v113
  %v122 = vsel %vm118, %v115, %v117
  %v131 = vsel %vm118, 0.0, %v103
  %v132 = vsel %vm118, 0.0, %v107
  %v133 = vsel %vm118, 0.0, %v111
  %v134 = vsel %vm118, 0.0, %v115
  %135 = vrot.lane.b32.xlu0 %v20, 16
  %v136 = vpop.permute.xlu0 %135
  %137 = vrot.lane.b32.xlu0 %v21, 16
  %v138 = vpop.permute.xlu0 %137
  %139 = vrot.lane.b32.xlu0 %v22, 16
  %v140 = vpop.permute.xlu0 %139
  %141 = vrot.lane.b32.xlu0 %v23, 16
  %v142 = vpop.permute.xlu0 %141
  %143 = vrot.lane.b32.xlu0 %v24, 16
  %v144 = vpop.permute.xlu0 %143
  %145 = vrot.lane.b32.xlu0 %v25, 16
  %v146 = vpop.permute.xlu0 %145
  %147 = vrot.lane.b32.xlu0 %v26, 16
  %v148 = vpop.permute.xlu0 %147
  %149 = vrot.lane.b32.xlu0 %v27, 16
  %v150 = vpop.permute.xlu0 %149
  %vm151 = vcmask 130048
  %v152 = vsel %vm151, %v136, %v138
  %v153 = vsel %vm151, %v140, %v142
  %v154 = vsel %vm151, %v144, %v146
  %v155 = vsel %vm151, %v148, %v150
  %v164 = vsel %vm151, 0.0, %v136
  %v165 = vsel %vm151, 0.0, %v140
  %v166 = vsel %vm151, 0.0, %v144
  %v167 = vsel %vm151, 0.0, %v148
  %168 = vrot.lane.b32.xlu0 %v20, 112
  %v169 = vpop.permute.xlu0 %168
  %170 = vrot.lane.b32.xlu0 %v21, 112
  %v171 = vpop.permute.xlu0 %170
  %172 = vrot.lane.b32.xlu0 %v22, 112
  %v173 = vpop.permute.xlu0 %172
  %174 = vrot.lane.b32.xlu0 %v23, 112
  %v175 = vpop.permute.xlu0 %174
  %176 = vrot.lane.b32.xlu0 %v24, 112
  %v177 = vpop.permute.xlu0 %176
  %178 = vrot.lane.b32.xlu0 %v25, 112
  %v179 = vpop.permute.xlu0 %178
  %180 = vrot.lane.b32.xlu0 %v26, 112
  %v181 = vpop.permute.xlu0 %180
  %182 = vrot.lane.b32.xlu0 %v27, 112
  %v183 = vpop.permute.xlu0 %182
  %vm184 = vcmask 916480
  %v185 = vsel %vm184, %v169, %v171
  %v186 = vsel %vm184, %v173, %v175
  %v187 = vsel %vm184, %v177, %v179
  %v188 = vsel %vm184, %v181, %v183
  %v197 = vsel %vm184, %v171, 0.0
  %v198 = vsel %vm184, %v175, 0.0
  %v199 = vsel %vm184, %v179, 0.0
  %v200 = vsel %vm184, %v183, 0.0
  %201 = vrot.lane.b32.xlu0 %v20, 96
  %v202 = vpop.permute.xlu0 %201
  %203 = vrot.lane.b32.xlu0 %v21, 96
  %v204 = vpop.permute.xlu0 %203
  %205 = vrot.lane.b32.xlu0 %v22, 96
  %v206 = vpop.permute.xlu0 %205
  %207 = vrot.lane.b32.xlu0 %v23, 96
  %v208 = vpop.permute.xlu0 %207
  %209 = vrot.lane.b32.xlu0 %v24, 96
  %v210 = vpop.permute.xlu0 %209
  %211 = vrot.lane.b32.xlu0 %v25, 96
  %v212 = vpop.permute.xlu0 %211
  %213 = vrot.lane.b32.xlu0 %v26, 96
  %v214 = vpop.permute.xlu0 %213
  %215 = vrot.lane.b32.xlu0 %v27, 96
  %v216 = vpop.permute.xlu0 %215
  %vm217 = vcmask 785408
  %v218 = vsel %vm217, %v202, %v204
  %v219 = vsel %vm217, %v206, %v208
  %v220 = vsel %vm217, %v210, %v212
  %v221 = vsel %vm217, %v214, %v216
  %v230 = vsel %vm217, %v204, 0.0
  %v231 = vsel %vm217, %v208, 0.0
  %v232 = vsel %vm217, %v212, 0.0
  %v233 = vsel %vm217, %v216, 0.0
  %234 = vrot.lane.b32.xlu0 %v20, 80
  %v235 = vpop.permute.xlu0 %234
  %236 = vrot.lane.b32.xlu0 %v21, 80
  %v237 = vpop.permute.xlu0 %236
  %238 = vrot.lane.b32.xlu0 %v22, 80
  %v239 = vpop.permute.xlu0 %238
  %240 = vrot.lane.b32.xlu0 %v23, 80
  %v241 = vpop.permute.xlu0 %240
  %242 = vrot.lane.b32.xlu0 %v24, 80
  %v243 = vpop.permute.xlu0 %242
  %244 = vrot.lane.b32.xlu0 %v25, 80
  %v245 = vpop.permute.xlu0 %244
  %246 = vrot.lane.b32.xlu0 %v26, 80
  %v247 = vpop.permute.xlu0 %246
  %248 = vrot.lane.b32.xlu0 %v27, 80
  %v249 = vpop.permute.xlu0 %248
  %vm250 = vcmask 654336
  %v251 = vsel %vm250, %v235, %v237
  %v252 = vsel %vm250, %v239, %v241
  %v253 = vsel %vm250, %v243, %v245
  %v254 = vsel %vm250, %v247, %v249
  %v263 = vsel %vm250, %v237, 0.0
  %v264 = vsel %vm250, %v241, 0.0
  %v265 = vsel %vm250, %v245, 0.0
  %v266 = vsel %vm250, %v249, 0.0
  %v271 = vsel %vm52, %v39, 0.0
  %v272 = vsel %vm52, %v43, 0.0
  %v273 = vsel %vm52, %v47, 0.0
  %v274 = vsel %vm52, %v51, 0.0
  %v275 = vld [vmem:[%s1] sm:$0xff]
  %v276 = vld [vmem:[%s1 + $0x8] sm:$0xff]
  %v277 = vld [vmem:[%s1 + $0x10] sm:$0xff]
  %v278 = vld [vmem:[%s1 + $0x18] sm:$0xff]
  %v279 = vld [vmem:[%s1 + $0x20] sm:$0xff]
  %v280 = vld [vmem:[%s1 + $0x28] sm:$0xff]
  %v281 = vld [vmem:[%s1 + $0x30] sm:$0xff]
  %v282 = vld [vmem:[%s1 + $0x38] sm:$0xff]
  %v283 = vld [vmem:[%s2] sm:$0xff]
  %v284 = vld [vmem:[%s2 + $0x8] sm:$0xff]
  %v285 = vld [vmem:[%s2 + $0x10] sm:$0xff]
  %v286 = vld [vmem:[%s2 + $0x18] sm:$0xff]
  %288 = vset.pattern.permute.xlu0 0
  %289 = vperm.xlu0 %288, %v283
  %v290 = vpop.permute.xlu0 %289
  %293 = vset.pattern.permute.xlu0 0
  %294 = vperm.xlu0 %293, %v284
  %v295 = vpop.permute.xlu0 %294
  %298 = vset.pattern.permute.xlu0 0
  %299 = vperm.xlu0 %298, %v285
  %v300 = vpop.permute.xlu0 %299
  %303 = vset.pattern.permute.xlu0 0
  %304 = vperm.xlu0 %303, %v286
  %v305 = vpop.permute.xlu0 %304
  %v308 = vsel %vm151, %v276, 0
  %v311 = vsel %vm151, %v278, 0
  %v314 = vsel %vm151, %v280, 0
  %v317 = vsel %vm151, %v282, 0
  %v319 = vand.u32 %v252, 4294901760
  %320 = vmatpush.msra.mxu0 %v319
  %v321 = vand.u32 %v251, 4294901760
  %322 = vmatpush.msra.mxu0 %v321
  %v323 = vand.u32 %v219, 4294901760
  %324 = vmatpush.msra.mxu0 %v323
  %v325 = vand.u32 %v218, 4294901760
  %326 = vmatpush.msra.mxu0 %v325
  %v327 = vand.u32 %v186, 4294901760
  %328 = vmatpush.msra.mxu0 %v327
  %v329 = vand.u32 %v185, 4294901760
  %330 = vmatpush.msra.mxu0 %v329
  %v331 = vand.u32 %v22, 4294901760
  %332 = vmatpush.msra.mxu0 %v331
  %v333 = vand.u32 %v20, 4294901760
  %334 = vmatpush.msra.mxu0 %v333
  %v335 = vand.u32 %v165, 4294901760
  %336 = vmatpush.msra.mxu0 %v335
  %v337 = vand.u32 %v164, 4294901760
  %338 = vmatpush.msra.mxu0 %v337
  %v339 = vand.u32 %v132, 4294901760
  %340 = vmatpush.msra.mxu0 %v339
  %v341 = vand.u32 %v131, 4294901760
  %342 = vmatpush.msra.mxu0 %v341
  %v343 = vand.u32 %v99, 4294901760
  %344 = vmatpush.msra.mxu0 %v343
  %v345 = vand.u32 %v98, 4294901760
  %346 = vmatpush.msra.mxu0 %v345
  %v347 = vand.u32 %v66, 4294901760
  %348 = vmatpush.msra.mxu0 %v347
  %v349 = vand.u32 %v65, 4294901760
  %350 = vmatpush.msra.mxu0 %v349
  %v351 = vand.u32 %v275, 4294901760
  %v352 = vsub.f32 %v275, %v351
  %v353 = vand.u32 %v352, 4294901760
  %v354 = vsub.f32 %v352, %v353
  %v355 = vand.u32 %v354, 4294901760
  %356 = vmatmul.f32.gmra.mxu0 %v355
  %v357 = vpop.f32.mrf.mxu0
  %v358 = vadd.f32 %v290, %v357
  %v359 = vand.u32 %v277, 4294901760
  %v360 = vsub.f32 %v277, %v359
  %v361 = vand.u32 %v360, 4294901760
  %v362 = vsub.f32 %v360, %v361
  %v363 = vand.u32 %v362, 4294901760
  %364 = vmatmul.f32.gmra.mxu0 %v363
  %v365 = vpop.f32.mrf.mxu0
  %v366 = vadd.f32 %v295, %v365
  %v367 = vand.u32 %v279, 4294901760
  %v368 = vsub.f32 %v279, %v367
  %v369 = vand.u32 %v368, 4294901760
  %v370 = vsub.f32 %v368, %v369
  %v371 = vand.u32 %v370, 4294901760
  %372 = vmatmul.f32.gmra.mxu0 %v371
  %v373 = vpop.f32.mrf.mxu0
  %v374 = vadd.f32 %v300, %v373
  %v375 = vand.u32 %v281, 4294901760
  %v376 = vsub.f32 %v281, %v375
  %v377 = vand.u32 %v376, 4294901760
  %v378 = vsub.f32 %v376, %v377
  %v379 = vand.u32 %v378, 4294901760
  %380 = vmatmul.f32.gmra.mxu0 %v379
  %v381 = vpop.f32.mrf.mxu0
  %v382 = vadd.f32 %v305, %v381
  %383 = vdwg.mxu0
  %v384 = vand.u32 %v252, 4294901760
  %v385 = vsub.f32 %v252, %v384
  %v386 = vand.u32 %v385, 4294901760
  %v387 = vsub.f32 %v385, %v386
  %v388 = vand.u32 %v387, 4294901760
  %389 = vmatpush.msra.mxu0 %v388
  %v390 = vand.u32 %v251, 4294901760
  %v391 = vsub.f32 %v251, %v390
  %v392 = vand.u32 %v391, 4294901760
  %v393 = vsub.f32 %v391, %v392
  %v394 = vand.u32 %v393, 4294901760
  %395 = vmatpush.msra.mxu0 %v394
  %v396 = vand.u32 %v219, 4294901760
  %v397 = vsub.f32 %v219, %v396
  %v398 = vand.u32 %v397, 4294901760
  %v399 = vsub.f32 %v397, %v398
  %v400 = vand.u32 %v399, 4294901760
  %401 = vmatpush.msra.mxu0 %v400
  %v402 = vand.u32 %v218, 4294901760
  %v403 = vsub.f32 %v218, %v402
  %v404 = vand.u32 %v403, 4294901760
  %v405 = vsub.f32 %v403, %v404
  %v406 = vand.u32 %v405, 4294901760
  %407 = vmatpush.msra.mxu0 %v406
  %v408 = vand.u32 %v186, 4294901760
  %v409 = vsub.f32 %v186, %v408
  %v410 = vand.u32 %v409, 4294901760
  %v411 = vsub.f32 %v409, %v410
  %v412 = vand.u32 %v411, 4294901760
  %413 = vmatpush.msra.mxu0 %v412
  %v414 = vand.u32 %v185, 4294901760
  %v415 = vsub.f32 %v185, %v414
  %v416 = vand.u32 %v415, 4294901760
  %v417 = vsub.f32 %v415, %v416
  %v418 = vand.u32 %v417, 4294901760
  %419 = vmatpush.msra.mxu0 %v418
  %v420 = vand.u32 %v22, 4294901760
  %v421 = vsub.f32 %v22, %v420
  %v422 = vand.u32 %v421, 4294901760
  %v423 = vsub.f32 %v421, %v422
  %v424 = vand.u32 %v423, 4294901760
  %425 = vmatpush.msra.mxu0 %v424
  %v426 = vand.u32 %v20, 4294901760
  %v427 = vsub.f32 %v20, %v426
  %v428 = vand.u32 %v427, 4294901760
  %v429 = vsub.f32 %v427, %v428
  %v430 = vand.u32 %v429, 4294901760
  %431 = vmatpush.msra.mxu0 %v430
  %v432 = vand.u32 %v165, 4294901760
  %v433 = vsub.f32 %v165, %v432
  %v434 = vand.u32 %v433, 4294901760
  %v435 = vsub.f32 %v433, %v434
  %v436 = vand.u32 %v435, 4294901760
  %437 = vmatpush.msra.mxu0 %v436
  %v438 = vand.u32 %v164, 4294901760
  %v439 = vsub.f32 %v164, %v438
  %v440 = vand.u32 %v439, 4294901760
  %v441 = vsub.f32 %v439, %v440
  %v442 = vand.u32 %v441, 4294901760
  %443 = vmatpush.msra.mxu0 %v442
  %v444 = vand.u32 %v132, 4294901760
  %v445 = vsub.f32 %v132, %v444
  %v446 = vand.u32 %v445, 4294901760
  %v447 = vsub.f32 %v445, %v446
  %v448 = vand.u32 %v447, 4294901760
  %449 = vmatpush.msra.mxu0 %v448
  %v450 = vand.u32 %v131, 4294901760
  %v451 = vsub.f32 %v131, %v450
  %v452 = vand.u32 %v451, 4294901760
  %v453 = vsub.f32 %v451, %v452
  %v454 = vand.u32 %v453, 4294901760
  %455 = vmatpush.msra.mxu0 %v454
  %v456 = vand.u32 %v99, 4294901760
  %v457 = vsub.f32 %v99, %v456
  %v458 = vand.u32 %v457, 4294901760
  %v459 = vsub.f32 %v457, %v458
  %v460 = vand.u32 %v459, 4294901760
  %461 = vmatpush.msra.mxu0 %v460
  %v462 = vand.u32 %v98, 4294901760
  %v463 = vsub.f32 %v98, %v462
  %v464 = vand.u32 %v463, 4294901760
  %v465 = vsub.f32 %v463, %v464
  %v466 = vand.u32 %v465, 4294901760
  %467 = vmatpush.msra.mxu0 %v466
  %v468 = vand.u32 %v66, 4294901760
  %v469 = vsub.f32 %v66, %v468
  %v470 = vand.u32 %v469, 4294901760
  %v471 = vsub.f32 %v469, %v470
  %v472 = vand.u32 %v471, 4294901760
  %473 = vmatpush.msra.mxu0 %v472
  %v474 = vand.u32 %v65, 4294901760
  %v475 = vsub.f32 %v65, %v474
  %v476 = vand.u32 %v475, 4294901760
  %v477 = vsub.f32 %v475, %v476
  %v478 = vand.u32 %v477, 4294901760
  %479 = vmatpush.msra.mxu0 %v478
  %v480 = vand.u32 %v275, 4294901760
  %481 = vmatmul.f32.gmra.mxu0 %v480
  %v482 = vpop.f32.mrf.mxu0
  %v483 = vadd.f32 %v358, %v482
  %v484 = vand.u32 %v277, 4294901760
  %485 = vmatmul.f32.gmra.mxu0 %v484
  %v486 = vpop.f32.mrf.mxu0
  %v487 = vadd.f32 %v366, %v486
  %v488 = vand.u32 %v279, 4294901760
  %489 = vmatmul.f32.gmra.mxu0 %v488
  %v490 = vpop.f32.mrf.mxu0
  %v491 = vadd.f32 %v374, %v490
  %v492 = vand.u32 %v281, 4294901760
  %493 = vmatmul.f32.gmra.mxu0 %v492
  %v494 = vpop.f32.mrf.mxu0
  %v495 = vadd.f32 %v382, %v494
  %496 = vdwg.mxu0
  %v497 = vand.u32 %v252, 4294901760
  %v498 = vsub.f32 %v252, %v497
  %499 = vmatpush.msra.mxu0 %v498
  %v500 = vand.u32 %v251, 4294901760
  %v501 = vsub.f32 %v251, %v500
  %502 = vmatpush.msra.mxu0 %v501
  %v503 = vand.u32 %v219, 4294901760
  %v504 = vsub.f32 %v219, %v503
  %505 = vmatpush.msra.mxu0 %v504
  %v506 = vand.u32 %v218, 4294901760
  %v507 = vsub.f32 %v218, %v506
  %508 = vmatpush.msra.mxu0 %v507
  %v509 = vand.u32 %v186, 4294901760
  %v510 = vsub.f32 %v186, %v509
  %511 = vmatpush.msra.mxu0 %v510
  %v512 = vand.u32 %v185, 4294901760
  %v513 = vsub.f32 %v185, %v512
  %514 = vmatpush.msra.mxu0 %v513
  %v515 = vand.u32 %v22, 4294901760
  %v516 = vsub.f32 %v22, %v515
  %517 = vmatpush.msra.mxu0 %v516
  %v518 = vand.u32 %v20, 4294901760
  %v519 = vsub.f32 %v20, %v518
  %520 = vmatpush.msra.mxu0 %v519
  %v521 = vand.u32 %v165, 4294901760
  %v522 = vsub.f32 %v165, %v521
  %523 = vmatpush.msra.mxu0 %v522
  %v524 = vand.u32 %v164, 4294901760
  %v525 = vsub.f32 %v164, %v524
  %526 = vmatpush.msra.mxu0 %v525
  %v527 = vand.u32 %v132, 4294901760
  %v528 = vsub.f32 %v132, %v527
  %529 = vmatpush.msra.mxu0 %v528
  %v530 = vand.u32 %v131, 4294901760
  %v531 = vsub.f32 %v131, %v530
  %532 = vmatpush.msra.mxu0 %v531
  %v533 = vand.u32 %v99, 4294901760
  %v534 = vsub.f32 %v99, %v533
  %535 = vmatpush.msra.mxu0 %v534
  %v536 = vand.u32 %v98, 4294901760
  %v537 = vsub.f32 %v98, %v536
  %538 = vmatpush.msra.mxu0 %v537
  %v539 = vand.u32 %v66, 4294901760
  %v540 = vsub.f32 %v66, %v539
  %541 = vmatpush.msra.mxu0 %v540
  %v542 = vand.u32 %v65, 4294901760
  %v543 = vsub.f32 %v65, %v542
  %544 = vmatpush.msra.mxu0 %v543
  %v545 = vand.u32 %v275, 4294901760
  %v546 = vsub.f32 %v275, %v545
  %547 = vmatmul.f32.gmra.mxu0 %v546
  %v548 = vpop.f32.mrf.mxu0
  %v549 = vadd.f32 %v483, %v548
  %v550 = vand.u32 %v277, 4294901760
  %v551 = vsub.f32 %v277, %v550
  %552 = vmatmul.f32.gmra.mxu0 %v551
  %v553 = vpop.f32.mrf.mxu0
  %v554 = vadd.f32 %v487, %v553
  %v555 = vand.u32 %v279, 4294901760
  %v556 = vsub.f32 %v279, %v555
  %557 = vmatmul.f32.gmra.mxu0 %v556
  %v558 = vpop.f32.mrf.mxu0
  %v559 = vadd.f32 %v491, %v558
  %v560 = vand.u32 %v281, 4294901760
  %v561 = vsub.f32 %v281, %v560
  %562 = vmatmul.f32.gmra.mxu0 %v561
  %v563 = vpop.f32.mrf.mxu0
  %v564 = vadd.f32 %v495, %v563
  %565 = vdwg.mxu0
  %v566 = vand.u32 %v252, 4294901760
  %567 = vmatpush.msra.mxu0 %v566
  %v568 = vand.u32 %v251, 4294901760
  %569 = vmatpush.msra.mxu0 %v568
  %v570 = vand.u32 %v219, 4294901760
  %571 = vmatpush.msra.mxu0 %v570
  %v572 = vand.u32 %v218, 4294901760
  %573 = vmatpush.msra.mxu0 %v572
  %v574 = vand.u32 %v186, 4294901760
  %575 = vmatpush.msra.mxu0 %v574
  %v576 = vand.u32 %v185, 4294901760
  %577 = vmatpush.msra.mxu0 %v576
  %v578 = vand.u32 %v22, 4294901760
  %579 = vmatpush.msra.mxu0 %v578
  %v580 = vand.u32 %v20, 4294901760
  %581 = vmatpush.msra.mxu0 %v580
  %v582 = vand.u32 %v165, 4294901760
  %583 = vmatpush.msra.mxu0 %v582
  %v584 = vand.u32 %v164, 4294901760
  %585 = vmatpush.msra.mxu0 %v584
  %v586 = vand.u32 %v132, 4294901760
  %587 = vmatpush.msra.mxu0 %v586
  %v588 = vand.u32 %v131, 4294901760
  %589 = vmatpush.msra.mxu0 %v588
  %v590 = vand.u32 %v99, 4294901760
  %591 = vmatpush.msra.mxu0 %v590
  %v592 = vand.u32 %v98, 4294901760
  %593 = vmatpush.msra.mxu0 %v592
  %v594 = vand.u32 %v66, 4294901760
  %595 = vmatpush.msra.mxu0 %v594
  %v596 = vand.u32 %v65, 4294901760
  %597 = vmatpush.msra.mxu0 %v596
  %v598 = vand.u32 %v275, 4294901760
  %v599 = vsub.f32 %v275, %v598
  %v600 = vand.u32 %v599, 4294901760
  %601 = vmatmul.f32.gmra.mxu0 %v600
  %v602 = vpop.f32.mrf.mxu0
  %v603 = vadd.f32 %v549, %v602
  %v604 = vand.u32 %v277, 4294901760
  %v605 = vsub.f32 %v277, %v604
  %v606 = vand.u32 %v605, 4294901760
  %607 = vmatmul.f32.gmra.mxu0 %v606
  %v608 = vpop.f32.mrf.mxu0
  %v609 = vadd.f32 %v554, %v608
  %v610 = vand.u32 %v279, 4294901760
  %v611 = vsub.f32 %v279, %v610
  %v612 = vand.u32 %v611, 4294901760
  %613 = vmatmul.f32.gmra.mxu0 %v612
  %v614 = vpop.f32.mrf.mxu0
  %v615 = vadd.f32 %v559, %v614
  %v616 = vand.u32 %v281, 4294901760
  %v617 = vsub.f32 %v281, %v616
  %v618 = vand.u32 %v617, 4294901760
  %619 = vmatmul.f32.gmra.mxu0 %v618
  %v620 = vpop.f32.mrf.mxu0
  %v621 = vadd.f32 %v564, %v620
  %622 = vdwg.mxu0
  %v623 = vand.u32 %v252, 4294901760
  %v624 = vsub.f32 %v252, %v623
  %v625 = vand.u32 %v624, 4294901760
  %626 = vmatpush.msra.mxu0 %v625
  %v627 = vand.u32 %v251, 4294901760
  %v628 = vsub.f32 %v251, %v627
  %v629 = vand.u32 %v628, 4294901760
  %630 = vmatpush.msra.mxu0 %v629
  %v631 = vand.u32 %v219, 4294901760
  %v632 = vsub.f32 %v219, %v631
  %v633 = vand.u32 %v632, 4294901760
  %634 = vmatpush.msra.mxu0 %v633
  %v635 = vand.u32 %v218, 4294901760
  %v636 = vsub.f32 %v218, %v635
  %v637 = vand.u32 %v636, 4294901760
  %638 = vmatpush.msra.mxu0 %v637
  %v639 = vand.u32 %v186, 4294901760
  %v640 = vsub.f32 %v186, %v639
  %v641 = vand.u32 %v640, 4294901760
  %642 = vmatpush.msra.mxu0 %v641
  %v643 = vand.u32 %v185, 4294901760
  %v644 = vsub.f32 %v185, %v643
  %v645 = vand.u32 %v644, 4294901760
  %646 = vmatpush.msra.mxu0 %v645
  %v647 = vand.u32 %v22, 4294901760
  %v648 = vsub.f32 %v22, %v647
  %v649 = vand.u32 %v648, 4294901760
  %650 = vmatpush.msra.mxu0 %v649
  %v651 = vand.u32 %v20, 4294901760
  %v652 = vsub.f32 %v20, %v651
  %v653 = vand.u32 %v652, 4294901760
  %654 = vmatpush.msra.mxu0 %v653
  %v655 = vand.u32 %v165, 4294901760
  %v656 = vsub.f32 %v165, %v655
  %v657 = vand.u32 %v656, 4294901760
  %658 = vmatpush.msra.mxu0 %v657
  %v659 = vand.u32 %v164, 4294901760
  %v660 = vsub.f32 %v164, %v659
  %v661 = vand.u32 %v660, 4294901760
  %662 = vmatpush.msra.mxu0 %v661
  %v663 = vand.u32 %v132, 4294901760
  %v664 = vsub.f32 %v132, %v663
  %v665 = vand.u32 %v664, 4294901760
  %666 = vmatpush.msra.mxu0 %v665
  %v667 = vand.u32 %v131, 4294901760
  %v668 = vsub.f32 %v131, %v667
  %v669 = vand.u32 %v668, 4294901760
  %670 = vmatpush.msra.mxu0 %v669
  %v671 = vand.u32 %v99, 4294901760
  %v672 = vsub.f32 %v99, %v671
  %v673 = vand.u32 %v672, 4294901760
  %674 = vmatpush.msra.mxu0 %v673
  %v675 = vand.u32 %v98, 4294901760
  %v676 = vsub.f32 %v98, %v675
  %v677 = vand.u32 %v676, 4294901760
  %678 = vmatpush.msra.mxu0 %v677
  %v679 = vand.u32 %v66, 4294901760
  %v680 = vsub.f32 %v66, %v679
  %v681 = vand.u32 %v680, 4294901760
  %682 = vmatpush.msra.mxu0 %v681
  %v683 = vand.u32 %v65, 4294901760
  %v684 = vsub.f32 %v65, %v683
  %v685 = vand.u32 %v684, 4294901760
  %686 = vmatpush.msra.mxu0 %v685
  %v687 = vand.u32 %v275, 4294901760
  %688 = vmatmul.f32.gmra.mxu0 %v687
  %v689 = vpop.f32.mrf.mxu0
  %v690 = vadd.f32 %v603, %v689
  %v691 = vand.u32 %v277, 4294901760
  %692 = vmatmul.f32.gmra.mxu0 %v691
  %v693 = vpop.f32.mrf.mxu0
  %v694 = vadd.f32 %v609, %v693
  %v695 = vand.u32 %v279, 4294901760
  %696 = vmatmul.f32.gmra.mxu0 %v695
  %v697 = vpop.f32.mrf.mxu0
  %v698 = vadd.f32 %v615, %v697
  %v699 = vand.u32 %v281, 4294901760
  %700 = vmatmul.f32.gmra.mxu0 %v699
  %v701 = vpop.f32.mrf.mxu0
  %v702 = vadd.f32 %v621, %v701
  %703 = vdwg.mxu0
  %v704 = vand.u32 %v252, 4294901760
  %705 = vmatpush.msra.mxu0 %v704
  %v706 = vand.u32 %v251, 4294901760
  %707 = vmatpush.msra.mxu0 %v706
  %v708 = vand.u32 %v219, 4294901760
  %709 = vmatpush.msra.mxu0 %v708
  %v710 = vand.u32 %v218, 4294901760
  %711 = vmatpush.msra.mxu0 %v710
  %v712 = vand.u32 %v186, 4294901760
  %713 = vmatpush.msra.mxu0 %v712
  %v714 = vand.u32 %v185, 4294901760
  %715 = vmatpush.msra.mxu0 %v714
  %v716 = vand.u32 %v22, 4294901760
  %717 = vmatpush.msra.mxu0 %v716
  %v718 = vand.u32 %v20, 4294901760
  %719 = vmatpush.msra.mxu0 %v718
  %v720 = vand.u32 %v165, 4294901760
  %721 = vmatpush.msra.mxu0 %v720
  %v722 = vand.u32 %v164, 4294901760
  %723 = vmatpush.msra.mxu0 %v722
  %v724 = vand.u32 %v132, 4294901760
  %725 = vmatpush.msra.mxu0 %v724
  %v726 = vand.u32 %v131, 4294901760
  %727 = vmatpush.msra.mxu0 %v726
  %v728 = vand.u32 %v99, 4294901760
  %729 = vmatpush.msra.mxu0 %v728
  %v730 = vand.u32 %v98, 4294901760
  %731 = vmatpush.msra.mxu0 %v730
  %v732 = vand.u32 %v66, 4294901760
  %733 = vmatpush.msra.mxu0 %v732
  %v734 = vand.u32 %v65, 4294901760
  %735 = vmatpush.msra.mxu0 %v734
  %v736 = vand.u32 %v275, 4294901760
  %737 = vmatmul.f32.gmra.mxu0 %v736
  %v738 = vpop.f32.mrf.mxu0
  %v739 = vadd.f32 %v690, %v738
  %v740 = vand.u32 %v277, 4294901760
  %741 = vmatmul.f32.gmra.mxu0 %v740
  %v742 = vpop.f32.mrf.mxu0
  %v743 = vadd.f32 %v694, %v742
  %v744 = vand.u32 %v279, 4294901760
  %745 = vmatmul.f32.gmra.mxu0 %v744
  %v746 = vpop.f32.mrf.mxu0
  %v747 = vadd.f32 %v698, %v746
  %v748 = vand.u32 %v281, 4294901760
  %749 = vmatmul.f32.gmra.mxu0 %v748
  %v750 = vpop.f32.mrf.mxu0
  %v751 = vadd.f32 %v702, %v750
  %752 = vdwg.mxu0
  %753 = vmatpush.msra.mxu0 0.0
  %754 = vmatpush.msra.mxu0 0.0
  %755 = vmatpush.msra.mxu0 0.0
  %756 = vmatpush.msra.mxu0 0.0
  %757 = vmatpush.msra.mxu0 0.0
  %758 = vmatpush.msra.mxu0 0.0
  %759 = vmatpush.msra.mxu0 0.0
  %760 = vmatpush.msra.mxu0 0.0
  %761 = vmatpush.msra.mxu0 0.0
  %762 = vmatpush.msra.mxu0 0.0
  %763 = vmatpush.msra.mxu0 0.0
  %764 = vmatpush.msra.mxu0 0.0
  %765 = vmatpush.msra.mxu0 0.0
  %766 = vmatpush.msra.mxu0 0.0
  %v767 = vand.u32 %v54, 4294901760
  %768 = vmatpush.msra.mxu0 %v767
  %v769 = vand.u32 %v53, 4294901760
  %770 = vmatpush.msra.mxu0 %v769
  %v771 = vand.u32 %v308, 4294901760
  %v772 = vsub.f32 %v308, %v771
  %v773 = vand.u32 %v772, 4294901760
  %v774 = vsub.f32 %v772, %v773
  %v775 = vand.u32 %v774, 4294901760
  %776 = vmatmul.f32.gmra.mxu0 %v775
  %v777 = vpop.f32.mrf.mxu0
  %v778 = vadd.f32 %v739, %v777
  %v779 = vand.u32 %v311, 4294901760
  %v780 = vsub.f32 %v311, %v779
  %v781 = vand.u32 %v780, 4294901760
  %v782 = vsub.f32 %v780, %v781
  %v783 = vand.u32 %v782, 4294901760
  %784 = vmatmul.f32.gmra.mxu0 %v783
  %v785 = vpop.f32.mrf.mxu0
  %v786 = vadd.f32 %v743, %v785
  %v787 = vand.u32 %v314, 4294901760
  %v788 = vsub.f32 %v314, %v787
  %v789 = vand.u32 %v788, 4294901760
  %v790 = vsub.f32 %v788, %v789
  %v791 = vand.u32 %v790, 4294901760
  %792 = vmatmul.f32.gmra.mxu0 %v791
  %v793 = vpop.f32.mrf.mxu0
  %v794 = vadd.f32 %v747, %v793
  %v795 = vand.u32 %v317, 4294901760
  %v796 = vsub.f32 %v317, %v795
  %v797 = vand.u32 %v796, 4294901760
  %v798 = vsub.f32 %v796, %v797
  %v799 = vand.u32 %v798, 4294901760
  %800 = vmatmul.f32.gmra.mxu0 %v799
  %v801 = vpop.f32.mrf.mxu0
  %v802 = vadd.f32 %v751, %v801
  %803 = vdwg.mxu0
  %804 = vmatpush.msra.mxu0 0.0
  %805 = vmatpush.msra.mxu0 0.0
  %806 = vmatpush.msra.mxu0 0.0
  %807 = vmatpush.msra.mxu0 0.0
  %808 = vmatpush.msra.mxu0 0.0
  %809 = vmatpush.msra.mxu0 0.0
  %810 = vmatpush.msra.mxu0 0.0
  %811 = vmatpush.msra.mxu0 0.0
  %812 = vmatpush.msra.mxu0 0.0
  %813 = vmatpush.msra.mxu0 0.0
  %814 = vmatpush.msra.mxu0 0.0
  %815 = vmatpush.msra.mxu0 0.0
  %816 = vmatpush.msra.mxu0 0.0
  %817 = vmatpush.msra.mxu0 0.0
  %v818 = vand.u32 %v54, 4294901760
  %v819 = vsub.f32 %v54, %v818
  %v820 = vand.u32 %v819, 4294901760
  %v821 = vsub.f32 %v819, %v820
  %v822 = vand.u32 %v821, 4294901760
  %823 = vmatpush.msra.mxu0 %v822
  %v824 = vand.u32 %v53, 4294901760
  %v825 = vsub.f32 %v53, %v824
  %v826 = vand.u32 %v825, 4294901760
  %v827 = vsub.f32 %v825, %v826
  %v828 = vand.u32 %v827, 4294901760
  %829 = vmatpush.msra.mxu0 %v828
  %v830 = vand.u32 %v308, 4294901760
  %831 = vmatmul.f32.gmra.mxu0 %v830
  %v832 = vpop.f32.mrf.mxu0
  %v833 = vadd.f32 %v778, %v832
  %v834 = vand.u32 %v311, 4294901760
  %835 = vmatmul.f32.gmra.mxu0 %v834
  %v836 = vpop.f32.mrf.mxu0
  %v837 = vadd.f32 %v786, %v836
  %v838 = vand.u32 %v314, 4294901760
  %839 = vmatmul.f32.gmra.mxu0 %v838
  %v840 = vpop.f32.mrf.mxu0
  %v841 = vadd.f32 %v794, %v840
  %v842 = vand.u32 %v317, 4294901760
  %843 = vmatmul.f32.gmra.mxu0 %v842
  %v844 = vpop.f32.mrf.mxu0
  %v845 = vadd.f32 %v802, %v844
  %846 = vdwg.mxu0
  %847 = vmatpush.msra.mxu0 0.0
  %848 = vmatpush.msra.mxu0 0.0
  %849 = vmatpush.msra.mxu0 0.0
  %850 = vmatpush.msra.mxu0 0.0
  %851 = vmatpush.msra.mxu0 0.0
  %852 = vmatpush.msra.mxu0 0.0
  %853 = vmatpush.msra.mxu0 0.0
  %854 = vmatpush.msra.mxu0 0.0
  %855 = vmatpush.msra.mxu0 0.0
  %856 = vmatpush.msra.mxu0 0.0
  %857 = vmatpush.msra.mxu0 0.0
  %858 = vmatpush.msra.mxu0 0.0
  %859 = vmatpush.msra.mxu0 0.0
  %860 = vmatpush.msra.mxu0 0.0
  %v861 = vand.u32 %v54, 4294901760
  %v862 = vsub.f32 %v54, %v861
  %863 = vmatpush.msra.mxu0 %v862
  %v864 = vand.u32 %v53, 4294901760
  %v865 = vsub.f32 %v53, %v864
  %866 = vmatpush.msra.mxu0 %v865
  %v867 = vand.u32 %v308, 4294901760
  %v868 = vsub.f32 %v308, %v867
  %869 = vmatmul.f32.gmra.mxu0 %v868
  %v870 = vpop.f32.mrf.mxu0
  %v871 = vadd.f32 %v833, %v870
  %v872 = vand.u32 %v311, 4294901760
  %v873 = vsub.f32 %v311, %v872
  %874 = vmatmul.f32.gmra.mxu0 %v873
  %v875 = vpop.f32.mrf.mxu0
  %v876 = vadd.f32 %v837, %v875
  %v877 = vand.u32 %v314, 4294901760
  %v878 = vsub.f32 %v314, %v877
  %879 = vmatmul.f32.gmra.mxu0 %v878
  %v880 = vpop.f32.mrf.mxu0
  %v881 = vadd.f32 %v841, %v880
  %v882 = vand.u32 %v317, 4294901760
  %v883 = vsub.f32 %v317, %v882
  %884 = vmatmul.f32.gmra.mxu0 %v883
  %v885 = vpop.f32.mrf.mxu0
  %v886 = vadd.f32 %v845, %v885
  %887 = vdwg.mxu0
  %888 = vmatpush.msra.mxu0 0.0
  %889 = vmatpush.msra.mxu0 0.0
  %890 = vmatpush.msra.mxu0 0.0
  %891 = vmatpush.msra.mxu0 0.0
  %892 = vmatpush.msra.mxu0 0.0
  %893 = vmatpush.msra.mxu0 0.0
  %894 = vmatpush.msra.mxu0 0.0
  %895 = vmatpush.msra.mxu0 0.0
  %896 = vmatpush.msra.mxu0 0.0
  %897 = vmatpush.msra.mxu0 0.0
  %898 = vmatpush.msra.mxu0 0.0
  %899 = vmatpush.msra.mxu0 0.0
  %900 = vmatpush.msra.mxu0 0.0
  %901 = vmatpush.msra.mxu0 0.0
  %v902 = vand.u32 %v54, 4294901760
  %903 = vmatpush.msra.mxu0 %v902
  %v904 = vand.u32 %v53, 4294901760
  %905 = vmatpush.msra.mxu0 %v904
  %v906 = vand.u32 %v308, 4294901760
  %v907 = vsub.f32 %v308, %v906
  %v908 = vand.u32 %v907, 4294901760
  %909 = vmatmul.f32.gmra.mxu0 %v908
  %v910 = vpop.f32.mrf.mxu0
  %v911 = vadd.f32 %v871, %v910
  %v912 = vand.u32 %v311, 4294901760
  %v913 = vsub.f32 %v311, %v912
  %v914 = vand.u32 %v913, 4294901760
  %915 = vmatmul.f32.gmra.mxu0 %v914
  %v916 = vpop.f32.mrf.mxu0
  %v917 = vadd.f32 %v876, %v916
  %v918 = vand.u32 %v314, 4294901760
  %v919 = vsub.f32 %v314, %v918
  %v920 = vand.u32 %v919, 4294901760
  %921 = vmatmul.f32.gmra.mxu0 %v920
  %v922 = vpop.f32.mrf.mxu0
  %v923 = vadd.f32 %v881, %v922
  %v924 = vand.u32 %v317, 4294901760
  %v925 = vsub.f32 %v317, %v924
  %v926 = vand.u32 %v925, 4294901760
  %927 = vmatmul.f32.gmra.mxu0 %v926
  %v928 = vpop.f32.mrf.mxu0
  %v929 = vadd.f32 %v886, %v928
  %930 = vdwg.mxu0
  %931 = vmatpush.msra.mxu0 0.0
  %932 = vmatpush.msra.mxu0 0.0
  %933 = vmatpush.msra.mxu0 0.0
  %934 = vmatpush.msra.mxu0 0.0
  %935 = vmatpush.msra.mxu0 0.0
  %936 = vmatpush.msra.mxu0 0.0
  %937 = vmatpush.msra.mxu0 0.0
  %938 = vmatpush.msra.mxu0 0.0
  %939 = vmatpush.msra.mxu0 0.0
  %940 = vmatpush.msra.mxu0 0.0
  %941 = vmatpush.msra.mxu0 0.0
  %942 = vmatpush.msra.mxu0 0.0
  %943 = vmatpush.msra.mxu0 0.0
  %944 = vmatpush.msra.mxu0 0.0
  %v945 = vand.u32 %v54, 4294901760
  %v946 = vsub.f32 %v54, %v945
  %v947 = vand.u32 %v946, 4294901760
  %948 = vmatpush.msra.mxu0 %v947
  %v949 = vand.u32 %v53, 4294901760
  %v950 = vsub.f32 %v53, %v949
  %v951 = vand.u32 %v950, 4294901760
  %952 = vmatpush.msra.mxu0 %v951
  %v953 = vand.u32 %v308, 4294901760
  %954 = vmatmul.f32.gmra.mxu0 %v953
  %v955 = vpop.f32.mrf.mxu0
  %v956 = vadd.f32 %v911, %v955
  %v957 = vand.u32 %v311, 4294901760
  %958 = vmatmul.f32.gmra.mxu0 %v957
  %v959 = vpop.f32.mrf.mxu0
  %v960 = vadd.f32 %v917, %v959
  %v961 = vand.u32 %v314, 4294901760
  %962 = vmatmul.f32.gmra.mxu0 %v961
  %v963 = vpop.f32.mrf.mxu0
  %v964 = vadd.f32 %v923, %v963
  %v965 = vand.u32 %v317, 4294901760
  %966 = vmatmul.f32.gmra.mxu0 %v965
  %v967 = vpop.f32.mrf.mxu0
  %v968 = vadd.f32 %v929, %v967
  %969 = vdwg.mxu0
  %970 = vmatpush.msra.mxu0 0.0
  %971 = vmatpush.msra.mxu0 0.0
  %972 = vmatpush.msra.mxu0 0.0
  %973 = vmatpush.msra.mxu0 0.0
  %974 = vmatpush.msra.mxu0 0.0
  %975 = vmatpush.msra.mxu0 0.0
  %976 = vmatpush.msra.mxu0 0.0
  %977 = vmatpush.msra.mxu0 0.0
  %978 = vmatpush.msra.mxu0 0.0
  %979 = vmatpush.msra.mxu0 0.0
  %980 = vmatpush.msra.mxu0 0.0
  %981 = vmatpush.msra.mxu0 0.0
  %982 = vmatpush.msra.mxu0 0.0
  %983 = vmatpush.msra.mxu0 0.0
  %v984 = vand.u32 %v54, 4294901760
  %985 = vmatpush.msra.mxu0 %v984
  %v986 = vand.u32 %v53, 4294901760
  %987 = vmatpush.msra.mxu0 %v986
  %v988 = vand.u32 %v308, 4294901760
  %989 = vmatmul.f32.gmra.mxu0 %v988
  %v990 = vpop.f32.mrf.mxu0
  %v991 = vadd.f32 %v956, %v990
  %v992 = vand.u32 %v311, 4294901760
  %993 = vmatmul.f32.gmra.mxu0 %v992
  %v994 = vpop.f32.mrf.mxu0
  %v995 = vadd.f32 %v960, %v994
  %v996 = vand.u32 %v314, 4294901760
  %997 = vmatmul.f32.gmra.mxu0 %v996
  %v998 = vpop.f32.mrf.mxu0
  %v999 = vadd.f32 %v964, %v998
  %v1000 = vand.u32 %v317, 4294901760
  %1001 = vmatmul.f32.gmra.mxu0 %v1000
  %v1002 = vpop.f32.mrf.mxu0
  %v1003 = vadd.f32 %v968, %v1002
  %1004 = vdwg.mxu0
  %v1005 = vand.u32 %v264, 4294901760
  %1006 = vmatpush.msra.mxu0 %v1005
  %v1007 = vand.u32 %v263, 4294901760
  %1008 = vmatpush.msra.mxu0 %v1007
  %v1009 = vand.u32 %v231, 4294901760
  %1010 = vmatpush.msra.mxu0 %v1009
  %v1011 = vand.u32 %v230, 4294901760
  %1012 = vmatpush.msra.mxu0 %v1011
  %v1013 = vand.u32 %v198, 4294901760
  %1014 = vmatpush.msra.mxu0 %v1013
  %v1015 = vand.u32 %v197, 4294901760
  %1016 = vmatpush.msra.mxu0 %v1015
  %v1017 = vand.u32 %v23, 4294901760
  %1018 = vmatpush.msra.mxu0 %v1017
  %v1019 = vand.u32 %v21, 4294901760
  %1020 = vmatpush.msra.mxu0 %v1019
  %v1021 = vand.u32 %v153, 4294901760
  %1022 = vmatpush.msra.mxu0 %v1021
  %v1023 = vand.u32 %v152, 4294901760
  %1024 = vmatpush.msra.mxu0 %v1023
  %v1025 = vand.u32 %v120, 4294901760
  %1026 = vmatpush.msra.mxu0 %v1025
  %v1027 = vand.u32 %v119, 4294901760
  %1028 = vmatpush.msra.mxu0 %v1027
  %v1029 = vand.u32 %v87, 4294901760
  %1030 = vmatpush.msra.mxu0 %v1029
  %v1031 = vand.u32 %v86, 4294901760
  %1032 = vmatpush.msra.mxu0 %v1031
  %v1033 = vand.u32 %v54, 4294901760
  %1034 = vmatpush.msra.mxu0 %v1033
  %v1035 = vand.u32 %v53, 4294901760
  %1036 = vmatpush.msra.mxu0 %v1035
  %v1037 = vand.u32 %v275, 4294901760
  %v1038 = vsub.f32 %v275, %v1037
  %v1039 = vand.u32 %v1038, 4294901760
  %v1040 = vsub.f32 %v1038, %v1039
  %v1041 = vand.u32 %v1040, 4294901760
  %1042 = vmatmul.f32.gmra.mxu0 %v1041
  %v1043 = vpop.f32.mrf.mxu0
  %v1044 = vadd.f32 %v290, %v1043
  %v1045 = vand.u32 %v277, 4294901760
  %v1046 = vsub.f32 %v277, %v1045
  %v1047 = vand.u32 %v1046, 4294901760
  %v1048 = vsub.f32 %v1046, %v1047
  %v1049 = vand.u32 %v1048, 4294901760
  %1050 = vmatmul.f32.gmra.mxu0 %v1049
  %v1051 = vpop.f32.mrf.mxu0
  %v1052 = vadd.f32 %v295, %v1051
  %v1053 = vand.u32 %v279, 4294901760
  %v1054 = vsub.f32 %v279, %v1053
  %v1055 = vand.u32 %v1054, 4294901760
  %v1056 = vsub.f32 %v1054, %v1055
  %v1057 = vand.u32 %v1056, 4294901760
  %1058 = vmatmul.f32.gmra.mxu0 %v1057
  %v1059 = vpop.f32.mrf.mxu0
  %v1060 = vadd.f32 %v300, %v1059
  %v1061 = vand.u32 %v281, 4294901760
  %v1062 = vsub.f32 %v281, %v1061
  %v1063 = vand.u32 %v1062, 4294901760
  %v1064 = vsub.f32 %v1062, %v1063
  %v1065 = vand.u32 %v1064, 4294901760
  %1066 = vmatmul.f32.gmra.mxu0 %v1065
  %v1067 = vpop.f32.mrf.mxu0
  %v1068 = vadd.f32 %v305, %v1067
  %1069 = vdwg.mxu0
  %v1070 = vand.u32 %v264, 4294901760
  %v1071 = vsub.f32 %v264, %v1070
  %v1072 = vand.u32 %v1071, 4294901760
  %v1073 = vsub.f32 %v1071, %v1072
  %v1074 = vand.u32 %v1073, 4294901760
  %1075 = vmatpush.msra.mxu0 %v1074
  %v1076 = vand.u32 %v263, 4294901760
  %v1077 = vsub.f32 %v263, %v1076
  %v1078 = vand.u32 %v1077, 4294901760
  %v1079 = vsub.f32 %v1077, %v1078
  %v1080 = vand.u32 %v1079, 4294901760
  %1081 = vmatpush.msra.mxu0 %v1080
  %v1082 = vand.u32 %v231, 4294901760
  %v1083 = vsub.f32 %v231, %v1082
  %v1084 = vand.u32 %v1083, 4294901760
  %v1085 = vsub.f32 %v1083, %v1084
  %v1086 = vand.u32 %v1085, 4294901760
  %1087 = vmatpush.msra.mxu0 %v1086
  %v1088 = vand.u32 %v230, 4294901760
  %v1089 = vsub.f32 %v230, %v1088
  %v1090 = vand.u32 %v1089, 4294901760
  %v1091 = vsub.f32 %v1089, %v1090
  %v1092 = vand.u32 %v1091, 4294901760
  %1093 = vmatpush.msra.mxu0 %v1092
  %v1094 = vand.u32 %v198, 4294901760
  %v1095 = vsub.f32 %v198, %v1094
  %v1096 = vand.u32 %v1095, 4294901760
  %v1097 = vsub.f32 %v1095, %v1096
  %v1098 = vand.u32 %v1097, 4294901760
  %1099 = vmatpush.msra.mxu0 %v1098
  %v1100 = vand.u32 %v197, 4294901760
  %v1101 = vsub.f32 %v197, %v1100
  %v1102 = vand.u32 %v1101, 4294901760
  %v1103 = vsub.f32 %v1101, %v1102
  %v1104 = vand.u32 %v1103, 4294901760
  %1105 = vmatpush.msra.mxu0 %v1104
  %v1106 = vand.u32 %v23, 4294901760
  %v1107 = vsub.f32 %v23, %v1106
  %v1108 = vand.u32 %v1107, 4294901760
  %v1109 = vsub.f32 %v1107, %v1108
  %v1110 = vand.u32 %v1109, 4294901760
  %1111 = vmatpush.msra.mxu0 %v1110
  %v1112 = vand.u32 %v21, 4294901760
  %v1113 = vsub.f32 %v21, %v1112
  %v1114 = vand.u32 %v1113, 4294901760
  %v1115 = vsub.f32 %v1113, %v1114
  %v1116 = vand.u32 %v1115, 4294901760
  %1117 = vmatpush.msra.mxu0 %v1116
  %v1118 = vand.u32 %v153, 4294901760
  %v1119 = vsub.f32 %v153, %v1118
  %v1120 = vand.u32 %v1119, 4294901760
  %v1121 = vsub.f32 %v1119, %v1120
  %v1122 = vand.u32 %v1121, 4294901760
  %1123 = vmatpush.msra.mxu0 %v1122
  %v1124 = vand.u32 %v152, 4294901760
  %v1125 = vsub.f32 %v152, %v1124
  %v1126 = vand.u32 %v1125, 4294901760
  %v1127 = vsub.f32 %v1125, %v1126
  %v1128 = vand.u32 %v1127, 4294901760
  %1129 = vmatpush.msra.mxu0 %v1128
  %v1130 = vand.u32 %v120, 4294901760
  %v1131 = vsub.f32 %v120, %v1130
  %v1132 = vand.u32 %v1131, 4294901760
  %v1133 = vsub.f32 %v1131, %v1132
  %v1134 = vand.u32 %v1133, 4294901760
  %1135 = vmatpush.msra.mxu0 %v1134
  %v1136 = vand.u32 %v119, 4294901760
  %v1137 = vsub.f32 %v119, %v1136
  %v1138 = vand.u32 %v1137, 4294901760
  %v1139 = vsub.f32 %v1137, %v1138
  %v1140 = vand.u32 %v1139, 4294901760
  %1141 = vmatpush.msra.mxu0 %v1140
  %v1142 = vand.u32 %v87, 4294901760
  %v1143 = vsub.f32 %v87, %v1142
  %v1144 = vand.u32 %v1143, 4294901760
  %v1145 = vsub.f32 %v1143, %v1144
  %v1146 = vand.u32 %v1145, 4294901760
  %1147 = vmatpush.msra.mxu0 %v1146
  %v1148 = vand.u32 %v86, 4294901760
  %v1149 = vsub.f32 %v86, %v1148
  %v1150 = vand.u32 %v1149, 4294901760
  %v1151 = vsub.f32 %v1149, %v1150
  %v1152 = vand.u32 %v1151, 4294901760
  %1153 = vmatpush.msra.mxu0 %v1152
  %v1154 = vand.u32 %v54, 4294901760
  %v1155 = vsub.f32 %v54, %v1154
  %v1156 = vand.u32 %v1155, 4294901760
  %v1157 = vsub.f32 %v1155, %v1156
  %v1158 = vand.u32 %v1157, 4294901760
  %1159 = vmatpush.msra.mxu0 %v1158
  %v1160 = vand.u32 %v53, 4294901760
  %v1161 = vsub.f32 %v53, %v1160
  %v1162 = vand.u32 %v1161, 4294901760
  %v1163 = vsub.f32 %v1161, %v1162
  %v1164 = vand.u32 %v1163, 4294901760
  %1165 = vmatpush.msra.mxu0 %v1164
  %v1166 = vand.u32 %v275, 4294901760
  %1167 = vmatmul.f32.gmra.mxu0 %v1166
  %v1168 = vpop.f32.mrf.mxu0
  %v1169 = vadd.f32 %v1044, %v1168
  %v1170 = vand.u32 %v277, 4294901760
  %1171 = vmatmul.f32.gmra.mxu0 %v1170
  %v1172 = vpop.f32.mrf.mxu0
  %v1173 = vadd.f32 %v1052, %v1172
  %v1174 = vand.u32 %v279, 4294901760
  %1175 = vmatmul.f32.gmra.mxu0 %v1174
  %v1176 = vpop.f32.mrf.mxu0
  %v1177 = vadd.f32 %v1060, %v1176
  %v1178 = vand.u32 %v281, 4294901760
  %1179 = vmatmul.f32.gmra.mxu0 %v1178
  %v1180 = vpop.f32.mrf.mxu0
  %v1181 = vadd.f32 %v1068, %v1180
  %1182 = vdwg.mxu0
  %v1183 = vand.u32 %v264, 4294901760
  %v1184 = vsub.f32 %v264, %v1183
  %1185 = vmatpush.msra.mxu0 %v1184
  %v1186 = vand.u32 %v263, 4294901760
  %v1187 = vsub.f32 %v263, %v1186
  %1188 = vmatpush.msra.mxu0 %v1187
  %v1189 = vand.u32 %v231, 4294901760
  %v1190 = vsub.f32 %v231, %v1189
  %1191 = vmatpush.msra.mxu0 %v1190
  %v1192 = vand.u32 %v230, 4294901760
  %v1193 = vsub.f32 %v230, %v1192
  %1194 = vmatpush.msra.mxu0 %v1193
  %v1195 = vand.u32 %v198, 4294901760
  %v1196 = vsub.f32 %v198, %v1195
  %1197 = vmatpush.msra.mxu0 %v1196
  %v1198 = vand.u32 %v197, 4294901760
  %v1199 = vsub.f32 %v197, %v1198
  %1200 = vmatpush.msra.mxu0 %v1199
  %v1201 = vand.u32 %v23, 4294901760
  %v1202 = vsub.f32 %v23, %v1201
  %1203 = vmatpush.msra.mxu0 %v1202
  %v1204 = vand.u32 %v21, 4294901760
  %v1205 = vsub.f32 %v21, %v1204
  %1206 = vmatpush.msra.mxu0 %v1205
  %v1207 = vand.u32 %v153, 4294901760
  %v1208 = vsub.f32 %v153, %v1207
  %1209 = vmatpush.msra.mxu0 %v1208
  %v1210 = vand.u32 %v152, 4294901760
  %v1211 = vsub.f32 %v152, %v1210
  %1212 = vmatpush.msra.mxu0 %v1211
  %v1213 = vand.u32 %v120, 4294901760
  %v1214 = vsub.f32 %v120, %v1213
  %1215 = vmatpush.msra.mxu0 %v1214
  %v1216 = vand.u32 %v119, 4294901760
  %v1217 = vsub.f32 %v119, %v1216
  %1218 = vmatpush.msra.mxu0 %v1217
  %v1219 = vand.u32 %v87, 4294901760
  %v1220 = vsub.f32 %v87, %v1219
  %1221 = vmatpush.msra.mxu0 %v1220
  %v1222 = vand.u32 %v86, 4294901760
  %v1223 = vsub.f32 %v86, %v1222
  %1224 = vmatpush.msra.mxu0 %v1223
  %v1225 = vand.u32 %v54, 4294901760
  %v1226 = vsub.f32 %v54, %v1225
  %1227 = vmatpush.msra.mxu0 %v1226
  %v1228 = vand.u32 %v53, 4294901760
  %v1229 = vsub.f32 %v53, %v1228
  %1230 = vmatpush.msra.mxu0 %v1229
  %v1231 = vand.u32 %v275, 4294901760
  %v1232 = vsub.f32 %v275, %v1231
  %1233 = vmatmul.f32.gmra.mxu0 %v1232
  %v1234 = vpop.f32.mrf.mxu0
  %v1235 = vadd.f32 %v1169, %v1234
  %v1236 = vand.u32 %v277, 4294901760
  %v1237 = vsub.f32 %v277, %v1236
  %1238 = vmatmul.f32.gmra.mxu0 %v1237
  %v1239 = vpop.f32.mrf.mxu0
  %v1240 = vadd.f32 %v1173, %v1239
  %v1241 = vand.u32 %v279, 4294901760
  %v1242 = vsub.f32 %v279, %v1241
  %1243 = vmatmul.f32.gmra.mxu0 %v1242
  %v1244 = vpop.f32.mrf.mxu0
  %v1245 = vadd.f32 %v1177, %v1244
  %v1246 = vand.u32 %v281, 4294901760
  %v1247 = vsub.f32 %v281, %v1246
  %1248 = vmatmul.f32.gmra.mxu0 %v1247
  %v1249 = vpop.f32.mrf.mxu0
  %v1250 = vadd.f32 %v1181, %v1249
  %1251 = vdwg.mxu0
  %v1252 = vand.u32 %v264, 4294901760
  %1253 = vmatpush.msra.mxu0 %v1252
  %v1254 = vand.u32 %v263, 4294901760
  %1255 = vmatpush.msra.mxu0 %v1254
  %v1256 = vand.u32 %v231, 4294901760
  %1257 = vmatpush.msra.mxu0 %v1256
  %v1258 = vand.u32 %v230, 4294901760
  %1259 = vmatpush.msra.mxu0 %v1258
  %v1260 = vand.u32 %v198, 4294901760
  %1261 = vmatpush.msra.mxu0 %v1260
  %v1262 = vand.u32 %v197, 4294901760
  %1263 = vmatpush.msra.mxu0 %v1262
  %v1264 = vand.u32 %v23, 4294901760
  %1265 = vmatpush.msra.mxu0 %v1264
  %v1266 = vand.u32 %v21, 4294901760
  %1267 = vmatpush.msra.mxu0 %v1266
  %v1268 = vand.u32 %v153, 4294901760
  %1269 = vmatpush.msra.mxu0 %v1268
  %v1270 = vand.u32 %v152, 4294901760
  %1271 = vmatpush.msra.mxu0 %v1270
  %v1272 = vand.u32 %v120, 4294901760
  %1273 = vmatpush.msra.mxu0 %v1272
  %v1274 = vand.u32 %v119, 4294901760
  %1275 = vmatpush.msra.mxu0 %v1274
  %v1276 = vand.u32 %v87, 4294901760
  %1277 = vmatpush.msra.mxu0 %v1276
  %v1278 = vand.u32 %v86, 4294901760
  %1279 = vmatpush.msra.mxu0 %v1278
  %v1280 = vand.u32 %v54, 4294901760
  %1281 = vmatpush.msra.mxu0 %v1280
  %v1282 = vand.u32 %v53, 4294901760
  %1283 = vmatpush.msra.mxu0 %v1282
  %v1284 = vand.u32 %v275, 4294901760
  %v1285 = vsub.f32 %v275, %v1284
  %v1286 = vand.u32 %v1285, 4294901760
  %1287 = vmatmul.f32.gmra.mxu0 %v1286
  %v1288 = vpop.f32.mrf.mxu0
  %v1289 = vadd.f32 %v1235, %v1288
  %v1290 = vand.u32 %v277, 4294901760
  %v1291 = vsub.f32 %v277, %v1290
  %v1292 = vand.u32 %v1291, 4294901760
  %1293 = vmatmul.f32.gmra.mxu0 %v1292
  %v1294 = vpop.f32.mrf.mxu0
  %v1295 = vadd.f32 %v1240, %v1294
  %v1296 = vand.u32 %v279, 4294901760
  %v1297 = vsub.f32 %v279, %v1296
  %v1298 = vand.u32 %v1297, 4294901760
  %1299 = vmatmul.f32.gmra.mxu0 %v1298
  %v1300 = vpop.f32.mrf.mxu0
  %v1301 = vadd.f32 %v1245, %v1300
  %v1302 = vand.u32 %v281, 4294901760
  %v1303 = vsub.f32 %v281, %v1302
  %v1304 = vand.u32 %v1303, 4294901760
  %1305 = vmatmul.f32.gmra.mxu0 %v1304
  %v1306 = vpop.f32.mrf.mxu0
  %v1307 = vadd.f32 %v1250, %v1306
  %1308 = vdwg.mxu0
  %v1309 = vand.u32 %v264, 4294901760
  %v1310 = vsub.f32 %v264, %v1309
  %v1311 = vand.u32 %v1310, 4294901760
  %1312 = vmatpush.msra.mxu0 %v1311
  %v1313 = vand.u32 %v263, 4294901760
  %v1314 = vsub.f32 %v263, %v1313
  %v1315 = vand.u32 %v1314, 4294901760
  %1316 = vmatpush.msra.mxu0 %v1315
  %v1317 = vand.u32 %v231, 4294901760
  %v1318 = vsub.f32 %v231, %v1317
  %v1319 = vand.u32 %v1318, 4294901760
  %1320 = vmatpush.msra.mxu0 %v1319
  %v1321 = vand.u32 %v230, 4294901760
  %v1322 = vsub.f32 %v230, %v1321
  %v1323 = vand.u32 %v1322, 4294901760
  %1324 = vmatpush.msra.mxu0 %v1323
  %v1325 = vand.u32 %v198, 4294901760
  %v1326 = vsub.f32 %v198, %v1325
  %v1327 = vand.u32 %v1326, 4294901760
  %1328 = vmatpush.msra.mxu0 %v1327
  %v1329 = vand.u32 %v197, 4294901760
  %v1330 = vsub.f32 %v197, %v1329
  %v1331 = vand.u32 %v1330, 4294901760
  %1332 = vmatpush.msra.mxu0 %v1331
  %v1333 = vand.u32 %v23, 4294901760
  %v1334 = vsub.f32 %v23, %v1333
  %v1335 = vand.u32 %v1334, 4294901760
  %1336 = vmatpush.msra.mxu0 %v1335
  %v1337 = vand.u32 %v21, 4294901760
  %v1338 = vsub.f32 %v21, %v1337
  %v1339 = vand.u32 %v1338, 4294901760
  %1340 = vmatpush.msra.mxu0 %v1339
  %v1341 = vand.u32 %v153, 4294901760
  %v1342 = vsub.f32 %v153, %v1341
  %v1343 = vand.u32 %v1342, 4294901760
  %1344 = vmatpush.msra.mxu0 %v1343
  %v1345 = vand.u32 %v152, 4294901760
  %v1346 = vsub.f32 %v152, %v1345
  %v1347 = vand.u32 %v1346, 4294901760
  %1348 = vmatpush.msra.mxu0 %v1347
  %v1349 = vand.u32 %v120, 4294901760
  %v1350 = vsub.f32 %v120, %v1349
  %v1351 = vand.u32 %v1350, 4294901760
  %1352 = vmatpush.msra.mxu0 %v1351
  %v1353 = vand.u32 %v119, 4294901760
  %v1354 = vsub.f32 %v119, %v1353
  %v1355 = vand.u32 %v1354, 4294901760
  %1356 = vmatpush.msra.mxu0 %v1355
  %v1357 = vand.u32 %v87, 4294901760
  %v1358 = vsub.f32 %v87, %v1357
  %v1359 = vand.u32 %v1358, 4294901760
  %1360 = vmatpush.msra.mxu0 %v1359
  %v1361 = vand.u32 %v86, 4294901760
  %v1362 = vsub.f32 %v86, %v1361
  %v1363 = vand.u32 %v1362, 4294901760
  %1364 = vmatpush.msra.mxu0 %v1363
  %v1365 = vand.u32 %v54, 4294901760
  %v1366 = vsub.f32 %v54, %v1365
  %v1367 = vand.u32 %v1366, 4294901760
  %1368 = vmatpush.msra.mxu0 %v1367
  %v1369 = vand.u32 %v53, 4294901760
  %v1370 = vsub.f32 %v53, %v1369
  %v1371 = vand.u32 %v1370, 4294901760
  %1372 = vmatpush.msra.mxu0 %v1371
  %v1373 = vand.u32 %v275, 4294901760
  %1374 = vmatmul.f32.gmra.mxu0 %v1373
  %v1375 = vpop.f32.mrf.mxu0
  %v1376 = vadd.f32 %v1289, %v1375
  %v1377 = vand.u32 %v277, 4294901760
  %1378 = vmatmul.f32.gmra.mxu0 %v1377
  %v1379 = vpop.f32.mrf.mxu0
  %v1380 = vadd.f32 %v1295, %v1379
  %v1381 = vand.u32 %v279, 4294901760
  %1382 = vmatmul.f32.gmra.mxu0 %v1381
  %v1383 = vpop.f32.mrf.mxu0
  %v1384 = vadd.f32 %v1301, %v1383
  %v1385 = vand.u32 %v281, 4294901760
  %1386 = vmatmul.f32.gmra.mxu0 %v1385
  %v1387 = vpop.f32.mrf.mxu0
  %v1388 = vadd.f32 %v1307, %v1387
  %1389 = vdwg.mxu0
  %v1390 = vand.u32 %v264, 4294901760
  %1391 = vmatpush.msra.mxu0 %v1390
  %v1392 = vand.u32 %v263, 4294901760
  %1393 = vmatpush.msra.mxu0 %v1392
  %v1394 = vand.u32 %v231, 4294901760
  %1395 = vmatpush.msra.mxu0 %v1394
  %v1396 = vand.u32 %v230, 4294901760
  %1397 = vmatpush.msra.mxu0 %v1396
  %v1398 = vand.u32 %v198, 4294901760
  %1399 = vmatpush.msra.mxu0 %v1398
  %v1400 = vand.u32 %v197, 4294901760
  %1401 = vmatpush.msra.mxu0 %v1400
  %v1402 = vand.u32 %v23, 4294901760
  %1403 = vmatpush.msra.mxu0 %v1402
  %v1404 = vand.u32 %v21, 4294901760
  %1405 = vmatpush.msra.mxu0 %v1404
  %v1406 = vand.u32 %v153, 4294901760
  %1407 = vmatpush.msra.mxu0 %v1406
  %v1408 = vand.u32 %v152, 4294901760
  %1409 = vmatpush.msra.mxu0 %v1408
  %v1410 = vand.u32 %v120, 4294901760
  %1411 = vmatpush.msra.mxu0 %v1410
  %v1412 = vand.u32 %v119, 4294901760
  %1413 = vmatpush.msra.mxu0 %v1412
  %v1414 = vand.u32 %v87, 4294901760
  %1415 = vmatpush.msra.mxu0 %v1414
  %v1416 = vand.u32 %v86, 4294901760
  %1417 = vmatpush.msra.mxu0 %v1416
  %v1418 = vand.u32 %v54, 4294901760
  %1419 = vmatpush.msra.mxu0 %v1418
  %v1420 = vand.u32 %v53, 4294901760
  %1421 = vmatpush.msra.mxu0 %v1420
  %v1422 = vand.u32 %v275, 4294901760
  %1423 = vmatmul.f32.gmra.mxu0 %v1422
  %v1424 = vpop.f32.mrf.mxu0
  %v1425 = vadd.f32 %v1376, %v1424
  %v1426 = vand.u32 %v277, 4294901760
  %1427 = vmatmul.f32.gmra.mxu0 %v1426
  %v1428 = vpop.f32.mrf.mxu0
  %v1429 = vadd.f32 %v1380, %v1428
  %v1430 = vand.u32 %v279, 4294901760
  %1431 = vmatmul.f32.gmra.mxu0 %v1430
  %v1432 = vpop.f32.mrf.mxu0
  %v1433 = vadd.f32 %v1384, %v1432
  %v1434 = vand.u32 %v281, 4294901760
  %1435 = vmatmul.f32.gmra.mxu0 %v1434
  %v1436 = vpop.f32.mrf.mxu0
  %v1437 = vadd.f32 %v1388, %v1436
  %1438 = vdwg.mxu0
  %1439 = vmatpush.msra.mxu0 0.0
  %1440 = vmatpush.msra.mxu0 0.0
  %1441 = vmatpush.msra.mxu0 0.0
  %1442 = vmatpush.msra.mxu0 0.0
  %1443 = vmatpush.msra.mxu0 0.0
  %1444 = vmatpush.msra.mxu0 0.0
  %1445 = vmatpush.msra.mxu0 0.0
  %1446 = vmatpush.msra.mxu0 0.0
  %1447 = vmatpush.msra.mxu0 0.0
  %1448 = vmatpush.msra.mxu0 0.0
  %1449 = vmatpush.msra.mxu0 0.0
  %1450 = vmatpush.msra.mxu0 0.0
  %1451 = vmatpush.msra.mxu0 0.0
  %1452 = vmatpush.msra.mxu0 0.0
  %v1453 = vand.u32 %v272, 4294901760
  %1454 = vmatpush.msra.mxu0 %v1453
  %v1455 = vand.u32 %v271, 4294901760
  %1456 = vmatpush.msra.mxu0 %v1455
  %v1457 = vand.u32 %v308, 4294901760
  %v1458 = vsub.f32 %v308, %v1457
  %v1459 = vand.u32 %v1458, 4294901760
  %v1460 = vsub.f32 %v1458, %v1459
  %v1461 = vand.u32 %v1460, 4294901760
  %1462 = vmatmul.f32.gmra.mxu0 %v1461
  %v1463 = vpop.f32.mrf.mxu0
  %v1464 = vadd.f32 %v1425, %v1463
  %v1465 = vand.u32 %v311, 4294901760
  %v1466 = vsub.f32 %v311, %v1465
  %v1467 = vand.u32 %v1466, 4294901760
  %v1468 = vsub.f32 %v1466, %v1467
  %v1469 = vand.u32 %v1468, 4294901760
  %1470 = vmatmul.f32.gmra.mxu0 %v1469
  %v1471 = vpop.f32.mrf.mxu0
  %v1472 = vadd.f32 %v1429, %v1471
  %v1473 = vand.u32 %v314, 4294901760
  %v1474 = vsub.f32 %v314, %v1473
  %v1475 = vand.u32 %v1474, 4294901760
  %v1476 = vsub.f32 %v1474, %v1475
  %v1477 = vand.u32 %v1476, 4294901760
  %1478 = vmatmul.f32.gmra.mxu0 %v1477
  %v1479 = vpop.f32.mrf.mxu0
  %v1480 = vadd.f32 %v1433, %v1479
  %v1481 = vand.u32 %v317, 4294901760
  %v1482 = vsub.f32 %v317, %v1481
  %v1483 = vand.u32 %v1482, 4294901760
  %v1484 = vsub.f32 %v1482, %v1483
  %v1485 = vand.u32 %v1484, 4294901760
  %1486 = vmatmul.f32.gmra.mxu0 %v1485
  %v1487 = vpop.f32.mrf.mxu0
  %v1488 = vadd.f32 %v1437, %v1487
  %1489 = vdwg.mxu0
  %1490 = vmatpush.msra.mxu0 0.0
  %1491 = vmatpush.msra.mxu0 0.0
  %1492 = vmatpush.msra.mxu0 0.0
  %1493 = vmatpush.msra.mxu0 0.0
  %1494 = vmatpush.msra.mxu0 0.0
  %1495 = vmatpush.msra.mxu0 0.0
  %1496 = vmatpush.msra.mxu0 0.0
  %1497 = vmatpush.msra.mxu0 0.0
  %1498 = vmatpush.msra.mxu0 0.0
  %1499 = vmatpush.msra.mxu0 0.0
  %1500 = vmatpush.msra.mxu0 0.0
  %1501 = vmatpush.msra.mxu0 0.0
  %1502 = vmatpush.msra.mxu0 0.0
  %1503 = vmatpush.msra.mxu0 0.0
  %v1504 = vand.u32 %v272, 4294901760
  %v1505 = vsub.f32 %v272, %v1504
  %v1506 = vand.u32 %v1505, 4294901760
  %v1507 = vsub.f32 %v1505, %v1506
  %v1508 = vand.u32 %v1507, 4294901760
  %1509 = vmatpush.msra.mxu0 %v1508
  %v1510 = vand.u32 %v271, 4294901760
  %v1511 = vsub.f32 %v271, %v1510
  %v1512 = vand.u32 %v1511, 4294901760
  %v1513 = vsub.f32 %v1511, %v1512
  %v1514 = vand.u32 %v1513, 4294901760
  %1515 = vmatpush.msra.mxu0 %v1514
  %v1516 = vand.u32 %v308, 4294901760
  %1517 = vmatmul.f32.gmra.mxu0 %v1516
  %v1518 = vpop.f32.mrf.mxu0
  %v1519 = vadd.f32 %v1464, %v1518
  %v1520 = vand.u32 %v311, 4294901760
  %1521 = vmatmul.f32.gmra.mxu0 %v1520
  %v1522 = vpop.f32.mrf.mxu0
  %v1523 = vadd.f32 %v1472, %v1522
  %v1524 = vand.u32 %v314, 4294901760
  %1525 = vmatmul.f32.gmra.mxu0 %v1524
  %v1526 = vpop.f32.mrf.mxu0
  %v1527 = vadd.f32 %v1480, %v1526
  %v1528 = vand.u32 %v317, 4294901760
  %1529 = vmatmul.f32.gmra.mxu0 %v1528
  %v1530 = vpop.f32.mrf.mxu0
  %v1531 = vadd.f32 %v1488, %v1530
  %1532 = vdwg.mxu0
  %1533 = vmatpush.msra.mxu0 0.0
  %1534 = vmatpush.msra.mxu0 0.0
  %1535 = vmatpush.msra.mxu0 0.0
  %1536 = vmatpush.msra.mxu0 0.0
  %1537 = vmatpush.msra.mxu0 0.0
  %1538 = vmatpush.msra.mxu0 0.0
  %1539 = vmatpush.msra.mxu0 0.0
  %1540 = vmatpush.msra.mxu0 0.0
  %1541 = vmatpush.msra.mxu0 0.0
  %1542 = vmatpush.msra.mxu0 0.0
  %1543 = vmatpush.msra.mxu0 0.0
  %1544 = vmatpush.msra.mxu0 0.0
  %1545 = vmatpush.msra.mxu0 0.0
  %1546 = vmatpush.msra.mxu0 0.0
  %v1547 = vand.u32 %v272, 4294901760
  %v1548 = vsub.f32 %v272, %v1547
  %1549 = vmatpush.msra.mxu0 %v1548
  %v1550 = vand.u32 %v271, 4294901760
  %v1551 = vsub.f32 %v271, %v1550
  %1552 = vmatpush.msra.mxu0 %v1551
  %v1553 = vand.u32 %v308, 4294901760
  %v1554 = vsub.f32 %v308, %v1553
  %1555 = vmatmul.f32.gmra.mxu0 %v1554
  %v1556 = vpop.f32.mrf.mxu0
  %v1557 = vadd.f32 %v1519, %v1556
  %v1558 = vand.u32 %v311, 4294901760
  %v1559 = vsub.f32 %v311, %v1558
  %1560 = vmatmul.f32.gmra.mxu0 %v1559
  %v1561 = vpop.f32.mrf.mxu0
  %v1562 = vadd.f32 %v1523, %v1561
  %v1563 = vand.u32 %v314, 4294901760
  %v1564 = vsub.f32 %v314, %v1563
  %1565 = vmatmul.f32.gmra.mxu0 %v1564
  %v1566 = vpop.f32.mrf.mxu0
  %v1567 = vadd.f32 %v1527, %v1566
  %v1568 = vand.u32 %v317, 4294901760
  %v1569 = vsub.f32 %v317, %v1568
  %1570 = vmatmul.f32.gmra.mxu0 %v1569
  %v1571 = vpop.f32.mrf.mxu0
  %v1572 = vadd.f32 %v1531, %v1571
  %1573 = vdwg.mxu0
  %1574 = vmatpush.msra.mxu0 0.0
  %1575 = vmatpush.msra.mxu0 0.0
  %1576 = vmatpush.msra.mxu0 0.0
  %1577 = vmatpush.msra.mxu0 0.0
  %1578 = vmatpush.msra.mxu0 0.0
  %1579 = vmatpush.msra.mxu0 0.0
  %1580 = vmatpush.msra.mxu0 0.0
  %1581 = vmatpush.msra.mxu0 0.0
  %1582 = vmatpush.msra.mxu0 0.0
  %1583 = vmatpush.msra.mxu0 0.0
  %1584 = vmatpush.msra.mxu0 0.0
  %1585 = vmatpush.msra.mxu0 0.0
  %1586 = vmatpush.msra.mxu0 0.0
  %1587 = vmatpush.msra.mxu0 0.0
  %v1588 = vand.u32 %v272, 4294901760
  %1589 = vmatpush.msra.mxu0 %v1588
  %v1590 = vand.u32 %v271, 4294901760
  %1591 = vmatpush.msra.mxu0 %v1590
  %v1592 = vand.u32 %v308, 4294901760
  %v1593 = vsub.f32 %v308, %v1592
  %v1594 = vand.u32 %v1593, 4294901760
  %1595 = vmatmul.f32.gmra.mxu0 %v1594
  %v1596 = vpop.f32.mrf.mxu0
  %v1597 = vadd.f32 %v1557, %v1596
  %v1598 = vand.u32 %v311, 4294901760
  %v1599 = vsub.f32 %v311, %v1598
  %v1600 = vand.u32 %v1599, 4294901760
  %1601 = vmatmul.f32.gmra.mxu0 %v1600
  %v1602 = vpop.f32.mrf.mxu0
  %v1603 = vadd.f32 %v1562, %v1602
  %v1604 = vand.u32 %v314, 4294901760
  %v1605 = vsub.f32 %v314, %v1604
  %v1606 = vand.u32 %v1605, 4294901760
  %1607 = vmatmul.f32.gmra.mxu0 %v1606
  %v1608 = vpop.f32.mrf.mxu0
  %v1609 = vadd.f32 %v1567, %v1608
  %v1610 = vand.u32 %v317, 4294901760
  %v1611 = vsub.f32 %v317, %v1610
  %v1612 = vand.u32 %v1611, 4294901760
  %1613 = vmatmul.f32.gmra.mxu0 %v1612
  %v1614 = vpop.f32.mrf.mxu0
  %v1615 = vadd.f32 %v1572, %v1614
  %1616 = vdwg.mxu0
  %1617 = vmatpush.msra.mxu0 0.0
  %1618 = vmatpush.msra.mxu0 0.0
  %1619 = vmatpush.msra.mxu0 0.0
  %1620 = vmatpush.msra.mxu0 0.0
  %1621 = vmatpush.msra.mxu0 0.0
  %1622 = vmatpush.msra.mxu0 0.0
  %1623 = vmatpush.msra.mxu0 0.0
  %1624 = vmatpush.msra.mxu0 0.0
  %1625 = vmatpush.msra.mxu0 0.0
  %1626 = vmatpush.msra.mxu0 0.0
  %1627 = vmatpush.msra.mxu0 0.0
  %1628 = vmatpush.msra.mxu0 0.0
  %1629 = vmatpush.msra.mxu0 0.0
  %1630 = vmatpush.msra.mxu0 0.0
  %v1631 = vand.u32 %v272, 4294901760
  %v1632 = vsub.f32 %v272, %v1631
  %v1633 = vand.u32 %v1632, 4294901760
  %1634 = vmatpush.msra.mxu0 %v1633
  %v1635 = vand.u32 %v271, 4294901760
  %v1636 = vsub.f32 %v271, %v1635
  %v1637 = vand.u32 %v1636, 4294901760
  %1638 = vmatpush.msra.mxu0 %v1637
  %v1639 = vand.u32 %v308, 4294901760
  %1640 = vmatmul.f32.gmra.mxu0 %v1639
  %v1641 = vpop.f32.mrf.mxu0
  %v1642 = vadd.f32 %v1597, %v1641
  %v1643 = vand.u32 %v311, 4294901760
  %1644 = vmatmul.f32.gmra.mxu0 %v1643
  %v1645 = vpop.f32.mrf.mxu0
  %v1646 = vadd.f32 %v1603, %v1645
  %v1647 = vand.u32 %v314, 4294901760
  %1648 = vmatmul.f32.gmra.mxu0 %v1647
  %v1649 = vpop.f32.mrf.mxu0
  %v1650 = vadd.f32 %v1609, %v1649
  %v1651 = vand.u32 %v317, 4294901760
  %1652 = vmatmul.f32.gmra.mxu0 %v1651
  %v1653 = vpop.f32.mrf.mxu0
  %v1654 = vadd.f32 %v1615, %v1653
  %1655 = vdwg.mxu0
  %1656 = vmatpush.msra.mxu0 0.0
  %1657 = vmatpush.msra.mxu0 0.0
  %1658 = vmatpush.msra.mxu0 0.0
  %1659 = vmatpush.msra.mxu0 0.0
  %1660 = vmatpush.msra.mxu0 0.0
  %1661 = vmatpush.msra.mxu0 0.0
  %1662 = vmatpush.msra.mxu0 0.0
  %1663 = vmatpush.msra.mxu0 0.0
  %1664 = vmatpush.msra.mxu0 0.0
  %1665 = vmatpush.msra.mxu0 0.0
  %1666 = vmatpush.msra.mxu0 0.0
  %1667 = vmatpush.msra.mxu0 0.0
  %1668 = vmatpush.msra.mxu0 0.0
  %1669 = vmatpush.msra.mxu0 0.0
  %v1670 = vand.u32 %v272, 4294901760
  %1671 = vmatpush.msra.mxu0 %v1670
  %v1672 = vand.u32 %v271, 4294901760
  %1673 = vmatpush.msra.mxu0 %v1672
  %v1674 = vand.u32 %v308, 4294901760
  %1675 = vmatmul.f32.gmra.mxu0 %v1674
  %v1676 = vpop.f32.mrf.mxu0
  %v1677 = vadd.f32 %v1642, %v1676
  %v1678 = vand.u32 %v311, 4294901760
  %1679 = vmatmul.f32.gmra.mxu0 %v1678
  %v1680 = vpop.f32.mrf.mxu0
  %v1681 = vadd.f32 %v1646, %v1680
  %v1682 = vand.u32 %v314, 4294901760
  %1683 = vmatmul.f32.gmra.mxu0 %v1682
  %v1684 = vpop.f32.mrf.mxu0
  %v1685 = vadd.f32 %v1650, %v1684
  %v1686 = vand.u32 %v317, 4294901760
  %1687 = vmatmul.f32.gmra.mxu0 %v1686
  %v1688 = vpop.f32.mrf.mxu0
  %v1689 = vadd.f32 %v1654, %v1688
  %1690 = vdwg.mxu0
  %v1691 = vand.u32 %v254, 4294901760
  %1692 = vmatpush.msra.mxu0 %v1691
  %v1693 = vand.u32 %v253, 4294901760
  %1694 = vmatpush.msra.mxu0 %v1693
  %v1695 = vand.u32 %v221, 4294901760
  %1696 = vmatpush.msra.mxu0 %v1695
  %v1697 = vand.u32 %v220, 4294901760
  %1698 = vmatpush.msra.mxu0 %v1697
  %v1699 = vand.u32 %v188, 4294901760
  %1700 = vmatpush.msra.mxu0 %v1699
  %v1701 = vand.u32 %v187, 4294901760
  %1702 = vmatpush.msra.mxu0 %v1701
  %v1703 = vand.u32 %v26, 4294901760
  %1704 = vmatpush.msra.mxu0 %v1703
  %v1705 = vand.u32 %v24, 4294901760
  %1706 = vmatpush.msra.mxu0 %v1705
  %v1707 = vand.u32 %v167, 4294901760
  %1708 = vmatpush.msra.mxu0 %v1707
  %v1709 = vand.u32 %v166, 4294901760
  %1710 = vmatpush.msra.mxu0 %v1709
  %v1711 = vand.u32 %v134, 4294901760
  %1712 = vmatpush.msra.mxu0 %v1711
  %v1713 = vand.u32 %v133, 4294901760
  %1714 = vmatpush.msra.mxu0 %v1713
  %v1715 = vand.u32 %v101, 4294901760
  %1716 = vmatpush.msra.mxu0 %v1715
  %v1717 = vand.u32 %v100, 4294901760
  %1718 = vmatpush.msra.mxu0 %v1717
  %v1719 = vand.u32 %v68, 4294901760
  %1720 = vmatpush.msra.mxu0 %v1719
  %v1721 = vand.u32 %v67, 4294901760
  %1722 = vmatpush.msra.mxu0 %v1721
  %v1723 = vand.u32 %v275, 4294901760
  %v1724 = vsub.f32 %v275, %v1723
  %v1725 = vand.u32 %v1724, 4294901760
  %v1726 = vsub.f32 %v1724, %v1725
  %v1727 = vand.u32 %v1726, 4294901760
  %1728 = vmatmul.f32.gmra.mxu0 %v1727
  %v1729 = vpop.f32.mrf.mxu0
  %v1730 = vadd.f32 %v290, %v1729
  %v1731 = vand.u32 %v277, 4294901760
  %v1732 = vsub.f32 %v277, %v1731
  %v1733 = vand.u32 %v1732, 4294901760
  %v1734 = vsub.f32 %v1732, %v1733
  %v1735 = vand.u32 %v1734, 4294901760
  %1736 = vmatmul.f32.gmra.mxu0 %v1735
  %v1737 = vpop.f32.mrf.mxu0
  %v1738 = vadd.f32 %v295, %v1737
  %v1739 = vand.u32 %v279, 4294901760
  %v1740 = vsub.f32 %v279, %v1739
  %v1741 = vand.u32 %v1740, 4294901760
  %v1742 = vsub.f32 %v1740, %v1741
  %v1743 = vand.u32 %v1742, 4294901760
  %1744 = vmatmul.f32.gmra.mxu0 %v1743
  %v1745 = vpop.f32.mrf.mxu0
  %v1746 = vadd.f32 %v300, %v1745
  %v1747 = vand.u32 %v281, 4294901760
  %v1748 = vsub.f32 %v281, %v1747
  %v1749 = vand.u32 %v1748, 4294901760
  %v1750 = vsub.f32 %v1748, %v1749
  %v1751 = vand.u32 %v1750, 4294901760
  %1752 = vmatmul.f32.gmra.mxu0 %v1751
  %v1753 = vpop.f32.mrf.mxu0
  %v1754 = vadd.f32 %v305, %v1753
  %1755 = vdwg.mxu0
  %v1756 = vand.u32 %v254, 4294901760
  %v1757 = vsub.f32 %v254, %v1756
  %v1758 = vand.u32 %v1757, 4294901760
  %v1759 = vsub.f32 %v1757, %v1758
  %v1760 = vand.u32 %v1759, 4294901760
  %1761 = vmatpush.msra.mxu0 %v1760
  %v1762 = vand.u32 %v253, 4294901760
  %v1763 = vsub.f32 %v253, %v1762
  %v1764 = vand.u32 %v1763, 4294901760
  %v1765 = vsub.f32 %v1763, %v1764
  %v1766 = vand.u32 %v1765, 4294901760
  %1767 = vmatpush.msra.mxu0 %v1766
  %v1768 = vand.u32 %v221, 4294901760
  %v1769 = vsub.f32 %v221, %v1768
  %v1770 = vand.u32 %v1769, 4294901760
  %v1771 = vsub.f32 %v1769, %v1770
  %v1772 = vand.u32 %v1771, 4294901760
  %1773 = vmatpush.msra.mxu0 %v1772
  %v1774 = vand.u32 %v220, 4294901760
  %v1775 = vsub.f32 %v220, %v1774
  %v1776 = vand.u32 %v1775, 4294901760
  %v1777 = vsub.f32 %v1775, %v1776
  %v1778 = vand.u32 %v1777, 4294901760
  %1779 = vmatpush.msra.mxu0 %v1778
  %v1780 = vand.u32 %v188, 4294901760
  %v1781 = vsub.f32 %v188, %v1780
  %v1782 = vand.u32 %v1781, 4294901760
  %v1783 = vsub.f32 %v1781, %v1782
  %v1784 = vand.u32 %v1783, 4294901760
  %1785 = vmatpush.msra.mxu0 %v1784
  %v1786 = vand.u32 %v187, 4294901760
  %v1787 = vsub.f32 %v187, %v1786
  %v1788 = vand.u32 %v1787, 4294901760
  %v1789 = vsub.f32 %v1787, %v1788
  %v1790 = vand.u32 %v1789, 4294901760
  %1791 = vmatpush.msra.mxu0 %v1790
  %v1792 = vand.u32 %v26, 4294901760
  %v1793 = vsub.f32 %v26, %v1792
  %v1794 = vand.u32 %v1793, 4294901760
  %v1795 = vsub.f32 %v1793, %v1794
  %v1796 = vand.u32 %v1795, 4294901760
  %1797 = vmatpush.msra.mxu0 %v1796
  %v1798 = vand.u32 %v24, 4294901760
  %v1799 = vsub.f32 %v24, %v1798
  %v1800 = vand.u32 %v1799, 4294901760
  %v1801 = vsub.f32 %v1799, %v1800
  %v1802 = vand.u32 %v1801, 4294901760
  %1803 = vmatpush.msra.mxu0 %v1802
  %v1804 = vand.u32 %v167, 4294901760
  %v1805 = vsub.f32 %v167, %v1804
  %v1806 = vand.u32 %v1805, 4294901760
  %v1807 = vsub.f32 %v1805, %v1806
  %v1808 = vand.u32 %v1807, 4294901760
  %1809 = vmatpush.msra.mxu0 %v1808
  %v1810 = vand.u32 %v166, 4294901760
  %v1811 = vsub.f32 %v166, %v1810
  %v1812 = vand.u32 %v1811, 4294901760
  %v1813 = vsub.f32 %v1811, %v1812
  %v1814 = vand.u32 %v1813, 4294901760
  %1815 = vmatpush.msra.mxu0 %v1814
  %v1816 = vand.u32 %v134, 4294901760
  %v1817 = vsub.f32 %v134, %v1816
  %v1818 = vand.u32 %v1817, 4294901760
  %v1819 = vsub.f32 %v1817, %v1818
  %v1820 = vand.u32 %v1819, 4294901760
  %1821 = vmatpush.msra.mxu0 %v1820
  %v1822 = vand.u32 %v133, 4294901760
  %v1823 = vsub.f32 %v133, %v1822
  %v1824 = vand.u32 %v1823, 4294901760
  %v1825 = vsub.f32 %v1823, %v1824
  %v1826 = vand.u32 %v1825, 4294901760
  %1827 = vmatpush.msra.mxu0 %v1826
  %v1828 = vand.u32 %v101, 4294901760
  %v1829 = vsub.f32 %v101, %v1828
  %v1830 = vand.u32 %v1829, 4294901760
  %v1831 = vsub.f32 %v1829, %v1830
  %v1832 = vand.u32 %v1831, 4294901760
  %1833 = vmatpush.msra.mxu0 %v1832
  %v1834 = vand.u32 %v100, 4294901760
  %v1835 = vsub.f32 %v100, %v1834
  %v1836 = vand.u32 %v1835, 4294901760
  %v1837 = vsub.f32 %v1835, %v1836
  %v1838 = vand.u32 %v1837, 4294901760
  %1839 = vmatpush.msra.mxu0 %v1838
  %v1840 = vand.u32 %v68, 4294901760
  %v1841 = vsub.f32 %v68, %v1840
  %v1842 = vand.u32 %v1841, 4294901760
  %v1843 = vsub.f32 %v1841, %v1842
  %v1844 = vand.u32 %v1843, 4294901760
  %1845 = vmatpush.msra.mxu0 %v1844
  %v1846 = vand.u32 %v67, 4294901760
  %v1847 = vsub.f32 %v67, %v1846
  %v1848 = vand.u32 %v1847, 4294901760
  %v1849 = vsub.f32 %v1847, %v1848
  %v1850 = vand.u32 %v1849, 4294901760
  %1851 = vmatpush.msra.mxu0 %v1850
  %v1852 = vand.u32 %v275, 4294901760
  %1853 = vmatmul.f32.gmra.mxu0 %v1852
  %v1854 = vpop.f32.mrf.mxu0
  %v1855 = vadd.f32 %v1730, %v1854
  %v1856 = vand.u32 %v277, 4294901760
  %1857 = vmatmul.f32.gmra.mxu0 %v1856
  %v1858 = vpop.f32.mrf.mxu0
  %v1859 = vadd.f32 %v1738, %v1858
  %v1860 = vand.u32 %v279, 4294901760
  %1861 = vmatmul.f32.gmra.mxu0 %v1860
  %v1862 = vpop.f32.mrf.mxu0
  %v1863 = vadd.f32 %v1746, %v1862
  %v1864 = vand.u32 %v281, 4294901760
  %1865 = vmatmul.f32.gmra.mxu0 %v1864
  %v1866 = vpop.f32.mrf.mxu0
  %v1867 = vadd.f32 %v1754, %v1866
  %1868 = vdwg.mxu0
  %v1869 = vand.u32 %v254, 4294901760
  %v1870 = vsub.f32 %v254, %v1869
  %1871 = vmatpush.msra.mxu0 %v1870
  %v1872 = vand.u32 %v253, 4294901760
  %v1873 = vsub.f32 %v253, %v1872
  %1874 = vmatpush.msra.mxu0 %v1873
  %v1875 = vand.u32 %v221, 4294901760
  %v1876 = vsub.f32 %v221, %v1875
  %1877 = vmatpush.msra.mxu0 %v1876
  %v1878 = vand.u32 %v220, 4294901760
  %v1879 = vsub.f32 %v220, %v1878
  %1880 = vmatpush.msra.mxu0 %v1879
  %v1881 = vand.u32 %v188, 4294901760
  %v1882 = vsub.f32 %v188, %v1881
  %1883 = vmatpush.msra.mxu0 %v1882
  %v1884 = vand.u32 %v187, 4294901760
  %v1885 = vsub.f32 %v187, %v1884
  %1886 = vmatpush.msra.mxu0 %v1885
  %v1887 = vand.u32 %v26, 4294901760
  %v1888 = vsub.f32 %v26, %v1887
  %1889 = vmatpush.msra.mxu0 %v1888
  %v1890 = vand.u32 %v24, 4294901760
  %v1891 = vsub.f32 %v24, %v1890
  %1892 = vmatpush.msra.mxu0 %v1891
  %v1893 = vand.u32 %v167, 4294901760
  %v1894 = vsub.f32 %v167, %v1893
  %1895 = vmatpush.msra.mxu0 %v1894
  %v1896 = vand.u32 %v166, 4294901760
  %v1897 = vsub.f32 %v166, %v1896
  %1898 = vmatpush.msra.mxu0 %v1897
  %v1899 = vand.u32 %v134, 4294901760
  %v1900 = vsub.f32 %v134, %v1899
  %1901 = vmatpush.msra.mxu0 %v1900
  %v1902 = vand.u32 %v133, 4294901760
  %v1903 = vsub.f32 %v133, %v1902
  %1904 = vmatpush.msra.mxu0 %v1903
  %v1905 = vand.u32 %v101, 4294901760
  %v1906 = vsub.f32 %v101, %v1905
  %1907 = vmatpush.msra.mxu0 %v1906
  %v1908 = vand.u32 %v100, 4294901760
  %v1909 = vsub.f32 %v100, %v1908
  %1910 = vmatpush.msra.mxu0 %v1909
  %v1911 = vand.u32 %v68, 4294901760
  %v1912 = vsub.f32 %v68, %v1911
  %1913 = vmatpush.msra.mxu0 %v1912
  %v1914 = vand.u32 %v67, 4294901760
  %v1915 = vsub.f32 %v67, %v1914
  %1916 = vmatpush.msra.mxu0 %v1915
  %v1917 = vand.u32 %v275, 4294901760
  %v1918 = vsub.f32 %v275, %v1917
  %1919 = vmatmul.f32.gmra.mxu0 %v1918
  %v1920 = vpop.f32.mrf.mxu0
  %v1921 = vadd.f32 %v1855, %v1920
  %v1922 = vand.u32 %v277, 4294901760
  %v1923 = vsub.f32 %v277, %v1922
  %1924 = vmatmul.f32.gmra.mxu0 %v1923
  %v1925 = vpop.f32.mrf.mxu0
  %v1926 = vadd.f32 %v1859, %v1925
  %v1927 = vand.u32 %v279, 4294901760
  %v1928 = vsub.f32 %v279, %v1927
  %1929 = vmatmul.f32.gmra.mxu0 %v1928
  %v1930 = vpop.f32.mrf.mxu0
  %v1931 = vadd.f32 %v1863, %v1930
  %v1932 = vand.u32 %v281, 4294901760
  %v1933 = vsub.f32 %v281, %v1932
  %1934 = vmatmul.f32.gmra.mxu0 %v1933
  %v1935 = vpop.f32.mrf.mxu0
  %v1936 = vadd.f32 %v1867, %v1935
  %1937 = vdwg.mxu0
  %v1938 = vand.u32 %v254, 4294901760
  %1939 = vmatpush.msra.mxu0 %v1938
  %v1940 = vand.u32 %v253, 4294901760
  %1941 = vmatpush.msra.mxu0 %v1940
  %v1942 = vand.u32 %v221, 4294901760
  %1943 = vmatpush.msra.mxu0 %v1942
  %v1944 = vand.u32 %v220, 4294901760
  %1945 = vmatpush.msra.mxu0 %v1944
  %v1946 = vand.u32 %v188, 4294901760
  %1947 = vmatpush.msra.mxu0 %v1946
  %v1948 = vand.u32 %v187, 4294901760
  %1949 = vmatpush.msra.mxu0 %v1948
  %v1950 = vand.u32 %v26, 4294901760
  %1951 = vmatpush.msra.mxu0 %v1950
  %v1952 = vand.u32 %v24, 4294901760
  %1953 = vmatpush.msra.mxu0 %v1952
  %v1954 = vand.u32 %v167, 4294901760
  %1955 = vmatpush.msra.mxu0 %v1954
  %v1956 = vand.u32 %v166, 4294901760
  %1957 = vmatpush.msra.mxu0 %v1956
  %v1958 = vand.u32 %v134, 4294901760
  %1959 = vmatpush.msra.mxu0 %v1958
  %v1960 = vand.u32 %v133, 4294901760
  %1961 = vmatpush.msra.mxu0 %v1960
  %v1962 = vand.u32 %v101, 4294901760
  %1963 = vmatpush.msra.mxu0 %v1962
  %v1964 = vand.u32 %v100, 4294901760
  %1965 = vmatpush.msra.mxu0 %v1964
  %v1966 = vand.u32 %v68, 4294901760
  %1967 = vmatpush.msra.mxu0 %v1966
  %v1968 = vand.u32 %v67, 4294901760
  %1969 = vmatpush.msra.mxu0 %v1968
  %v1970 = vand.u32 %v275, 4294901760
  %v1971 = vsub.f32 %v275, %v1970
  %v1972 = vand.u32 %v1971, 4294901760
  %1973 = vmatmul.f32.gmra.mxu0 %v1972
  %v1974 = vpop.f32.mrf.mxu0
  %v1975 = vadd.f32 %v1921, %v1974
  %v1976 = vand.u32 %v277, 4294901760
  %v1977 = vsub.f32 %v277, %v1976
  %v1978 = vand.u32 %v1977, 4294901760
  %1979 = vmatmul.f32.gmra.mxu0 %v1978
  %v1980 = vpop.f32.mrf.mxu0
  %v1981 = vadd.f32 %v1926, %v1980
  %v1982 = vand.u32 %v279, 4294901760
  %v1983 = vsub.f32 %v279, %v1982
  %v1984 = vand.u32 %v1983, 4294901760
  %1985 = vmatmul.f32.gmra.mxu0 %v1984
  %v1986 = vpop.f32.mrf.mxu0
  %v1987 = vadd.f32 %v1931, %v1986
  %v1988 = vand.u32 %v281, 4294901760
  %v1989 = vsub.f32 %v281, %v1988
  %v1990 = vand.u32 %v1989, 4294901760
  %1991 = vmatmul.f32.gmra.mxu0 %v1990
  %v1992 = vpop.f32.mrf.mxu0
  %v1993 = vadd.f32 %v1936, %v1992
  %1994 = vdwg.mxu0
  %v1995 = vand.u32 %v254, 4294901760
  %v1996 = vsub.f32 %v254, %v1995
  %v1997 = vand.u32 %v1996, 4294901760
  %1998 = vmatpush.msra.mxu0 %v1997
  %v1999 = vand.u32 %v253, 4294901760
  %v2000 = vsub.f32 %v253, %v1999
  %v2001 = vand.u32 %v2000, 4294901760
  %2002 = vmatpush.msra.mxu0 %v2001
  %v2003 = vand.u32 %v221, 4294901760
  %v2004 = vsub.f32 %v221, %v2003
  %v2005 = vand.u32 %v2004, 4294901760
  %2006 = vmatpush.msra.mxu0 %v2005
  %v2007 = vand.u32 %v220, 4294901760
  %v2008 = vsub.f32 %v220, %v2007
  %v2009 = vand.u32 %v2008, 4294901760
  %2010 = vmatpush.msra.mxu0 %v2009
  %v2011 = vand.u32 %v188, 4294901760
  %v2012 = vsub.f32 %v188, %v2011
  %v2013 = vand.u32 %v2012, 4294901760
  %2014 = vmatpush.msra.mxu0 %v2013
  %v2015 = vand.u32 %v187, 4294901760
  %v2016 = vsub.f32 %v187, %v2015
  %v2017 = vand.u32 %v2016, 4294901760
  %2018 = vmatpush.msra.mxu0 %v2017
  %v2019 = vand.u32 %v26, 4294901760
  %v2020 = vsub.f32 %v26, %v2019
  %v2021 = vand.u32 %v2020, 4294901760
  %2022 = vmatpush.msra.mxu0 %v2021
  %v2023 = vand.u32 %v24, 4294901760
  %v2024 = vsub.f32 %v24, %v2023
  %v2025 = vand.u32 %v2024, 4294901760
  %2026 = vmatpush.msra.mxu0 %v2025
  %v2027 = vand.u32 %v167, 4294901760
  %v2028 = vsub.f32 %v167, %v2027
  %v2029 = vand.u32 %v2028, 4294901760
  %2030 = vmatpush.msra.mxu0 %v2029
  %v2031 = vand.u32 %v166, 4294901760
  %v2032 = vsub.f32 %v166, %v2031
  %v2033 = vand.u32 %v2032, 4294901760
  %2034 = vmatpush.msra.mxu0 %v2033
  %v2035 = vand.u32 %v134, 4294901760
  %v2036 = vsub.f32 %v134, %v2035
  %v2037 = vand.u32 %v2036, 4294901760
  %2038 = vmatpush.msra.mxu0 %v2037
  %v2039 = vand.u32 %v133, 4294901760
  %v2040 = vsub.f32 %v133, %v2039
  %v2041 = vand.u32 %v2040, 4294901760
  %2042 = vmatpush.msra.mxu0 %v2041
  %v2043 = vand.u32 %v101, 4294901760
  %v2044 = vsub.f32 %v101, %v2043
  %v2045 = vand.u32 %v2044, 4294901760
  %2046 = vmatpush.msra.mxu0 %v2045
  %v2047 = vand.u32 %v100, 4294901760
  %v2048 = vsub.f32 %v100, %v2047
  %v2049 = vand.u32 %v2048, 4294901760
  %2050 = vmatpush.msra.mxu0 %v2049
  %v2051 = vand.u32 %v68, 4294901760
  %v2052 = vsub.f32 %v68, %v2051
  %v2053 = vand.u32 %v2052, 4294901760
  %2054 = vmatpush.msra.mxu0 %v2053
  %v2055 = vand.u32 %v67, 4294901760
  %v2056 = vsub.f32 %v67, %v2055
  %v2057 = vand.u32 %v2056, 4294901760
  %2058 = vmatpush.msra.mxu0 %v2057
  %v2059 = vand.u32 %v275, 4294901760
  %2060 = vmatmul.f32.gmra.mxu0 %v2059
  %v2061 = vpop.f32.mrf.mxu0
  %v2062 = vadd.f32 %v1975, %v2061
  %v2063 = vand.u32 %v277, 4294901760
  %2064 = vmatmul.f32.gmra.mxu0 %v2063
  %v2065 = vpop.f32.mrf.mxu0
  %v2066 = vadd.f32 %v1981, %v2065
  %v2067 = vand.u32 %v279, 4294901760
  %2068 = vmatmul.f32.gmra.mxu0 %v2067
  %v2069 = vpop.f32.mrf.mxu0
  %v2070 = vadd.f32 %v1987, %v2069
  %v2071 = vand.u32 %v281, 4294901760
  %2072 = vmatmul.f32.gmra.mxu0 %v2071
  %v2073 = vpop.f32.mrf.mxu0
  %v2074 = vadd.f32 %v1993, %v2073
  %2075 = vdwg.mxu0
  %v2076 = vand.u32 %v254, 4294901760
  %2077 = vmatpush.msra.mxu0 %v2076
  %v2078 = vand.u32 %v253, 4294901760
  %2079 = vmatpush.msra.mxu0 %v2078
  %v2080 = vand.u32 %v221, 4294901760
  %2081 = vmatpush.msra.mxu0 %v2080
  %v2082 = vand.u32 %v220, 4294901760
  %2083 = vmatpush.msra.mxu0 %v2082
  %v2084 = vand.u32 %v188, 4294901760
  %2085 = vmatpush.msra.mxu0 %v2084
  %v2086 = vand.u32 %v187, 4294901760
  %2087 = vmatpush.msra.mxu0 %v2086
  %v2088 = vand.u32 %v26, 4294901760
  %2089 = vmatpush.msra.mxu0 %v2088
  %v2090 = vand.u32 %v24, 4294901760
  %2091 = vmatpush.msra.mxu0 %v2090
  %v2092 = vand.u32 %v167, 4294901760
  %2093 = vmatpush.msra.mxu0 %v2092
  %v2094 = vand.u32 %v166, 4294901760
  %2095 = vmatpush.msra.mxu0 %v2094
  %v2096 = vand.u32 %v134, 4294901760
  %2097 = vmatpush.msra.mxu0 %v2096
  %v2098 = vand.u32 %v133, 4294901760
  %2099 = vmatpush.msra.mxu0 %v2098
  %v2100 = vand.u32 %v101, 4294901760
  %2101 = vmatpush.msra.mxu0 %v2100
  %v2102 = vand.u32 %v100, 4294901760
  %2103 = vmatpush.msra.mxu0 %v2102
  %v2104 = vand.u32 %v68, 4294901760
  %2105 = vmatpush.msra.mxu0 %v2104
  %v2106 = vand.u32 %v67, 4294901760
  %2107 = vmatpush.msra.mxu0 %v2106
  %v2108 = vand.u32 %v275, 4294901760
  %2109 = vmatmul.f32.gmra.mxu0 %v2108
  %v2110 = vpop.f32.mrf.mxu0
  %v2111 = vadd.f32 %v2062, %v2110
  %v2112 = vand.u32 %v277, 4294901760
  %2113 = vmatmul.f32.gmra.mxu0 %v2112
  %v2114 = vpop.f32.mrf.mxu0
  %v2115 = vadd.f32 %v2066, %v2114
  %v2116 = vand.u32 %v279, 4294901760
  %2117 = vmatmul.f32.gmra.mxu0 %v2116
  %v2118 = vpop.f32.mrf.mxu0
  %v2119 = vadd.f32 %v2070, %v2118
  %v2120 = vand.u32 %v281, 4294901760
  %2121 = vmatmul.f32.gmra.mxu0 %v2120
  %v2122 = vpop.f32.mrf.mxu0
  %v2123 = vadd.f32 %v2074, %v2122
  %2124 = vdwg.mxu0
  %2125 = vmatpush.msra.mxu0 0.0
  %2126 = vmatpush.msra.mxu0 0.0
  %2127 = vmatpush.msra.mxu0 0.0
  %2128 = vmatpush.msra.mxu0 0.0
  %2129 = vmatpush.msra.mxu0 0.0
  %2130 = vmatpush.msra.mxu0 0.0
  %2131 = vmatpush.msra.mxu0 0.0
  %2132 = vmatpush.msra.mxu0 0.0
  %2133 = vmatpush.msra.mxu0 0.0
  %2134 = vmatpush.msra.mxu0 0.0
  %2135 = vmatpush.msra.mxu0 0.0
  %2136 = vmatpush.msra.mxu0 0.0
  %2137 = vmatpush.msra.mxu0 0.0
  %2138 = vmatpush.msra.mxu0 0.0
  %v2139 = vand.u32 %v56, 4294901760
  %2140 = vmatpush.msra.mxu0 %v2139
  %v2141 = vand.u32 %v55, 4294901760
  %2142 = vmatpush.msra.mxu0 %v2141
  %v2143 = vand.u32 %v308, 4294901760
  %v2144 = vsub.f32 %v308, %v2143
  %v2145 = vand.u32 %v2144, 4294901760
  %v2146 = vsub.f32 %v2144, %v2145
  %v2147 = vand.u32 %v2146, 4294901760
  %2148 = vmatmul.f32.gmra.mxu0 %v2147
  %v2149 = vpop.f32.mrf.mxu0
  %v2150 = vadd.f32 %v2111, %v2149
  %v2151 = vand.u32 %v311, 4294901760
  %v2152 = vsub.f32 %v311, %v2151
  %v2153 = vand.u32 %v2152, 4294901760
  %v2154 = vsub.f32 %v2152, %v2153
  %v2155 = vand.u32 %v2154, 4294901760
  %2156 = vmatmul.f32.gmra.mxu0 %v2155
  %v2157 = vpop.f32.mrf.mxu0
  %v2158 = vadd.f32 %v2115, %v2157
  %v2159 = vand.u32 %v314, 4294901760
  %v2160 = vsub.f32 %v314, %v2159
  %v2161 = vand.u32 %v2160, 4294901760
  %v2162 = vsub.f32 %v2160, %v2161
  %v2163 = vand.u32 %v2162, 4294901760
  %2164 = vmatmul.f32.gmra.mxu0 %v2163
  %v2165 = vpop.f32.mrf.mxu0
  %v2166 = vadd.f32 %v2119, %v2165
  %v2167 = vand.u32 %v317, 4294901760
  %v2168 = vsub.f32 %v317, %v2167
  %v2169 = vand.u32 %v2168, 4294901760
  %v2170 = vsub.f32 %v2168, %v2169
  %v2171 = vand.u32 %v2170, 4294901760
  %2172 = vmatmul.f32.gmra.mxu0 %v2171
  %v2173 = vpop.f32.mrf.mxu0
  %v2174 = vadd.f32 %v2123, %v2173
  %2175 = vdwg.mxu0
  %2176 = vmatpush.msra.mxu0 0.0
  %2177 = vmatpush.msra.mxu0 0.0
  %2178 = vmatpush.msra.mxu0 0.0
  %2179 = vmatpush.msra.mxu0 0.0
  %2180 = vmatpush.msra.mxu0 0.0
  %2181 = vmatpush.msra.mxu0 0.0
  %2182 = vmatpush.msra.mxu0 0.0
  %2183 = vmatpush.msra.mxu0 0.0
  %2184 = vmatpush.msra.mxu0 0.0
  %2185 = vmatpush.msra.mxu0 0.0
  %2186 = vmatpush.msra.mxu0 0.0
  %2187 = vmatpush.msra.mxu0 0.0
  %2188 = vmatpush.msra.mxu0 0.0
  %2189 = vmatpush.msra.mxu0 0.0
  %v2190 = vand.u32 %v56, 4294901760
  %v2191 = vsub.f32 %v56, %v2190
  %v2192 = vand.u32 %v2191, 4294901760
  %v2193 = vsub.f32 %v2191, %v2192
  %v2194 = vand.u32 %v2193, 4294901760
  %2195 = vmatpush.msra.mxu0 %v2194
  %v2196 = vand.u32 %v55, 4294901760
  %v2197 = vsub.f32 %v55, %v2196
  %v2198 = vand.u32 %v2197, 4294901760
  %v2199 = vsub.f32 %v2197, %v2198
  %v2200 = vand.u32 %v2199, 4294901760
  %2201 = vmatpush.msra.mxu0 %v2200
  %v2202 = vand.u32 %v308, 4294901760
  %2203 = vmatmul.f32.gmra.mxu0 %v2202
  %v2204 = vpop.f32.mrf.mxu0
  %v2205 = vadd.f32 %v2150, %v2204
  %v2206 = vand.u32 %v311, 4294901760
  %2207 = vmatmul.f32.gmra.mxu0 %v2206
  %v2208 = vpop.f32.mrf.mxu0
  %v2209 = vadd.f32 %v2158, %v2208
  %v2210 = vand.u32 %v314, 4294901760
  %2211 = vmatmul.f32.gmra.mxu0 %v2210
  %v2212 = vpop.f32.mrf.mxu0
  %v2213 = vadd.f32 %v2166, %v2212
  %v2214 = vand.u32 %v317, 4294901760
  %2215 = vmatmul.f32.gmra.mxu0 %v2214
  %v2216 = vpop.f32.mrf.mxu0
  %v2217 = vadd.f32 %v2174, %v2216
  %2218 = vdwg.mxu0
  %2219 = vmatpush.msra.mxu0 0.0
  %2220 = vmatpush.msra.mxu0 0.0
  %2221 = vmatpush.msra.mxu0 0.0
  %2222 = vmatpush.msra.mxu0 0.0
  %2223 = vmatpush.msra.mxu0 0.0
  %2224 = vmatpush.msra.mxu0 0.0
  %2225 = vmatpush.msra.mxu0 0.0
  %2226 = vmatpush.msra.mxu0 0.0
  %2227 = vmatpush.msra.mxu0 0.0
  %2228 = vmatpush.msra.mxu0 0.0
  %2229 = vmatpush.msra.mxu0 0.0
  %2230 = vmatpush.msra.mxu0 0.0
  %2231 = vmatpush.msra.mxu0 0.0
  %2232 = vmatpush.msra.mxu0 0.0
  %v2233 = vand.u32 %v56, 4294901760
  %v2234 = vsub.f32 %v56, %v2233
  %2235 = vmatpush.msra.mxu0 %v2234
  %v2236 = vand.u32 %v55, 4294901760
  %v2237 = vsub.f32 %v55, %v2236
  %2238 = vmatpush.msra.mxu0 %v2237
  %v2239 = vand.u32 %v308, 4294901760
  %v2240 = vsub.f32 %v308, %v2239
  %2241 = vmatmul.f32.gmra.mxu0 %v2240
  %v2242 = vpop.f32.mrf.mxu0
  %v2243 = vadd.f32 %v2205, %v2242
  %v2244 = vand.u32 %v311, 4294901760
  %v2245 = vsub.f32 %v311, %v2244
  %2246 = vmatmul.f32.gmra.mxu0 %v2245
  %v2247 = vpop.f32.mrf.mxu0
  %v2248 = vadd.f32 %v2209, %v2247
  %v2249 = vand.u32 %v314, 4294901760
  %v2250 = vsub.f32 %v314, %v2249
  %2251 = vmatmul.f32.gmra.mxu0 %v2250
  %v2252 = vpop.f32.mrf.mxu0
  %v2253 = vadd.f32 %v2213, %v2252
  %v2254 = vand.u32 %v317, 4294901760
  %v2255 = vsub.f32 %v317, %v2254
  %2256 = vmatmul.f32.gmra.mxu0 %v2255
  %v2257 = vpop.f32.mrf.mxu0
  %v2258 = vadd.f32 %v2217, %v2257
  %2259 = vdwg.mxu0
  %2260 = vmatpush.msra.mxu0 0.0
  %2261 = vmatpush.msra.mxu0 0.0
  %2262 = vmatpush.msra.mxu0 0.0
  %2263 = vmatpush.msra.mxu0 0.0
  %2264 = vmatpush.msra.mxu0 0.0
  %2265 = vmatpush.msra.mxu0 0.0
  %2266 = vmatpush.msra.mxu0 0.0
  %2267 = vmatpush.msra.mxu0 0.0
  %2268 = vmatpush.msra.mxu0 0.0
  %2269 = vmatpush.msra.mxu0 0.0
  %2270 = vmatpush.msra.mxu0 0.0
  %2271 = vmatpush.msra.mxu0 0.0
  %2272 = vmatpush.msra.mxu0 0.0
  %2273 = vmatpush.msra.mxu0 0.0
  %v2274 = vand.u32 %v56, 4294901760
  %2275 = vmatpush.msra.mxu0 %v2274
  %v2276 = vand.u32 %v55, 4294901760
  %2277 = vmatpush.msra.mxu0 %v2276
  %v2278 = vand.u32 %v308, 4294901760
  %v2279 = vsub.f32 %v308, %v2278
  %v2280 = vand.u32 %v2279, 4294901760
  %2281 = vmatmul.f32.gmra.mxu0 %v2280
  %v2282 = vpop.f32.mrf.mxu0
  %v2283 = vadd.f32 %v2243, %v2282
  %v2284 = vand.u32 %v311, 4294901760
  %v2285 = vsub.f32 %v311, %v2284
  %v2286 = vand.u32 %v2285, 4294901760
  %2287 = vmatmul.f32.gmra.mxu0 %v2286
  %v2288 = vpop.f32.mrf.mxu0
  %v2289 = vadd.f32 %v2248, %v2288
  %v2290 = vand.u32 %v314, 4294901760
  %v2291 = vsub.f32 %v314, %v2290
  %v2292 = vand.u32 %v2291, 4294901760
  %2293 = vmatmul.f32.gmra.mxu0 %v2292
  %v2294 = vpop.f32.mrf.mxu0
  %v2295 = vadd.f32 %v2253, %v2294
  %v2296 = vand.u32 %v317, 4294901760
  %v2297 = vsub.f32 %v317, %v2296
  %v2298 = vand.u32 %v2297, 4294901760
  %2299 = vmatmul.f32.gmra.mxu0 %v2298
  %v2300 = vpop.f32.mrf.mxu0
  %v2301 = vadd.f32 %v2258, %v2300
  %2302 = vdwg.mxu0
  %2303 = vmatpush.msra.mxu0 0.0
  %2304 = vmatpush.msra.mxu0 0.0
  %2305 = vmatpush.msra.mxu0 0.0
  %2306 = vmatpush.msra.mxu0 0.0
  %2307 = vmatpush.msra.mxu0 0.0
  %2308 = vmatpush.msra.mxu0 0.0
  %2309 = vmatpush.msra.mxu0 0.0
  %2310 = vmatpush.msra.mxu0 0.0
  %2311 = vmatpush.msra.mxu0 0.0
  %2312 = vmatpush.msra.mxu0 0.0
  %2313 = vmatpush.msra.mxu0 0.0
  %2314 = vmatpush.msra.mxu0 0.0
  %2315 = vmatpush.msra.mxu0 0.0
  %2316 = vmatpush.msra.mxu0 0.0
  %v2317 = vand.u32 %v56, 4294901760
  %v2318 = vsub.f32 %v56, %v2317
  %v2319 = vand.u32 %v2318, 4294901760
  %2320 = vmatpush.msra.mxu0 %v2319
  %v2321 = vand.u32 %v55, 4294901760
  %v2322 = vsub.f32 %v55, %v2321
  %v2323 = vand.u32 %v2322, 4294901760
  %2324 = vmatpush.msra.mxu0 %v2323
  %v2325 = vand.u32 %v308, 4294901760
  %2326 = vmatmul.f32.gmra.mxu0 %v2325
  %v2327 = vpop.f32.mrf.mxu0
  %v2328 = vadd.f32 %v2283, %v2327
  %v2329 = vand.u32 %v311, 4294901760
  %2330 = vmatmul.f32.gmra.mxu0 %v2329
  %v2331 = vpop.f32.mrf.mxu0
  %v2332 = vadd.f32 %v2289, %v2331
  %v2333 = vand.u32 %v314, 4294901760
  %2334 = vmatmul.f32.gmra.mxu0 %v2333
  %v2335 = vpop.f32.mrf.mxu0
  %v2336 = vadd.f32 %v2295, %v2335
  %v2337 = vand.u32 %v317, 4294901760
  %2338 = vmatmul.f32.gmra.mxu0 %v2337
  %v2339 = vpop.f32.mrf.mxu0
  %v2340 = vadd.f32 %v2301, %v2339
  %2341 = vdwg.mxu0
  %2342 = vmatpush.msra.mxu0 0.0
  %2343 = vmatpush.msra.mxu0 0.0
  %2344 = vmatpush.msra.mxu0 0.0
  %2345 = vmatpush.msra.mxu0 0.0
  %2346 = vmatpush.msra.mxu0 0.0
  %2347 = vmatpush.msra.mxu0 0.0
  %2348 = vmatpush.msra.mxu0 0.0
  %2349 = vmatpush.msra.mxu0 0.0
  %2350 = vmatpush.msra.mxu0 0.0
  %2351 = vmatpush.msra.mxu0 0.0
  %2352 = vmatpush.msra.mxu0 0.0
  %2353 = vmatpush.msra.mxu0 0.0
  %2354 = vmatpush.msra.mxu0 0.0
  %2355 = vmatpush.msra.mxu0 0.0
  %v2356 = vand.u32 %v56, 4294901760
  %2357 = vmatpush.msra.mxu0 %v2356
  %v2358 = vand.u32 %v55, 4294901760
  %2359 = vmatpush.msra.mxu0 %v2358
  %v2360 = vand.u32 %v308, 4294901760
  %2361 = vmatmul.f32.gmra.mxu0 %v2360
  %v2362 = vpop.f32.mrf.mxu0
  %v2363 = vadd.f32 %v2328, %v2362
  %v2364 = vand.u32 %v311, 4294901760
  %2365 = vmatmul.f32.gmra.mxu0 %v2364
  %v2366 = vpop.f32.mrf.mxu0
  %v2367 = vadd.f32 %v2332, %v2366
  %v2368 = vand.u32 %v314, 4294901760
  %2369 = vmatmul.f32.gmra.mxu0 %v2368
  %v2370 = vpop.f32.mrf.mxu0
  %v2371 = vadd.f32 %v2336, %v2370
  %v2372 = vand.u32 %v317, 4294901760
  %2373 = vmatmul.f32.gmra.mxu0 %v2372
  %v2374 = vpop.f32.mrf.mxu0
  %v2375 = vadd.f32 %v2340, %v2374
  %2376 = vdwg.mxu0
  %v2377 = vand.u32 %v266, 4294901760
  %2378 = vmatpush.msra.mxu0 %v2377
  %v2379 = vand.u32 %v265, 4294901760
  %2380 = vmatpush.msra.mxu0 %v2379
  %v2381 = vand.u32 %v233, 4294901760
  %2382 = vmatpush.msra.mxu0 %v2381
  %v2383 = vand.u32 %v232, 4294901760
  %2384 = vmatpush.msra.mxu0 %v2383
  %v2385 = vand.u32 %v200, 4294901760
  %2386 = vmatpush.msra.mxu0 %v2385
  %v2387 = vand.u32 %v199, 4294901760
  %2388 = vmatpush.msra.mxu0 %v2387
  %v2389 = vand.u32 %v27, 4294901760
  %2390 = vmatpush.msra.mxu0 %v2389
  %v2391 = vand.u32 %v25, 4294901760
  %2392 = vmatpush.msra.mxu0 %v2391
  %v2393 = vand.u32 %v155, 4294901760
  %2394 = vmatpush.msra.mxu0 %v2393
  %v2395 = vand.u32 %v154, 4294901760
  %2396 = vmatpush.msra.mxu0 %v2395
  %v2397 = vand.u32 %v122, 4294901760
  %2398 = vmatpush.msra.mxu0 %v2397
  %v2399 = vand.u32 %v121, 4294901760
  %2400 = vmatpush.msra.mxu0 %v2399
  %v2401 = vand.u32 %v89, 4294901760
  %2402 = vmatpush.msra.mxu0 %v2401
  %v2403 = vand.u32 %v88, 4294901760
  %2404 = vmatpush.msra.mxu0 %v2403
  %v2405 = vand.u32 %v56, 4294901760
  %2406 = vmatpush.msra.mxu0 %v2405
  %v2407 = vand.u32 %v55, 4294901760
  %2408 = vmatpush.msra.mxu0 %v2407
  %v2409 = vand.u32 %v275, 4294901760
  %v2410 = vsub.f32 %v275, %v2409
  %v2411 = vand.u32 %v2410, 4294901760
  %v2412 = vsub.f32 %v2410, %v2411
  %v2413 = vand.u32 %v2412, 4294901760
  %2414 = vmatmul.f32.gmra.mxu0 %v2413
  %v2415 = vpop.f32.mrf.mxu0
  %v2416 = vadd.f32 %v290, %v2415
  %v2417 = vand.u32 %v277, 4294901760
  %v2418 = vsub.f32 %v277, %v2417
  %v2419 = vand.u32 %v2418, 4294901760
  %v2420 = vsub.f32 %v2418, %v2419
  %v2421 = vand.u32 %v2420, 4294901760
  %2422 = vmatmul.f32.gmra.mxu0 %v2421
  %v2423 = vpop.f32.mrf.mxu0
  %v2424 = vadd.f32 %v295, %v2423
  %v2425 = vand.u32 %v279, 4294901760
  %v2426 = vsub.f32 %v279, %v2425
  %v2427 = vand.u32 %v2426, 4294901760
  %v2428 = vsub.f32 %v2426, %v2427
  %v2429 = vand.u32 %v2428, 4294901760
  %2430 = vmatmul.f32.gmra.mxu0 %v2429
  %v2431 = vpop.f32.mrf.mxu0
  %v2432 = vadd.f32 %v300, %v2431
  %v2433 = vand.u32 %v281, 4294901760
  %v2434 = vsub.f32 %v281, %v2433
  %v2435 = vand.u32 %v2434, 4294901760
  %v2436 = vsub.f32 %v2434, %v2435
  %v2437 = vand.u32 %v2436, 4294901760
  %2438 = vmatmul.f32.gmra.mxu0 %v2437
  %v2439 = vpop.f32.mrf.mxu0
  %v2440 = vadd.f32 %v305, %v2439
  %2441 = vdwg.mxu0
  %v2442 = vand.u32 %v266, 4294901760
  %v2443 = vsub.f32 %v266, %v2442
  %v2444 = vand.u32 %v2443, 4294901760
  %v2445 = vsub.f32 %v2443, %v2444
  %v2446 = vand.u32 %v2445, 4294901760
  %2447 = vmatpush.msra.mxu0 %v2446
  %v2448 = vand.u32 %v265, 4294901760
  %v2449 = vsub.f32 %v265, %v2448
  %v2450 = vand.u32 %v2449, 4294901760
  %v2451 = vsub.f32 %v2449, %v2450
  %v2452 = vand.u32 %v2451, 4294901760
  %2453 = vmatpush.msra.mxu0 %v2452
  %v2454 = vand.u32 %v233, 4294901760
  %v2455 = vsub.f32 %v233, %v2454
  %v2456 = vand.u32 %v2455, 4294901760
  %v2457 = vsub.f32 %v2455, %v2456
  %v2458 = vand.u32 %v2457, 4294901760
  %2459 = vmatpush.msra.mxu0 %v2458
  %v2460 = vand.u32 %v232, 4294901760
  %v2461 = vsub.f32 %v232, %v2460
  %v2462 = vand.u32 %v2461, 4294901760
  %v2463 = vsub.f32 %v2461, %v2462
  %v2464 = vand.u32 %v2463, 4294901760
  %2465 = vmatpush.msra.mxu0 %v2464
  %v2466 = vand.u32 %v200, 4294901760
  %v2467 = vsub.f32 %v200, %v2466
  %v2468 = vand.u32 %v2467, 4294901760
  %v2469 = vsub.f32 %v2467, %v2468
  %v2470 = vand.u32 %v2469, 4294901760
  %2471 = vmatpush.msra.mxu0 %v2470
  %v2472 = vand.u32 %v199, 4294901760
  %v2473 = vsub.f32 %v199, %v2472
  %v2474 = vand.u32 %v2473, 4294901760
  %v2475 = vsub.f32 %v2473, %v2474
  %v2476 = vand.u32 %v2475, 4294901760
  %2477 = vmatpush.msra.mxu0 %v2476
  %v2478 = vand.u32 %v27, 4294901760
  %v2479 = vsub.f32 %v27, %v2478
  %v2480 = vand.u32 %v2479, 4294901760
  %v2481 = vsub.f32 %v2479, %v2480
  %v2482 = vand.u32 %v2481, 4294901760
  %2483 = vmatpush.msra.mxu0 %v2482
  %v2484 = vand.u32 %v25, 4294901760
  %v2485 = vsub.f32 %v25, %v2484
  %v2486 = vand.u32 %v2485, 4294901760
  %v2487 = vsub.f32 %v2485, %v2486
  %v2488 = vand.u32 %v2487, 4294901760
  %2489 = vmatpush.msra.mxu0 %v2488
  %v2490 = vand.u32 %v155, 4294901760
  %v2491 = vsub.f32 %v155, %v2490
  %v2492 = vand.u32 %v2491, 4294901760
  %v2493 = vsub.f32 %v2491, %v2492
  %v2494 = vand.u32 %v2493, 4294901760
  %2495 = vmatpush.msra.mxu0 %v2494
  %v2496 = vand.u32 %v154, 4294901760
  %v2497 = vsub.f32 %v154, %v2496
  %v2498 = vand.u32 %v2497, 4294901760
  %v2499 = vsub.f32 %v2497, %v2498
  %v2500 = vand.u32 %v2499, 4294901760
  %2501 = vmatpush.msra.mxu0 %v2500
  %v2502 = vand.u32 %v122, 4294901760
  %v2503 = vsub.f32 %v122, %v2502
  %v2504 = vand.u32 %v2503, 4294901760
  %v2505 = vsub.f32 %v2503, %v2504
  %v2506 = vand.u32 %v2505, 4294901760
  %2507 = vmatpush.msra.mxu0 %v2506
  %v2508 = vand.u32 %v121, 4294901760
  %v2509 = vsub.f32 %v121, %v2508
  %v2510 = vand.u32 %v2509, 4294901760
  %v2511 = vsub.f32 %v2509, %v2510
  %v2512 = vand.u32 %v2511, 4294901760
  %2513 = vmatpush.msra.mxu0 %v2512
  %v2514 = vand.u32 %v89, 4294901760
  %v2515 = vsub.f32 %v89, %v2514
  %v2516 = vand.u32 %v2515, 4294901760
  %v2517 = vsub.f32 %v2515, %v2516
  %v2518 = vand.u32 %v2517, 4294901760
  %2519 = vmatpush.msra.mxu0 %v2518
  %v2520 = vand.u32 %v88, 4294901760
  %v2521 = vsub.f32 %v88, %v2520
  %v2522 = vand.u32 %v2521, 4294901760
  %v2523 = vsub.f32 %v2521, %v2522
  %v2524 = vand.u32 %v2523, 4294901760
  %2525 = vmatpush.msra.mxu0 %v2524
  %v2526 = vand.u32 %v56, 4294901760
  %v2527 = vsub.f32 %v56, %v2526
  %v2528 = vand.u32 %v2527, 4294901760
  %v2529 = vsub.f32 %v2527, %v2528
  %v2530 = vand.u32 %v2529, 4294901760
  %2531 = vmatpush.msra.mxu0 %v2530
  %v2532 = vand.u32 %v55, 4294901760
  %v2533 = vsub.f32 %v55, %v2532
  %v2534 = vand.u32 %v2533, 4294901760
  %v2535 = vsub.f32 %v2533, %v2534
  %v2536 = vand.u32 %v2535, 4294901760
  %2537 = vmatpush.msra.mxu0 %v2536
  %v2538 = vand.u32 %v275, 4294901760
  %2539 = vmatmul.f32.gmra.mxu0 %v2538
  %v2540 = vpop.f32.mrf.mxu0
  %v2541 = vadd.f32 %v2416, %v2540
  %v2542 = vand.u32 %v277, 4294901760
  %2543 = vmatmul.f32.gmra.mxu0 %v2542
  %v2544 = vpop.f32.mrf.mxu0
  %v2545 = vadd.f32 %v2424, %v2544
  %v2546 = vand.u32 %v279, 4294901760
  %2547 = vmatmul.f32.gmra.mxu0 %v2546
  %v2548 = vpop.f32.mrf.mxu0
  %v2549 = vadd.f32 %v2432, %v2548
  %v2550 = vand.u32 %v281, 4294901760
  %2551 = vmatmul.f32.gmra.mxu0 %v2550
  %v2552 = vpop.f32.mrf.mxu0
  %v2553 = vadd.f32 %v2440, %v2552
  %2554 = vdwg.mxu0
  %v2555 = vand.u32 %v266, 4294901760
  %v2556 = vsub.f32 %v266, %v2555
  %2557 = vmatpush.msra.mxu0 %v2556
  %v2558 = vand.u32 %v265, 4294901760
  %v2559 = vsub.f32 %v265, %v2558
  %2560 = vmatpush.msra.mxu0 %v2559
  %v2561 = vand.u32 %v233, 4294901760
  %v2562 = vsub.f32 %v233, %v2561
  %2563 = vmatpush.msra.mxu0 %v2562
  %v2564 = vand.u32 %v232, 4294901760
  %v2565 = vsub.f32 %v232, %v2564
  %2566 = vmatpush.msra.mxu0 %v2565
  %v2567 = vand.u32 %v200, 4294901760
  %v2568 = vsub.f32 %v200, %v2567
  %2569 = vmatpush.msra.mxu0 %v2568
  %v2570 = vand.u32 %v199, 4294901760
  %v2571 = vsub.f32 %v199, %v2570
  %2572 = vmatpush.msra.mxu0 %v2571
  %v2573 = vand.u32 %v27, 4294901760
  %v2574 = vsub.f32 %v27, %v2573
  %2575 = vmatpush.msra.mxu0 %v2574
  %v2576 = vand.u32 %v25, 4294901760
  %v2577 = vsub.f32 %v25, %v2576
  %2578 = vmatpush.msra.mxu0 %v2577
  %v2579 = vand.u32 %v155, 4294901760
  %v2580 = vsub.f32 %v155, %v2579
  %2581 = vmatpush.msra.mxu0 %v2580
  %v2582 = vand.u32 %v154, 4294901760
  %v2583 = vsub.f32 %v154, %v2582
  %2584 = vmatpush.msra.mxu0 %v2583
  %v2585 = vand.u32 %v122, 4294901760
  %v2586 = vsub.f32 %v122, %v2585
  %2587 = vmatpush.msra.mxu0 %v2586
  %v2588 = vand.u32 %v121, 4294901760
  %v2589 = vsub.f32 %v121, %v2588
  %2590 = vmatpush.msra.mxu0 %v2589
  %v2591 = vand.u32 %v89, 4294901760
  %v2592 = vsub.f32 %v89, %v2591
  %2593 = vmatpush.msra.mxu0 %v2592
  %v2594 = vand.u32 %v88, 4294901760
  %v2595 = vsub.f32 %v88, %v2594
  %2596 = vmatpush.msra.mxu0 %v2595
  %v2597 = vand.u32 %v56, 4294901760
  %v2598 = vsub.f32 %v56, %v2597
  %2599 = vmatpush.msra.mxu0 %v2598
  %v2600 = vand.u32 %v55, 4294901760
  %v2601 = vsub.f32 %v55, %v2600
  %2602 = vmatpush.msra.mxu0 %v2601
  %v2603 = vand.u32 %v275, 4294901760
  %v2604 = vsub.f32 %v275, %v2603
  %2605 = vmatmul.f32.gmra.mxu0 %v2604
  %v2606 = vpop.f32.mrf.mxu0
  %v2607 = vadd.f32 %v2541, %v2606
  %v2608 = vand.u32 %v277, 4294901760
  %v2609 = vsub.f32 %v277, %v2608
  %2610 = vmatmul.f32.gmra.mxu0 %v2609
  %v2611 = vpop.f32.mrf.mxu0
  %v2612 = vadd.f32 %v2545, %v2611
  %v2613 = vand.u32 %v279, 4294901760
  %v2614 = vsub.f32 %v279, %v2613
  %2615 = vmatmul.f32.gmra.mxu0 %v2614
  %v2616 = vpop.f32.mrf.mxu0
  %v2617 = vadd.f32 %v2549, %v2616
  %v2618 = vand.u32 %v281, 4294901760
  %v2619 = vsub.f32 %v281, %v2618
  %2620 = vmatmul.f32.gmra.mxu0 %v2619
  %v2621 = vpop.f32.mrf.mxu0
  %v2622 = vadd.f32 %v2553, %v2621
  %2623 = vdwg.mxu0
  %v2624 = vand.u32 %v266, 4294901760
  %2625 = vmatpush.msra.mxu0 %v2624
  %v2626 = vand.u32 %v265, 4294901760
  %2627 = vmatpush.msra.mxu0 %v2626
  %v2628 = vand.u32 %v233, 4294901760
  %2629 = vmatpush.msra.mxu0 %v2628
  %v2630 = vand.u32 %v232, 4294901760
  %2631 = vmatpush.msra.mxu0 %v2630
  %v2632 = vand.u32 %v200, 4294901760
  %2633 = vmatpush.msra.mxu0 %v2632
  %v2634 = vand.u32 %v199, 4294901760
  %2635 = vmatpush.msra.mxu0 %v2634
  %v2636 = vand.u32 %v27, 4294901760
  %2637 = vmatpush.msra.mxu0 %v2636
  %v2638 = vand.u32 %v25, 4294901760
  %2639 = vmatpush.msra.mxu0 %v2638
  %v2640 = vand.u32 %v155, 4294901760
  %2641 = vmatpush.msra.mxu0 %v2640
  %v2642 = vand.u32 %v154, 4294901760
  %2643 = vmatpush.msra.mxu0 %v2642
  %v2644 = vand.u32 %v122, 4294901760
  %2645 = vmatpush.msra.mxu0 %v2644
  %v2646 = vand.u32 %v121, 4294901760
  %2647 = vmatpush.msra.mxu0 %v2646
  %v2648 = vand.u32 %v89, 4294901760
  %2649 = vmatpush.msra.mxu0 %v2648
  %v2650 = vand.u32 %v88, 4294901760
  %2651 = vmatpush.msra.mxu0 %v2650
  %v2652 = vand.u32 %v56, 4294901760
  %2653 = vmatpush.msra.mxu0 %v2652
  %v2654 = vand.u32 %v55, 4294901760
  %2655 = vmatpush.msra.mxu0 %v2654
  %v2656 = vand.u32 %v275, 4294901760
  %v2657 = vsub.f32 %v275, %v2656
  %v2658 = vand.u32 %v2657, 4294901760
  %2659 = vmatmul.f32.gmra.mxu0 %v2658
  %v2660 = vpop.f32.mrf.mxu0
  %v2661 = vadd.f32 %v2607, %v2660
  %v2662 = vand.u32 %v277, 4294901760
  %v2663 = vsub.f32 %v277, %v2662
  %v2664 = vand.u32 %v2663, 4294901760
  %2665 = vmatmul.f32.gmra.mxu0 %v2664
  %v2666 = vpop.f32.mrf.mxu0
  %v2667 = vadd.f32 %v2612, %v2666
  %v2668 = vand.u32 %v279, 4294901760
  %v2669 = vsub.f32 %v279, %v2668
  %v2670 = vand.u32 %v2669, 4294901760
  %2671 = vmatmul.f32.gmra.mxu0 %v2670
  %v2672 = vpop.f32.mrf.mxu0
  %v2673 = vadd.f32 %v2617, %v2672
  %v2674 = vand.u32 %v281, 4294901760
  %v2675 = vsub.f32 %v281, %v2674
  %v2676 = vand.u32 %v2675, 4294901760
  %2677 = vmatmul.f32.gmra.mxu0 %v2676
  %v2678 = vpop.f32.mrf.mxu0
  %v2679 = vadd.f32 %v2622, %v2678
  %2680 = vdwg.mxu0
  %v2681 = vand.u32 %v266, 4294901760
  %v2682 = vsub.f32 %v266, %v2681
  %v2683 = vand.u32 %v2682, 4294901760
  %2684 = vmatpush.msra.mxu0 %v2683
  %v2685 = vand.u32 %v265, 4294901760
  %v2686 = vsub.f32 %v265, %v2685
  %v2687 = vand.u32 %v2686, 4294901760
  %2688 = vmatpush.msra.mxu0 %v2687
  %v2689 = vand.u32 %v233, 4294901760
  %v2690 = vsub.f32 %v233, %v2689
  %v2691 = vand.u32 %v2690, 4294901760
  %2692 = vmatpush.msra.mxu0 %v2691
  %v2693 = vand.u32 %v232, 4294901760
  %v2694 = vsub.f32 %v232, %v2693
  %v2695 = vand.u32 %v2694, 4294901760
  %2696 = vmatpush.msra.mxu0 %v2695
  %v2697 = vand.u32 %v200, 4294901760
  %v2698 = vsub.f32 %v200, %v2697
  %v2699 = vand.u32 %v2698, 4294901760
  %2700 = vmatpush.msra.mxu0 %v2699
  %v2701 = vand.u32 %v199, 4294901760
  %v2702 = vsub.f32 %v199, %v2701
  %v2703 = vand.u32 %v2702, 4294901760
  %2704 = vmatpush.msra.mxu0 %v2703
  %v2705 = vand.u32 %v27, 4294901760
  %v2706 = vsub.f32 %v27, %v2705
  %v2707 = vand.u32 %v2706, 4294901760
  %2708 = vmatpush.msra.mxu0 %v2707
  %v2709 = vand.u32 %v25, 4294901760
  %v2710 = vsub.f32 %v25, %v2709
  %v2711 = vand.u32 %v2710, 4294901760
  %2712 = vmatpush.msra.mxu0 %v2711
  %v2713 = vand.u32 %v155, 4294901760
  %v2714 = vsub.f32 %v155, %v2713
  %v2715 = vand.u32 %v2714, 4294901760
  %2716 = vmatpush.msra.mxu0 %v2715
  %v2717 = vand.u32 %v154, 4294901760
  %v2718 = vsub.f32 %v154, %v2717
  %v2719 = vand.u32 %v2718, 4294901760
  %2720 = vmatpush.msra.mxu0 %v2719
  %v2721 = vand.u32 %v122, 4294901760
  %v2722 = vsub.f32 %v122, %v2721
  %v2723 = vand.u32 %v2722, 4294901760
  %2724 = vmatpush.msra.mxu0 %v2723
  %v2725 = vand.u32 %v121, 4294901760
  %v2726 = vsub.f32 %v121, %v2725
  %v2727 = vand.u32 %v2726, 4294901760
  %2728 = vmatpush.msra.mxu0 %v2727
  %v2729 = vand.u32 %v89, 4294901760
  %v2730 = vsub.f32 %v89, %v2729
  %v2731 = vand.u32 %v2730, 4294901760
  %2732 = vmatpush.msra.mxu0 %v2731
  %v2733 = vand.u32 %v88, 4294901760
  %v2734 = vsub.f32 %v88, %v2733
  %v2735 = vand.u32 %v2734, 4294901760
  %2736 = vmatpush.msra.mxu0 %v2735
  %v2737 = vand.u32 %v56, 4294901760
  %v2738 = vsub.f32 %v56, %v2737
  %v2739 = vand.u32 %v2738, 4294901760
  %2740 = vmatpush.msra.mxu0 %v2739
  %v2741 = vand.u32 %v55, 4294901760
  %v2742 = vsub.f32 %v55, %v2741
  %v2743 = vand.u32 %v2742, 4294901760
  %2744 = vmatpush.msra.mxu0 %v2743
  %v2745 = vand.u32 %v275, 4294901760
  %2746 = vmatmul.f32.gmra.mxu0 %v2745
  %v2747 = vpop.f32.mrf.mxu0
  %v2748 = vadd.f32 %v2661, %v2747
  %v2749 = vand.u32 %v277, 4294901760
  %2750 = vmatmul.f32.gmra.mxu0 %v2749
  %v2751 = vpop.f32.mrf.mxu0
  %v2752 = vadd.f32 %v2667, %v2751
  %v2753 = vand.u32 %v279, 4294901760
  %2754 = vmatmul.f32.gmra.mxu0 %v2753
  %v2755 = vpop.f32.mrf.mxu0
  %v2756 = vadd.f32 %v2673, %v2755
  %v2757 = vand.u32 %v281, 4294901760
  %2758 = vmatmul.f32.gmra.mxu0 %v2757
  %v2759 = vpop.f32.mrf.mxu0
  %v2760 = vadd.f32 %v2679, %v2759
  %2761 = vdwg.mxu0
  %v2762 = vand.u32 %v266, 4294901760
  %2763 = vmatpush.msra.mxu0 %v2762
  %v2764 = vand.u32 %v265, 4294901760
  %2765 = vmatpush.msra.mxu0 %v2764
  %v2766 = vand.u32 %v233, 4294901760
  %2767 = vmatpush.msra.mxu0 %v2766
  %v2768 = vand.u32 %v232, 4294901760
  %2769 = vmatpush.msra.mxu0 %v2768
  %v2770 = vand.u32 %v200, 4294901760
  %2771 = vmatpush.msra.mxu0 %v2770
  %v2772 = vand.u32 %v199, 4294901760
  %2773 = vmatpush.msra.mxu0 %v2772
  %v2774 = vand.u32 %v27, 4294901760
  %2775 = vmatpush.msra.mxu0 %v2774
  %v2776 = vand.u32 %v25, 4294901760
  %2777 = vmatpush.msra.mxu0 %v2776
  %v2778 = vand.u32 %v155, 4294901760
  %2779 = vmatpush.msra.mxu0 %v2778
  %v2780 = vand.u32 %v154, 4294901760
  %2781 = vmatpush.msra.mxu0 %v2780
  %v2782 = vand.u32 %v122, 4294901760
  %2783 = vmatpush.msra.mxu0 %v2782
  %v2784 = vand.u32 %v121, 4294901760
  %2785 = vmatpush.msra.mxu0 %v2784
  %v2786 = vand.u32 %v89, 4294901760
  %2787 = vmatpush.msra.mxu0 %v2786
  %v2788 = vand.u32 %v88, 4294901760
  %2789 = vmatpush.msra.mxu0 %v2788
  %v2790 = vand.u32 %v56, 4294901760
  %2791 = vmatpush.msra.mxu0 %v2790
  %v2792 = vand.u32 %v55, 4294901760
  %2793 = vmatpush.msra.mxu0 %v2792
  %v2794 = vand.u32 %v275, 4294901760
  %2795 = vmatmul.f32.gmra.mxu0 %v2794
  %v2796 = vpop.f32.mrf.mxu0
  %v2797 = vadd.f32 %v2748, %v2796
  %v2798 = vand.u32 %v277, 4294901760
  %2799 = vmatmul.f32.gmra.mxu0 %v2798
  %v2800 = vpop.f32.mrf.mxu0
  %v2801 = vadd.f32 %v2752, %v2800
  %v2802 = vand.u32 %v279, 4294901760
  %2803 = vmatmul.f32.gmra.mxu0 %v2802
  %v2804 = vpop.f32.mrf.mxu0
  %v2805 = vadd.f32 %v2756, %v2804
  %v2806 = vand.u32 %v281, 4294901760
  %2807 = vmatmul.f32.gmra.mxu0 %v2806
  %v2808 = vpop.f32.mrf.mxu0
  %v2809 = vadd.f32 %v2760, %v2808
  %2810 = vdwg.mxu0
  %2811 = vmatpush.msra.mxu0 0.0
  %2812 = vmatpush.msra.mxu0 0.0
  %2813 = vmatpush.msra.mxu0 0.0
  %2814 = vmatpush.msra.mxu0 0.0
  %2815 = vmatpush.msra.mxu0 0.0
  %2816 = vmatpush.msra.mxu0 0.0
  %2817 = vmatpush.msra.mxu0 0.0
  %2818 = vmatpush.msra.mxu0 0.0
  %2819 = vmatpush.msra.mxu0 0.0
  %2820 = vmatpush.msra.mxu0 0.0
  %2821 = vmatpush.msra.mxu0 0.0
  %2822 = vmatpush.msra.mxu0 0.0
  %2823 = vmatpush.msra.mxu0 0.0
  %2824 = vmatpush.msra.mxu0 0.0
  %v2825 = vand.u32 %v274, 4294901760
  %2826 = vmatpush.msra.mxu0 %v2825
  %v2827 = vand.u32 %v273, 4294901760
  %2828 = vmatpush.msra.mxu0 %v2827
  %v2829 = vand.u32 %v308, 4294901760
  %v2830 = vsub.f32 %v308, %v2829
  %v2831 = vand.u32 %v2830, 4294901760
  %v2832 = vsub.f32 %v2830, %v2831
  %v2833 = vand.u32 %v2832, 4294901760
  %2834 = vmatmul.f32.gmra.mxu0 %v2833
  %v2835 = vpop.f32.mrf.mxu0
  %v2836 = vadd.f32 %v2797, %v2835
  %v2837 = vand.u32 %v311, 4294901760
  %v2838 = vsub.f32 %v311, %v2837
  %v2839 = vand.u32 %v2838, 4294901760
  %v2840 = vsub.f32 %v2838, %v2839
  %v2841 = vand.u32 %v2840, 4294901760
  %2842 = vmatmul.f32.gmra.mxu0 %v2841
  %v2843 = vpop.f32.mrf.mxu0
  %v2844 = vadd.f32 %v2801, %v2843
  %v2845 = vand.u32 %v314, 4294901760
  %v2846 = vsub.f32 %v314, %v2845
  %v2847 = vand.u32 %v2846, 4294901760
  %v2848 = vsub.f32 %v2846, %v2847
  %v2849 = vand.u32 %v2848, 4294901760
  %2850 = vmatmul.f32.gmra.mxu0 %v2849
  %v2851 = vpop.f32.mrf.mxu0
  %v2852 = vadd.f32 %v2805, %v2851
  %v2853 = vand.u32 %v317, 4294901760
  %v2854 = vsub.f32 %v317, %v2853
  %v2855 = vand.u32 %v2854, 4294901760
  %v2856 = vsub.f32 %v2854, %v2855
  %v2857 = vand.u32 %v2856, 4294901760
  %2858 = vmatmul.f32.gmra.mxu0 %v2857
  %v2859 = vpop.f32.mrf.mxu0
  %v2860 = vadd.f32 %v2809, %v2859
  %2861 = vdwg.mxu0
  %2862 = vmatpush.msra.mxu0 0.0
  %2863 = vmatpush.msra.mxu0 0.0
  %2864 = vmatpush.msra.mxu0 0.0
  %2865 = vmatpush.msra.mxu0 0.0
  %2866 = vmatpush.msra.mxu0 0.0
  %2867 = vmatpush.msra.mxu0 0.0
  %2868 = vmatpush.msra.mxu0 0.0
  %2869 = vmatpush.msra.mxu0 0.0
  %2870 = vmatpush.msra.mxu0 0.0
  %2871 = vmatpush.msra.mxu0 0.0
  %2872 = vmatpush.msra.mxu0 0.0
  %2873 = vmatpush.msra.mxu0 0.0
  %2874 = vmatpush.msra.mxu0 0.0
  %2875 = vmatpush.msra.mxu0 0.0
  %v2876 = vand.u32 %v274, 4294901760
  %v2877 = vsub.f32 %v274, %v2876
  %v2878 = vand.u32 %v2877, 4294901760
  %v2879 = vsub.f32 %v2877, %v2878
  %v2880 = vand.u32 %v2879, 4294901760
  %2881 = vmatpush.msra.mxu0 %v2880
  %v2882 = vand.u32 %v273, 4294901760
  %v2883 = vsub.f32 %v273, %v2882
  %v2884 = vand.u32 %v2883, 4294901760
  %v2885 = vsub.f32 %v2883, %v2884
  %v2886 = vand.u32 %v2885, 4294901760
  %2887 = vmatpush.msra.mxu0 %v2886
  %v2888 = vand.u32 %v308, 4294901760
  %2889 = vmatmul.f32.gmra.mxu0 %v2888
  %v2890 = vpop.f32.mrf.mxu0
  %v2891 = vadd.f32 %v2836, %v2890
  %v2892 = vand.u32 %v311, 4294901760
  %2893 = vmatmul.f32.gmra.mxu0 %v2892
  %v2894 = vpop.f32.mrf.mxu0
  %v2895 = vadd.f32 %v2844, %v2894
  %v2896 = vand.u32 %v314, 4294901760
  %2897 = vmatmul.f32.gmra.mxu0 %v2896
  %v2898 = vpop.f32.mrf.mxu0
  %v2899 = vadd.f32 %v2852, %v2898
  %v2900 = vand.u32 %v317, 4294901760
  %2901 = vmatmul.f32.gmra.mxu0 %v2900
  %v2902 = vpop.f32.mrf.mxu0
  %v2903 = vadd.f32 %v2860, %v2902
  %2904 = vdwg.mxu0
  %2905 = vmatpush.msra.mxu0 0.0
  %2906 = vmatpush.msra.mxu0 0.0
  %2907 = vmatpush.msra.mxu0 0.0
  %2908 = vmatpush.msra.mxu0 0.0
  %2909 = vmatpush.msra.mxu0 0.0
  %2910 = vmatpush.msra.mxu0 0.0
  %2911 = vmatpush.msra.mxu0 0.0
  %2912 = vmatpush.msra.mxu0 0.0
  %2913 = vmatpush.msra.mxu0 0.0
  %2914 = vmatpush.msra.mxu0 0.0
  %2915 = vmatpush.msra.mxu0 0.0
  %2916 = vmatpush.msra.mxu0 0.0
  %2917 = vmatpush.msra.mxu0 0.0
  %2918 = vmatpush.msra.mxu0 0.0
  %v2919 = vand.u32 %v274, 4294901760
  %v2920 = vsub.f32 %v274, %v2919
  %2921 = vmatpush.msra.mxu0 %v2920
  %v2922 = vand.u32 %v273, 4294901760
  %v2923 = vsub.f32 %v273, %v2922
  %2924 = vmatpush.msra.mxu0 %v2923
  %v2925 = vand.u32 %v308, 4294901760
  %v2926 = vsub.f32 %v308, %v2925
  %2927 = vmatmul.f32.gmra.mxu0 %v2926
  %v2928 = vpop.f32.mrf.mxu0
  %v2929 = vadd.f32 %v2891, %v2928
  %v2930 = vand.u32 %v311, 4294901760
  %v2931 = vsub.f32 %v311, %v2930
  %2932 = vmatmul.f32.gmra.mxu0 %v2931
  %v2933 = vpop.f32.mrf.mxu0
  %v2934 = vadd.f32 %v2895, %v2933
  %v2935 = vand.u32 %v314, 4294901760
  %v2936 = vsub.f32 %v314, %v2935
  %2937 = vmatmul.f32.gmra.mxu0 %v2936
  %v2938 = vpop.f32.mrf.mxu0
  %v2939 = vadd.f32 %v2899, %v2938
  %v2940 = vand.u32 %v317, 4294901760
  %v2941 = vsub.f32 %v317, %v2940
  %2942 = vmatmul.f32.gmra.mxu0 %v2941
  %v2943 = vpop.f32.mrf.mxu0
  %v2944 = vadd.f32 %v2903, %v2943
  %2945 = vdwg.mxu0
  %2946 = vmatpush.msra.mxu0 0.0
  %2947 = vmatpush.msra.mxu0 0.0
  %2948 = vmatpush.msra.mxu0 0.0
  %2949 = vmatpush.msra.mxu0 0.0
  %2950 = vmatpush.msra.mxu0 0.0
  %2951 = vmatpush.msra.mxu0 0.0
  %2952 = vmatpush.msra.mxu0 0.0
  %2953 = vmatpush.msra.mxu0 0.0
  %2954 = vmatpush.msra.mxu0 0.0
  %2955 = vmatpush.msra.mxu0 0.0
  %2956 = vmatpush.msra.mxu0 0.0
  %2957 = vmatpush.msra.mxu0 0.0
  %2958 = vmatpush.msra.mxu0 0.0
  %2959 = vmatpush.msra.mxu0 0.0
  %v2960 = vand.u32 %v274, 4294901760
  %2961 = vmatpush.msra.mxu0 %v2960
  %v2962 = vand.u32 %v273, 4294901760
  %2963 = vmatpush.msra.mxu0 %v2962
  %v2964 = vand.u32 %v308, 4294901760
  %v2965 = vsub.f32 %v308, %v2964
  %v2966 = vand.u32 %v2965, 4294901760
  %2967 = vmatmul.f32.gmra.mxu0 %v2966
  %v2968 = vpop.f32.mrf.mxu0
  %v2969 = vadd.f32 %v2929, %v2968
  %v2970 = vand.u32 %v311, 4294901760
  %v2971 = vsub.f32 %v311, %v2970
  %v2972 = vand.u32 %v2971, 4294901760
  %2973 = vmatmul.f32.gmra.mxu0 %v2972
  %v2974 = vpop.f32.mrf.mxu0
  %v2975 = vadd.f32 %v2934, %v2974
  %v2976 = vand.u32 %v314, 4294901760
  %v2977 = vsub.f32 %v314, %v2976
  %v2978 = vand.u32 %v2977, 4294901760
  %2979 = vmatmul.f32.gmra.mxu0 %v2978
  %v2980 = vpop.f32.mrf.mxu0
  %v2981 = vadd.f32 %v2939, %v2980
  %v2982 = vand.u32 %v317, 4294901760
  %v2983 = vsub.f32 %v317, %v2982
  %v2984 = vand.u32 %v2983, 4294901760
  %2985 = vmatmul.f32.gmra.mxu0 %v2984
  %v2986 = vpop.f32.mrf.mxu0
  %v2987 = vadd.f32 %v2944, %v2986
  %2988 = vdwg.mxu0
  %2989 = vmatpush.msra.mxu0 0.0
  %2990 = vmatpush.msra.mxu0 0.0
  %2991 = vmatpush.msra.mxu0 0.0
  %2992 = vmatpush.msra.mxu0 0.0
  %2993 = vmatpush.msra.mxu0 0.0
  %2994 = vmatpush.msra.mxu0 0.0
  %2995 = vmatpush.msra.mxu0 0.0
  %2996 = vmatpush.msra.mxu0 0.0
  %2997 = vmatpush.msra.mxu0 0.0
  %2998 = vmatpush.msra.mxu0 0.0
  %2999 = vmatpush.msra.mxu0 0.0
  %3000 = vmatpush.msra.mxu0 0.0
  %3001 = vmatpush.msra.mxu0 0.0
  %3002 = vmatpush.msra.mxu0 0.0
  %v3003 = vand.u32 %v274, 4294901760
  %v3004 = vsub.f32 %v274, %v3003
  %v3005 = vand.u32 %v3004, 4294901760
  %3006 = vmatpush.msra.mxu0 %v3005
  %v3007 = vand.u32 %v273, 4294901760
  %v3008 = vsub.f32 %v273, %v3007
  %v3009 = vand.u32 %v3008, 4294901760
  %3010 = vmatpush.msra.mxu0 %v3009
  %v3011 = vand.u32 %v308, 4294901760
  %3012 = vmatmul.f32.gmra.mxu0 %v3011
  %v3013 = vpop.f32.mrf.mxu0
  %v3014 = vadd.f32 %v2969, %v3013
  %v3015 = vand.u32 %v311, 4294901760
  %3016 = vmatmul.f32.gmra.mxu0 %v3015
  %v3017 = vpop.f32.mrf.mxu0
  %v3018 = vadd.f32 %v2975, %v3017
  %v3019 = vand.u32 %v314, 4294901760
  %3020 = vmatmul.f32.gmra.mxu0 %v3019
  %v3021 = vpop.f32.mrf.mxu0
  %v3022 = vadd.f32 %v2981, %v3021
  %v3023 = vand.u32 %v317, 4294901760
  %3024 = vmatmul.f32.gmra.mxu0 %v3023
  %v3025 = vpop.f32.mrf.mxu0
  %v3026 = vadd.f32 %v2987, %v3025
  %3027 = vdwg.mxu0
  %3028 = vmatpush.msra.mxu0 0.0
  %3029 = vmatpush.msra.mxu0 0.0
  %3030 = vmatpush.msra.mxu0 0.0
  %3031 = vmatpush.msra.mxu0 0.0
  %3032 = vmatpush.msra.mxu0 0.0
  %3033 = vmatpush.msra.mxu0 0.0
  %3034 = vmatpush.msra.mxu0 0.0
  %3035 = vmatpush.msra.mxu0 0.0
  %3036 = vmatpush.msra.mxu0 0.0
  %3037 = vmatpush.msra.mxu0 0.0
  %3038 = vmatpush.msra.mxu0 0.0
  %3039 = vmatpush.msra.mxu0 0.0
  %3040 = vmatpush.msra.mxu0 0.0
  %3041 = vmatpush.msra.mxu0 0.0
  %v3042 = vand.u32 %v274, 4294901760
  %3043 = vmatpush.msra.mxu0 %v3042
  %v3044 = vand.u32 %v273, 4294901760
  %3045 = vmatpush.msra.mxu0 %v3044
  %v3046 = vand.u32 %v308, 4294901760
  %3047 = vmatmul.f32.gmra.mxu0 %v3046
  %v3048 = vpop.f32.mrf.mxu0
  %v3049 = vadd.f32 %v3014, %v3048
  %v3050 = vand.u32 %v311, 4294901760
  %3051 = vmatmul.f32.gmra.mxu0 %v3050
  %v3052 = vpop.f32.mrf.mxu0
  %v3053 = vadd.f32 %v3018, %v3052
  %v3054 = vand.u32 %v314, 4294901760
  %3055 = vmatmul.f32.gmra.mxu0 %v3054
  %v3056 = vpop.f32.mrf.mxu0
  %v3057 = vadd.f32 %v3022, %v3056
  %v3058 = vand.u32 %v317, 4294901760
  %3059 = vmatmul.f32.gmra.mxu0 %v3058
  %v3060 = vpop.f32.mrf.mxu0
  %v3061 = vadd.f32 %v3026, %v3060
  %3062 = vdwg.mxu0
  %v3063 = vadd.f32 %v991, %v1677
  %3064 = vadd.xlane.f32.xlu0 %v3063
  %v3065 = vpop.xlane.xlu0 %3064
  %v3066 = vadd.f32 %v995, %v1681
  %3067 = vadd.xlane.f32.xlu0 %v3066
  %v3068 = vpop.xlane.xlu0 %3067
  %v3069 = vadd.f32 %v999, %v1685
  %3070 = vadd.xlane.f32.xlu0 %v3069
  %v3071 = vpop.xlane.xlu0 %3070
  %v3072 = vadd.f32 %v1003, %v1689
  %3073 = vadd.xlane.f32.xlu0 %v3072
  %v3074 = vpop.xlane.xlu0 %3073
  %v3075 = vadd.f32 %v3065, 0.0
  %v3076 = vadd.f32 %v3068, 0.0
  %v3077 = vadd.f32 %v3071, 0.0
  %v3078 = vadd.f32 %v3074, 0.0
  %v3079 = vadd.f32 %v2363, %v3049
  %3080 = vadd.xlane.f32.xlu0 %v3079
  %v3081 = vpop.xlane.xlu0 %3080
  %v3082 = vadd.f32 %v2367, %v3053
  %3083 = vadd.xlane.f32.xlu0 %v3082
  %v3084 = vpop.xlane.xlu0 %3083
  %v3085 = vadd.f32 %v2371, %v3057
  %3086 = vadd.xlane.f32.xlu0 %v3085
  %v3087 = vpop.xlane.xlu0 %3086
  %v3088 = vadd.f32 %v2375, %v3061
  %3089 = vadd.xlane.f32.xlu0 %v3088
  %v3090 = vpop.xlane.xlu0 %3089
  %v3091 = vadd.f32 %v3075, %v3081
  %v3092 = vadd.f32 %v3076, %v3084
  %v3093 = vadd.f32 %v3077, %v3087
  %v3094 = vadd.f32 %v3078, %v3090
  %v3095 = vmul.f32 %v3091, 0.001953125
  %v3096 = vmul.f32 %v3092, 0.001953125
  %v3097 = vmul.f32 %v3093, 0.001953125
  %v3098 = vmul.f32 %v3094, 0.001953125
  %v3099 = vsub.f32 %v991, %v3095
  %v3100 = vsub.f32 %v1677, %v3095
  %v3101 = vsub.f32 %v995, %v3096
  %v3102 = vsub.f32 %v1681, %v3096
  %v3103 = vsub.f32 %v999, %v3097
  %v3104 = vsub.f32 %v1685, %v3097
  %v3105 = vsub.f32 %v1003, %v3098
  %v3106 = vsub.f32 %v1689, %v3098
  %v3107 = vmul.f32 %v3099, %v3099
  %v3108 = vmul.f32 %v3100, %v3100
  %v3109 = vmul.f32 %v3101, %v3101
  %v3110 = vmul.f32 %v3102, %v3102
  %v3111 = vmul.f32 %v3103, %v3103
  %v3112 = vmul.f32 %v3104, %v3104
  %v3113 = vmul.f32 %v3105, %v3105
  %v3114 = vmul.f32 %v3106, %v3106
  %v3115 = vadd.f32 %v3107, %v3108
  %3116 = vadd.xlane.f32.xlu0 %v3115
  %v3117 = vpop.xlane.xlu0 %3116
  %v3118 = vadd.f32 %v3109, %v3110
  %3119 = vadd.xlane.f32.xlu0 %v3118
  %v3120 = vpop.xlane.xlu0 %3119
  %v3121 = vadd.f32 %v3111, %v3112
  %3122 = vadd.xlane.f32.xlu0 %v3121
  %v3123 = vpop.xlane.xlu0 %3122
  %v3124 = vadd.f32 %v3113, %v3114
  %3125 = vadd.xlane.f32.xlu0 %v3124
  %v3126 = vpop.xlane.xlu0 %3125
  %v3127 = vadd.f32 %v3117, 0.0
  %v3128 = vadd.f32 %v3120, 0.0
  %v3129 = vadd.f32 %v3123, 0.0
  %v3130 = vadd.f32 %v3126, 0.0
  %v3131 = vsub.f32 %v2363, %v3095
  %v3132 = vsub.f32 %v3049, %v3095
  %v3133 = vsub.f32 %v2367, %v3096
  %v3134 = vsub.f32 %v3053, %v3096
  %v3135 = vsub.f32 %v2371, %v3097
  %v3136 = vsub.f32 %v3057, %v3097
  %v3137 = vsub.f32 %v2375, %v3098
  %v3138 = vsub.f32 %v3061, %v3098
  %v3139 = vmul.f32 %v3131, %v3131
  %v3140 = vmul.f32 %v3132, %v3132
  %v3141 = vmul.f32 %v3133, %v3133
  %v3142 = vmul.f32 %v3134, %v3134
  %v3143 = vmul.f32 %v3135, %v3135
  %v3144 = vmul.f32 %v3136, %v3136
  %v3145 = vmul.f32 %v3137, %v3137
  %v3146 = vmul.f32 %v3138, %v3138
  %v3147 = vadd.f32 %v3139, %v3140
  %3148 = vadd.xlane.f32.xlu0 %v3147
  %v3149 = vpop.xlane.xlu0 %3148
  %v3150 = vadd.f32 %v3141, %v3142
  %3151 = vadd.xlane.f32.xlu0 %v3150
  %v3152 = vpop.xlane.xlu0 %3151
  %v3153 = vadd.f32 %v3143, %v3144
  %3154 = vadd.xlane.f32.xlu0 %v3153
  %v3155 = vpop.xlane.xlu0 %3154
  %v3156 = vadd.f32 %v3145, %v3146
  %3157 = vadd.xlane.f32.xlu0 %v3156
  %v3158 = vpop.xlane.xlu0 %3157
  %v3159 = vadd.f32 %v3127, %v3149
  %v3160 = vadd.f32 %v3128, %v3152
  %v3161 = vadd.f32 %v3129, %v3155
  %v3162 = vadd.f32 %v3130, %v3158
  %v3163 = vmul.f32 %v3159, 0.001953125
  %v3164 = vmul.f32 %v3160, 0.001953125
  %v3165 = vmul.f32 %v3161, 0.001953125
  %v3166 = vmul.f32 %v3162, 0.001953125
  %v3167 = vld [vmem:[%s3] sm:$0xff]
  %v3168 = vld [vmem:[%s3 + $0x8] sm:$0xff]
  %v3169 = vld [vmem:[%s3 + $0x10] sm:$0xff]
  %v3170 = vld [vmem:[%s3 + $0x18] sm:$0xff]
  %v3171 = vadd.f32 %v3163, 1e-05
  %v3172 = vadd.f32 %v3164, 1e-05
  %v3173 = vadd.f32 %v3165, 1e-05
  %v3174 = vadd.f32 %v3166, 1e-05
  %v3175 = vrsqrt.pop %v3171
  %v3176 = vmul.f32 %v3175, %v3171
  %v3177 = vmul.f32 %v3176, %v3175
  %v3178 = vmul.f32 0.5, %v3177
  %v3179 = vsub.f32 1.5, %v3178
  %v3180 = vmul.f32 %v3175, %v3179
  %vm3181 = vweird.f32 %v3171
  %vm3182 = vweird.f32 %v3175
  %vm3183 = vmor %vm3181, %vm3182
  %v3184 = vsel %vm3183, %v3175, %v3180
  %v3185 = vrsqrt.pop %v3172
  %v3186 = vmul.f32 %v3185, %v3172
  %v3187 = vmul.f32 %v3186, %v3185
  %v3188 = vmul.f32 0.5, %v3187
  %v3189 = vsub.f32 1.5, %v3188
  %v3190 = vmul.f32 %v3185, %v3189
  %vm3191 = vweird.f32 %v3172
  %vm3192 = vweird.f32 %v3185
  %vm3193 = vmor %vm3191, %vm3192
  %v3194 = vsel %vm3193, %v3185, %v3190
  %v3195 = vrsqrt.pop %v3173
  %v3196 = vmul.f32 %v3195, %v3173
  %v3197 = vmul.f32 %v3196, %v3195
  %v3198 = vmul.f32 0.5, %v3197
  %v3199 = vsub.f32 1.5, %v3198
  %v3200 = vmul.f32 %v3195, %v3199
  %vm3201 = vweird.f32 %v3173
  %vm3202 = vweird.f32 %v3195
  %vm3203 = vmor %vm3201, %vm3202
  %v3204 = vsel %vm3203, %v3195, %v3200
  %v3205 = vrsqrt.pop %v3174
  %v3206 = vmul.f32 %v3205, %v3174
  %v3207 = vmul.f32 %v3206, %v3205
  %v3208 = vmul.f32 0.5, %v3207
  %v3209 = vsub.f32 1.5, %v3208
  %v3210 = vmul.f32 %v3205, %v3209
  %vm3211 = vweird.f32 %v3174
  %vm3212 = vweird.f32 %v3205
  %vm3213 = vmor %vm3211, %vm3212
  %v3214 = vsel %vm3213, %v3205, %v3210
  %v3215 = vmul.f32 %v3167, %v3184
  %v3216 = vmul.f32 %v3168, %v3194
  %v3217 = vmul.f32 %v3169, %v3204
  %v3218 = vmul.f32 %v3170, %v3214
  %v3219 = vld [vmem:[%s4] sm:$0xff]
  %v3220 = vld [vmem:[%s4 + $0x8] sm:$0xff]
  %v3221 = vld [vmem:[%s4 + $0x10] sm:$0xff]
  %v3222 = vld [vmem:[%s4 + $0x18] sm:$0xff]
  %v3223 = vmul.f32 %v3095, %v3215
  %v3224 = vmul.f32 %v3096, %v3216
  %v3225 = vmul.f32 %v3097, %v3217
  %v3226 = vmul.f32 %v3098, %v3218
  %v3227 = vsub.f32 %v3219, %v3223
  %v3228 = vsub.f32 %v3220, %v3224
  %v3229 = vsub.f32 %v3221, %v3225
  %v3230 = vsub.f32 %v3222, %v3226
  %3232 = vset.pattern.permute.xlu0 0
  %3233 = vperm.xlu0 %3232, %v3215
  %v3234 = vpop.permute.xlu0 %3233
  %3237 = vset.pattern.permute.xlu0 0
  %3238 = vperm.xlu0 %3237, %v3216
  %v3239 = vpop.permute.xlu0 %3238
  %3242 = vset.pattern.permute.xlu0 0
  %3243 = vperm.xlu0 %3242, %v3217
  %v3244 = vpop.permute.xlu0 %3243
  %3247 = vset.pattern.permute.xlu0 0
  %3248 = vperm.xlu0 %3247, %v3218
  %v3249 = vpop.permute.xlu0 %3248
  %v3251 = vmul.f32 %v991, %v3234
  %v3252 = vmul.f32 %v1677, %v3234
  %v3253 = vmul.f32 %v995, %v3239
  %v3254 = vmul.f32 %v1681, %v3239
  %v3255 = vmul.f32 %v999, %v3244
  %v3256 = vmul.f32 %v1685, %v3244
  %v3257 = vmul.f32 %v1003, %v3249
  %v3258 = vmul.f32 %v1689, %v3249
  %3260 = vset.pattern.permute.xlu0 0
  %3261 = vperm.xlu0 %3260, %v3227
  %v3262 = vpop.permute.xlu0 %3261
  %3265 = vset.pattern.permute.xlu0 0
  %3266 = vperm.xlu0 %3265, %v3228
  %v3267 = vpop.permute.xlu0 %3266
  %3270 = vset.pattern.permute.xlu0 0
  %3271 = vperm.xlu0 %3270, %v3229
  %v3272 = vpop.permute.xlu0 %3271
  %3275 = vset.pattern.permute.xlu0 0
  %3276 = vperm.xlu0 %3275, %v3230
  %v3277 = vpop.permute.xlu0 %3276
  %v3279 = vadd.f32 %v3251, %v3262
  %v3280 = vadd.f32 %v3252, %v3262
  %v3281 = vadd.f32 %v3253, %v3267
  %v3282 = vadd.f32 %v3254, %v3267
  %v3283 = vadd.f32 %v3255, %v3272
  %v3284 = vadd.f32 %v3256, %v3272
  %v3285 = vadd.f32 %v3257, %v3277
  %v3286 = vadd.f32 %v3258, %v3277
  %3287 = vst [vmem:[%s5] sm:$0xff] %v3279
  %3288 = vst [vmem:[%s5 + $0x8] sm:$0xff] %v3280
  %3289 = vst [vmem:[%s5 + $0x10] sm:$0xff] %v3281
  %3290 = vst [vmem:[%s5 + $0x18] sm:$0xff] %v3282
  %3291 = vst [vmem:[%s5 + $0x20] sm:$0xff] %v3283
  %3292 = vst [vmem:[%s5 + $0x28] sm:$0xff] %v3284
  %3293 = vst [vmem:[%s5 + $0x30] sm:$0xff] %v3285
  %3294 = vst [vmem:[%s5 + $0x38] sm:$0xff] %v3286
  %v3295 = vmul.f32 %v2363, %v3234
  %v3296 = vmul.f32 %v3049, %v3234
  %v3297 = vmul.f32 %v2367, %v3239
  %v3298 = vmul.f32 %v3053, %v3239
  %v3299 = vmul.f32 %v2371, %v3244
  %v3300 = vmul.f32 %v3057, %v3244
  %v3301 = vmul.f32 %v2375, %v3249
  %v3302 = vmul.f32 %v3061, %v3249
  %v3303 = vadd.f32 %v3295, %v3262
  %v3304 = vadd.f32 %v3296, %v3262
  %v3305 = vadd.f32 %v3297, %v3267
  %v3306 = vadd.f32 %v3298, %v3267
  %v3307 = vadd.f32 %v3299, %v3272
  %v3308 = vadd.f32 %v3300, %v3272
  %v3309 = vadd.f32 %v3301, %v3277
  %v3310 = vadd.f32 %v3302, %v3277
  %s3311 = scalar_lea.vmem %s5, 64
  %3312 = vst [vmem:[%s3311] sm:$0xff] %v3303
  %3313 = vst [vmem:[%s3311 + $0x8] sm:$0xff] %v3304
  %3314 = vst [vmem:[%s3311 + $0x10] sm:$0xff] %v3305
  %3315 = vst [vmem:[%s3311 + $0x18] sm:$0xff] %v3306
  %3316 = vst [vmem:[%s3311 + $0x20] sm:$0xff] %v3307
  %3317 = vst [vmem:[%s3311 + $0x28] sm:$0xff] %v3308
  %3318 = vst [vmem:[%s3311 + $0x30] sm:$0xff] %v3309
  %3319 = vst [vmem:[%s3311 + $0x38] sm:$0xff] %v3310
  // Predicated region
  $region22: #{tcn_forward.1} parent=0 // pred_check
    _
  $region23: #{tcn_forward.1} parent=0 // pred_check_branch
    %3321 = sbr.rel (0) target = $region25
  $region24: #{tcn_forward.1} parent=0 // pred_region
    _
  $region25: #{tcn_forward.1} parent=0 // pred_fallthru
    _
  // Predicated region
  $region26: #{tcn_forward.1} parent=0 // pred_check
    _
  $region27: #{tcn_forward.1} parent=0 // pred_check_branch
    %3323 = sbr.rel (0) target = $region29
  $region28: #{tcn_forward.1} parent=0 // pred_region
    _
  $region29: #{tcn_forward.1} parent=0 // pred_fallthru
    _

</llo_original>
